<compile_context>
chip_gen: v6e
topology: v6e:2x2x1
jax: 0.10.0
libtpu: 0.0.40
codegen_flags: <defaults>
</compile_context>

<pallas_src>
import functools

import jax
import jax.numpy as jnp
from jax.experimental import pallas as pl
from jax.experimental.pallas import tpu as pltpu


D_IN, D_H, D_Z = 784, 400, 20
D_PAD = 128          # lane-padded latent dim
TB_MAX = 256         # max batch-tile rows per grid step


def _round_up(n, m):
    return ((n + m - 1) // m) * m


def _vae_kernel(x_ref, eps_ref,
                w1_ref, b1_ref,
                wml_ref, bml_ref,
                w3_ref, b3_ref,
                w4_ref, b4_ref,
                recon_ref, mulv_ref):
    x = x_ref[...]                                        # (TB, 784) bf16

    # encode: h1 = relu(x @ W1 + b1)   (MXU bf16 -> f32 acc, relu in f32)
    h1 = jnp.dot(x, w1_ref[...], preferred_element_type=jnp.float32) + b1_ref[...]
    h1 = jnp.maximum(h1, 0.0).astype(jnp.bfloat16)        # (TB, 400)

    # fused mu|logvar projection on a lane-padded (400, 256) weight
    mulv = jnp.dot(h1, wml_ref[...], preferred_element_type=jnp.float32) + bml_ref[...]
    mu_pad = mulv[:, :D_PAD]                              # (TB, 128)  cols >=20 are 0
    logvar_pad = mulv[:, D_PAD:]                          # (TB, 128)  cols >=20 are 0

    # reparameterize: z = mu + eps * exp(0.5 * logvar)   (f32 VPU/EUP)
    std = jnp.exp(0.5 * logvar_pad)
    z = (mu_pad + eps_ref[...] * std).astype(jnp.bfloat16)   # (TB, 128), padded cols 0

    # decode: sigmoid(relu(z @ W3 + b3) @ W4 + b4)
    h3 = jnp.dot(z, w3_ref[...], preferred_element_type=jnp.float32) + b3_ref[...]
    h3 = jnp.maximum(h3, 0.0).astype(jnp.bfloat16)        # (TB, 400)
    logits = jnp.dot(h3, w4_ref[...], preferred_element_type=jnp.float32) + b4_ref[...]

    recon_ref[...] = jax.nn.sigmoid(logits)               # (TB, 784) f32
    mulv_ref[...] = mulv                                  # (TB, 256) f32, lane-dense


def _pack_params(params):
    """Cast/pad the raw f32 params into the kernel's fused bf16 layout."""
    (w1, b1, w21, b21, w22, b22, w3, b3, w4, b4) = params

    wml = jnp.zeros((D_H, 2 * D_PAD), jnp.float32)
    wml = wml.at[:, :D_Z].set(w21).at[:, D_PAD:D_PAD + D_Z].set(w22)
    bml = jnp.zeros((1, 2 * D_PAD), jnp.float32)
    bml = bml.at[:, :D_Z].set(b21).at[:, D_PAD:D_PAD + D_Z].set(b22)

    w3p = jnp.zeros((D_PAD, D_H), jnp.float32).at[:D_Z, :].set(w3)

    bf = jnp.bfloat16
    return (w1.astype(bf), b1,
            wml.astype(bf), bml,
            w3p.astype(bf), b3,
            w4.astype(bf), b4)


@functools.partial(jax.jit, static_argnames=())
def vae_forward(x, eps, params):
    """x: any shape reshapeable to (-1, 784) (e.g. (B,1,28,28)); eps: (B, 20)."""
    x2d = x.reshape(-1, D_IN).astype(jnp.bfloat16)        # torch: x.view(-1, 784)
    B = x2d.shape[0]

    # batch tiling (rows padded with zeros; results sliced back at the end)
    b_pad = _round_up(B, 8)
    tb = min(TB_MAX, b_pad)
    b_pad = _round_up(b_pad, tb)
    n_tiles = b_pad // tb

    x_p = jnp.zeros((b_pad, D_IN), jnp.bfloat16).at[:B].set(x2d)
    eps_p = jnp.zeros((b_pad, D_PAD), jnp.float32).at[:B, :D_Z].set(
        eps.astype(jnp.float32))

    w1, b1, wml, bml, w3p, b3, w4, b4 = _pack_params(params)

    def tile_spec(cols):
        return pl.BlockSpec((tb, cols), lambda i: (i, 0))

    def resident_spec(a):
        return pl.BlockSpec(a.shape, lambda i: (0, 0))     # VMEM-resident weights

    in_specs = [
        tile_spec(D_IN),          # x
        tile_spec(D_PAD),         # eps
        resident_spec(w1), resident_spec(b1),
        resident_spec(wml), resident_spec(bml),
        resident_spec(w3p), resident_spec(b3),
        resident_spec(w4), resident_spec(b4),
    ]
    out_shape = (
        jax.ShapeDtypeStruct((b_pad, D_IN), jnp.float32),      # recon
        jax.ShapeDtypeStruct((b_pad, 2 * D_PAD), jnp.float32),  # mu|logvar (padded)
    )
    out_specs = (tile_spec(D_IN), tile_spec(2 * D_PAD))

    recon_p, mulv_p = pl.pallas_call(
        _vae_kernel,
        out_shape=out_shape,
        grid=(n_tiles,),
        in_specs=in_specs,
        out_specs=out_specs,
        compiler_params=pltpu.CompilerParams(
            dimension_semantics=("parallel",)),
    )(x_p, eps_p, w1, b1, wml, bml, w3p, b3, w4, b4)

    recon = recon_p[:B]
    mu = mulv_p[:B, :D_Z]
    logvar = mulv_p[:B, D_PAD:D_PAD + D_Z]
    return recon, mu, logvar


def init_params(key):
    """Deterministic init mimicking nn.Linear default (U(-1/sqrt(fan_in), +1/sqrt(fan_in)))."""
    def linear(key, fan_in, fan_out):
        kw, kb = jax.random.split(key)
        bound = 1.0 / jnp.sqrt(fan_in)
        # stored as (in, out) so the kernel computes x @ W + b
        w = jax.random.uniform(kw, (fan_in, fan_out), jnp.float32, -bound, bound)
        b = jax.random.uniform(kb, (1, fan_out), jnp.float32, -bound, bound)
        return w, b

    k1, k21, k22, k3, k4 = jax.random.split(key, 5)
    w1, b1 = linear(k1, D_IN, D_H)
    w21, b21 = linear(k21, D_H, D_Z)
    w22, b22 = linear(k22, D_H, D_Z)
    w3, b3 = linear(k3, D_Z, D_H)
    w4, b4 = linear(k4, D_H, D_IN)
    return (w1, b1, w21, b21, w22, b22, w3, b3, w4, b4)


def vae_forward_ref_f32(x, eps, params):
    """Pure-JAX f32 reference of the torch forward pass (same eps)."""
    (w1, b1, w21, b21, w22, b22, w3, b3, w4, b4) = params
    x2d = x.reshape(-1, D_IN).astype(jnp.float32)
    h1 = jnp.maximum(x2d @ w1 + b1, 0.0)
    mu = h1 @ w21 + b21
    logvar = h1 @ w22 + b22
    z = mu + eps * jnp.exp(0.5 * logvar)
    h3 = jnp.maximum(z @ w3 + b3, 0.0)
    recon = jax.nn.sigmoid(h3 @ w4 + b4)
    return recon, mu, logvar


def vae_forward_ref_bf16(x, eps, params):
    """Pure-JAX reference that mirrors the kernel's bf16-weight / f32-acc math."""
    (w1, b1, w21, b21, w22, b22, w3, b3, w4, b4) = params
    bf = jnp.bfloat16
    dot = lambda a, b: jnp.dot(a.astype(bf), b.astype(bf),
                               preferred_element_type=jnp.float32)
    x2d = x.reshape(-1, D_IN).astype(jnp.float32)
    h1 = jnp.maximum(dot(x2d, w1) + b1, 0.0).astype(bf)
    mu = dot(h1, w21) + b21
    logvar = dot(h1, w22) + b22
    z = (mu + eps * jnp.exp(0.5 * logvar)).astype(bf)
    h3 = jnp.maximum(dot(z, w3) + b3, 0.0).astype(bf)
    recon = jax.nn.sigmoid(dot(h3, w4) + b4)
    return recon, mu, logvar


if __name__ == "__main__":
    key = jax.random.PRNGKey(0)
    k_params, k_x, k_eps = jax.random.split(key, 3)

    B = 2
    x = jax.random.uniform(k_x, (B, 1, 28, 28), jnp.float32)    # MNIST-like NCHW input
    params = init_params(k_params)
    eps = jax.random.normal(k_eps, (B, D_Z), jnp.float32)        # torch.randn_like(std)

    recon, mu, logvar = vae_forward(x, eps, params)
    jax.block_until_ready((recon, mu, logvar))

    assert recon.shape == (B, D_IN) and mu.shape == (B, D_Z) and logvar.shape == (B, D_Z)

    # tight check against a reference with matching bf16 casts
    r_bf, m_bf, lv_bf = vae_forward_ref_bf16(x, eps, params)
    assert jnp.allclose(recon, r_bf, atol=5e-3, rtol=5e-3)
    assert jnp.allclose(mu, m_bf, atol=5e-3, rtol=5e-3)
    assert jnp.allclose(logvar, lv_bf, atol=5e-3, rtol=5e-3)

    # loose check against the full-precision torch-equivalent reference
    r32, m32, lv32 = vae_forward_ref_f32(x, eps, params)
    assert jnp.allclose(recon, r32, atol=3e-2, rtol=3e-2)
    assert jnp.allclose(mu, m32, atol=3e-2, rtol=3e-2)
    assert jnp.allclose(logvar, lv32, atol=3e-2, rtol=3e-2)

    print("KERNEL_OK")
</pallas_src>

<mosaic_0001>
module attributes {stable_mosaic.version = 11 : i64} {
  func.func @_vae_kernel(%arg0: i32, %arg1: memref<8x784xbf16, #tpu.memory_space<vmem>>, %arg2: memref<8x128xf32, #tpu.memory_space<vmem>>, %arg3: memref<784x400xbf16, #tpu.memory_space<vmem>>, %arg4: memref<1x400xf32, #tpu.memory_space<vmem>>, %arg5: memref<400x256xbf16, #tpu.memory_space<vmem>>, %arg6: memref<1x256xf32, #tpu.memory_space<vmem>>, %arg7: memref<128x400xbf16, #tpu.memory_space<vmem>>, %arg8: memref<1x400xf32, #tpu.memory_space<vmem>>, %arg9: memref<400x784xbf16, #tpu.memory_space<vmem>>, %arg10: memref<1x784xf32, #tpu.memory_space<vmem>>, %arg11: memref<8x784xf32, #tpu.memory_space<vmem>>, %arg12: memref<8x256xf32, #tpu.memory_space<vmem>>) attributes {dimension_semantics = [#tpu.dimension_semantics<parallel>], iteration_bounds = array<i64: 1>, scalar_prefetch = 0 : i64, scratch_operands = 0 : i64, tpu.core_type = #tpu.core_type<tc>, window_params = [{transform_indices = @transform_0, window_bounds = array<i64: 8, 784>}, {transform_indices = @transform_1, window_bounds = array<i64: 8, 128>}, {pipeline_mode = #tpu.pipeline_mode<synchronous>, transform_indices = @transform_2, window_bounds = array<i64: 784, 400>}, {pipeline_mode = #tpu.pipeline_mode<synchronous>, transform_indices = @transform_3, window_bounds = array<i64: 1, 400>}, {pipeline_mode = #tpu.pipeline_mode<synchronous>, transform_indices = @transform_4, window_bounds = array<i64: 400, 256>}, {pipeline_mode = #tpu.pipeline_mode<synchronous>, transform_indices = @transform_5, window_bounds = array<i64: 1, 256>}, {pipeline_mode = #tpu.pipeline_mode<synchronous>, transform_indices = @transform_6, window_bounds = array<i64: 128, 400>}, {pipeline_mode = #tpu.pipeline_mode<synchronous>, transform_indices = @transform_7, window_bounds = array<i64: 1, 400>}, {pipeline_mode = #tpu.pipeline_mode<synchronous>, transform_indices = @transform_8, window_bounds = array<i64: 400, 784>}, {pipeline_mode = #tpu.pipeline_mode<synchronous>, transform_indices = @transform_9, window_bounds = array<i64: 1, 784>}, {transform_indices = @transform_10, window_bounds = array<i64: 8, 784>}, {transform_indices = @transform_11, window_bounds = array<i64: 8, 256>}]} {
    %c0 = arith.constant 0 : index
    %c0_0 = arith.constant 0 : index
    %0 = vector.load %arg1[%c0, %c0_0] : memref<8x784xbf16, #tpu.memory_space<vmem>>, vector<8x784xbf16>
    %c0_1 = arith.constant 0 : index
    %c0_2 = arith.constant 0 : index
    %1 = vector.load %arg3[%c0_1, %c0_2] : memref<784x400xbf16, #tpu.memory_space<vmem>>, vector<784x400xbf16>
    %cst = arith.constant dense<0.000000e+00> : vector<8x400xf32>
    %2 = tpu.matmul %0, %1, %cst {dimension_numbers = #tpu.dot_dimension_numbers<[1], [0], [0], [1], [0, 0, 1, 1], [], []>} : vector<8x784xbf16>, vector<784x400xbf16>, vector<8x400xf32> -> vector<8x400xf32>
    %c0_3 = arith.constant 0 : index
    %c0_4 = arith.constant 0 : index
    %3 = vector.load %arg4[%c0_3, %c0_4] : memref<1x400xf32, #tpu.memory_space<vmem>>, vector<1x400xf32>
    %4 = vector.broadcast %3 : vector<1x400xf32> to vector<8x400xf32>
    %5 = arith.addf %2, %4 : vector<8x400xf32>
    %cst_5 = arith.constant 0.000000e+00 : f32
    %6 = vector.broadcast %cst_5 : f32 to vector<8x400xf32>
    %7 = arith.maximumf %5, %6 : vector<8x400xf32>
    %8 = arith.truncf %7 : vector<8x400xf32> to vector<8x400xbf16>
    %c0_6 = arith.constant 0 : index
    %c0_7 = arith.constant 0 : index
    %9 = vector.load %arg5[%c0_6, %c0_7] : memref<400x256xbf16, #tpu.memory_space<vmem>>, vector<400x256xbf16>
    %cst_8 = arith.constant dense<0.000000e+00> : vector<8x256xf32>
    %10 = tpu.matmul %8, %9, %cst_8 {dimension_numbers = #tpu.dot_dimension_numbers<[1], [0], [0], [1], [0, 0, 1, 1], [], []>} : vector<8x400xbf16>, vector<400x256xbf16>, vector<8x256xf32> -> vector<8x256xf32>
    %c0_9 = arith.constant 0 : index
    %c0_10 = arith.constant 0 : index
    %11 = vector.load %arg6[%c0_9, %c0_10] : memref<1x256xf32, #tpu.memory_space<vmem>>, vector<1x256xf32>
    %12 = vector.broadcast %11 : vector<1x256xf32> to vector<8x256xf32>
    %13 = arith.addf %10, %12 : vector<8x256xf32>
    %14 = vector.extract_strided_slice %13 {offsets = [0, 0], sizes = [8, 128], strides = [1, 1]} : vector<8x256xf32> to vector<8x128xf32>
    %15 = vector.extract_strided_slice %13 {offsets = [0, 128], sizes = [8, 128], strides = [1, 1]} : vector<8x256xf32> to vector<8x128xf32>
    %cst_11 = arith.constant 5.000000e-01 : f32
    %16 = vector.broadcast %cst_11 : f32 to vector<8x128xf32>
    %17 = arith.mulf %16, %15 : vector<8x128xf32>
    %18 = math.exp %17 : vector<8x128xf32>
    %c0_12 = arith.constant 0 : index
    %c0_13 = arith.constant 0 : index
    %19 = vector.load %arg2[%c0_12, %c0_13] : memref<8x128xf32, #tpu.memory_space<vmem>>, vector<8x128xf32>
    %20 = arith.mulf %19, %18 : vector<8x128xf32>
    %21 = arith.addf %14, %20 : vector<8x128xf32>
    %22 = arith.truncf %21 : vector<8x128xf32> to vector<8x128xbf16>
    %c0_14 = arith.constant 0 : index
    %c0_15 = arith.constant 0 : index
    %23 = vector.load %arg7[%c0_14, %c0_15] : memref<128x400xbf16, #tpu.memory_space<vmem>>, vector<128x400xbf16>
    %cst_16 = arith.constant dense<0.000000e+00> : vector<8x400xf32>
    %24 = tpu.matmul %22, %23, %cst_16 {dimension_numbers = #tpu.dot_dimension_numbers<[1], [0], [0], [1], [0, 0, 1, 1], [], []>} : vector<8x128xbf16>, vector<128x400xbf16>, vector<8x400xf32> -> vector<8x400xf32>
    %c0_17 = arith.constant 0 : index
    %c0_18 = arith.constant 0 : index
    %25 = vector.load %arg8[%c0_17, %c0_18] : memref<1x400xf32, #tpu.memory_space<vmem>>, vector<1x400xf32>
    %26 = vector.broadcast %25 : vector<1x400xf32> to vector<8x400xf32>
    %27 = arith.addf %24, %26 : vector<8x400xf32>
    %cst_19 = arith.constant 0.000000e+00 : f32
    %28 = vector.broadcast %cst_19 : f32 to vector<8x400xf32>
    %29 = arith.maximumf %27, %28 : vector<8x400xf32>
    %30 = arith.truncf %29 : vector<8x400xf32> to vector<8x400xbf16>
    %c0_20 = arith.constant 0 : index
    %c0_21 = arith.constant 0 : index
    %31 = vector.load %arg9[%c0_20, %c0_21] : memref<400x784xbf16, #tpu.memory_space<vmem>>, vector<400x784xbf16>
    %cst_22 = arith.constant dense<0.000000e+00> : vector<8x784xf32>
    %32 = tpu.matmul %30, %31, %cst_22 {dimension_numbers = #tpu.dot_dimension_numbers<[1], [0], [0], [1], [0, 0, 1, 1], [], []>} : vector<8x400xbf16>, vector<400x784xbf16>, vector<8x784xf32> -> vector<8x784xf32>
    %c0_23 = arith.constant 0 : index
    %c0_24 = arith.constant 0 : index
    %33 = vector.load %arg10[%c0_23, %c0_24] : memref<1x784xf32, #tpu.memory_space<vmem>>, vector<1x784xf32>
    %34 = vector.broadcast %33 : vector<1x784xf32> to vector<8x784xf32>
    %35 = arith.addf %32, %34 : vector<8x784xf32>
    %36 = arith.negf %35 : vector<8x784xf32>
    %37 = math.exp %36 : vector<8x784xf32>
    %cst_25 = arith.constant 1.000000e+00 : f32
    %38 = vector.broadcast %cst_25 : f32 to vector<8x784xf32>
    %39 = arith.addf %38, %37 : vector<8x784xf32>
    %40 = arith.divf %38, %39 : vector<8x784xf32>
    %c0_26 = arith.constant 0 : index
    %c0_27 = arith.constant 0 : index
    %41 = vector.load %arg11[%c0_26, %c0_27] : memref<8x784xf32, #tpu.memory_space<vmem>>, vector<8x784xf32>
    tpu.vector_store %arg11[%c0_26, %c0_27], %40 {strides = array<i32>} : memref<8x784xf32, #tpu.memory_space<vmem>>, vector<8x784xf32>,
    %c0_28 = arith.constant 0 : index
    %c0_29 = arith.constant 0 : index
    %42 = vector.load %arg12[%c0_28, %c0_29] : memref<8x256xf32, #tpu.memory_space<vmem>>, vector<8x256xf32>
    tpu.vector_store %arg12[%c0_28, %c0_29], %13 {strides = array<i32>} : memref<8x256xf32, #tpu.memory_space<vmem>>, vector<8x256xf32>,
    return
  }
  func.func @transform_0(%arg0: i32) -> (i32, i32) {
    %c0_i32 = arith.constant 0 : i32
    %c0_i32_0 = arith.constant 0 : i32
    return %arg0, %c0_i32 : i32, i32
  }
  func.func @transform_1(%arg0: i32) -> (i32, i32) {
    %c0_i32 = arith.constant 0 : i32
    %c0_i32_0 = arith.constant 0 : i32
    return %arg0, %c0_i32 : i32, i32
  }
  func.func @transform_2(%arg0: i32) -> (i32, i32) {
    %c0_i32 = arith.constant 0 : i32
    %c0_i32_0 = arith.constant 0 : i32
    %c0_i32_1 = arith.constant 0 : i32
    return %c0_i32, %c0_i32_0 : i32, i32
  }
  func.func @transform_3(%arg0: i32) -> (i32, i32) {
    %c0_i32 = arith.constant 0 : i32
    %c0_i32_0 = arith.constant 0 : i32
    %c0_i32_1 = arith.constant 0 : i32
    return %c0_i32, %c0_i32_0 : i32, i32
  }
  func.func @transform_4(%arg0: i32) -> (i32, i32) {
    %c0_i32 = arith.constant 0 : i32
    %c0_i32_0 = arith.constant 0 : i32
    %c0_i32_1 = arith.constant 0 : i32
    return %c0_i32, %c0_i32_0 : i32, i32
  }
  func.func @transform_5(%arg0: i32) -> (i32, i32) {
    %c0_i32 = arith.constant 0 : i32
    %c0_i32_0 = arith.constant 0 : i32
    %c0_i32_1 = arith.constant 0 : i32
    return %c0_i32, %c0_i32_0 : i32, i32
  }
  func.func @transform_6(%arg0: i32) -> (i32, i32) {
    %c0_i32 = arith.constant 0 : i32
    %c0_i32_0 = arith.constant 0 : i32
    %c0_i32_1 = arith.constant 0 : i32
    return %c0_i32, %c0_i32_0 : i32, i32
  }
  func.func @transform_7(%arg0: i32) -> (i32, i32) {
    %c0_i32 = arith.constant 0 : i32
    %c0_i32_0 = arith.constant 0 : i32
    %c0_i32_1 = arith.constant 0 : i32
    return %c0_i32, %c0_i32_0 : i32, i32
  }
  func.func @transform_8(%arg0: i32) -> (i32, i32) {
    %c0_i32 = arith.constant 0 : i32
    %c0_i32_0 = arith.constant 0 : i32
    %c0_i32_1 = arith.constant 0 : i32
    return %c0_i32, %c0_i32_0 : i32, i32
  }
  func.func @transform_9(%arg0: i32) -> (i32, i32) {
    %c0_i32 = arith.constant 0 : i32
    %c0_i32_0 = arith.constant 0 : i32
    %c0_i32_1 = arith.constant 0 : i32
    return %c0_i32, %c0_i32_0 : i32, i32
  }
  func.func @transform_10(%arg0: i32) -> (i32, i32) {
    %c0_i32 = arith.constant 0 : i32
    %c0_i32_0 = arith.constant 0 : i32
    return %arg0, %c0_i32 : i32, i32
  }
  func.func @transform_11(%arg0: i32) -> (i32, i32) {
    %c0_i32 = arith.constant 0 : i32
    %c0_i32_0 = arith.constant 0 : i32
    return %arg0, %c0_i32 : i32, i32
  }
}

</mosaic_0001>

<llo_original>
// kernel: vae_forward.1
$region0: #{vae_forward.1}
  #allocation0 [shape = 'u32[]', space=smem, size = 0x4, offset = 0x4, fixed_abs, tag = 'smem constant byte address 0x4 - core index']
  #allocation1 [shape = 'u32[144,128]{1,0:T(1,128)}', space=vmem, size = 0x12000, scoped, tag = 'internal scratch']
  %s0 = inlined_call_operand.vmem [shape: bf16[8,784], index: 0, kind: input, shape index: {}]
  %s1 = inlined_call_operand.vmem [shape: f32[8,128], index: 1, kind: input, shape index: {}]
  %s2 = inlined_call_operand.vmem [shape: bf16[784,400], index: 2, kind: input, shape index: {}]
  %s3 = inlined_call_operand.vmem [shape: f32[1,400], index: 3, kind: input, shape index: {}]
  %s4 = inlined_call_operand.vmem [shape: bf16[400,256], index: 4, kind: input, shape index: {}]
  %s5 = inlined_call_operand.vmem [shape: f32[1,256], index: 5, kind: input, shape index: {}]
  %s6 = inlined_call_operand.vmem [shape: bf16[128,400], index: 6, kind: input, shape index: {}]
  %s7 = inlined_call_operand.vmem [shape: f32[1,400], index: 7, kind: input, shape index: {}]
  %s8 = inlined_call_operand.vmem [shape: bf16[400,784], index: 8, kind: input, shape index: {}]
  %s9 = inlined_call_operand.vmem [shape: f32[1,784], index: 9, kind: input, shape index: {}]
  %s10 = inlined_call_operand.vmem [shape: f32[8,784], index: 10, kind: output, shape index: {0}]
  %s11 = inlined_call_operand.vmem [shape: f32[8,256], index: 11, kind: output, shape index: {1}]
  %12 = xla_tuple %s10, %s11
  %s13 = sld [smem:[#allocation0]]
  $region58: #{vae_forward.1} parent=0
    _
  %s15 = ssub.s32 1, %s13
  %s16 = scalar_select 0, %s15, %s13
  // Predicated region
  $region2: #{vae_forward.1} parent=0 // pred_check
    _
  $region3: #{vae_forward.1} parent=0 // pred_check_branch
    %18 = sbr.rel (0) target = $region5
  $region4: #{vae_forward.1} parent=0 // pred_region
    _
  $region5: #{vae_forward.1} parent=0 // pred_fallthru
    _
  // Predicated region
  $region6: #{vae_forward.1} parent=0 // pred_check
    _
  $region7: #{vae_forward.1} parent=0 // pred_check_branch
    %20 = sbr.rel (0) target = $region9
  $region8: #{vae_forward.1} parent=0 // pred_region
    _
  $region9: #{vae_forward.1} parent=0 // pred_fallthru
    _
  // Predicated region
  $region10: #{vae_forward.1} parent=0 // pred_check
    _
  $region11: #{vae_forward.1} parent=0 // pred_check_branch
    %22 = sbr.rel (0) target = $region13
  $region12: #{vae_forward.1} parent=0 // pred_region
    _
  $region13: #{vae_forward.1} parent=0 // pred_fallthru
    _
  // Predicated region
  $region14: #{vae_forward.1} parent=0 // pred_check
    _
  $region15: #{vae_forward.1} parent=0 // pred_check_branch
    %24 = sbr.rel (0) target = $region17
  $region16: #{vae_forward.1} parent=0 // pred_region
    _
  $region17: #{vae_forward.1} parent=0 // pred_fallthru
    _
  // Predicated region
  $region18: #{vae_forward.1} parent=0 // pred_check
    _
  $region19: #{vae_forward.1} parent=0 // pred_check_branch
    %26 = sbr.rel (0) target = $region21
  $region20: #{vae_forward.1} parent=0 // pred_region
    _
  $region21: #{vae_forward.1} parent=0 // pred_fallthru
    _
  // Predicated region
  $region22: #{vae_forward.1} parent=0 // pred_check
    _
  $region23: #{vae_forward.1} parent=0 // pred_check_branch
    %28 = sbr.rel (0) target = $region25
  $region24: #{vae_forward.1} parent=0 // pred_region
    _
  $region25: #{vae_forward.1} parent=0 // pred_fallthru
    _
  // Predicated region
  $region26: #{vae_forward.1} parent=0 // pred_check
    _
  $region27: #{vae_forward.1} parent=0 // pred_check_branch
    %30 = sbr.rel (0) target = $region29
  $region28: #{vae_forward.1} parent=0 // pred_region
    _
  $region29: #{vae_forward.1} parent=0 // pred_fallthru
    _
  // Predicated region
  $region30: #{vae_forward.1} parent=0 // pred_check
    _
  $region31: #{vae_forward.1} parent=0 // pred_check_branch
    %32 = sbr.rel (0) target = $region33
  $region32: #{vae_forward.1} parent=0 // pred_region
    _
  $region33: #{vae_forward.1} parent=0 // pred_fallthru
    _
  // Predicated region
  $region34: #{vae_forward.1} parent=0 // pred_check
    _
  $region35: #{vae_forward.1} parent=0 // pred_check_branch
    %34 = sbr.rel (0) target = $region37
  $region36: #{vae_forward.1} parent=0 // pred_region
    _
  $region37: #{vae_forward.1} parent=0 // pred_fallthru
    _
  // Predicated region
  $region38: #{vae_forward.1} parent=0 // pred_check
    _
  $region39: #{vae_forward.1} parent=0 // pred_check_branch
    %36 = sbr.rel (0) target = $region41
  $region40: #{vae_forward.1} parent=0 // pred_region
    _
  $region41: #{vae_forward.1} parent=0 // pred_fallthru
    _
  %v38 = vld [vmem:[%s0] sm:$0xff]
  %v39 = vld [vmem:[%s0 + $0x8] sm:$0xff]
  %v40 = vld [vmem:[%s0 + $0x10] sm:$0xff]
  %v41 = vld [vmem:[%s0 + $0x18] sm:$0xf]
  %v42 = vld [vmem:[%s2] sm:$0xff]
  %v43 = vld [vmem:[%s2 + $0x8] sm:$0xff]
  %v44 = vld [vmem:[%s2 + $0x10] sm:$0xff]
  %v45 = vld [vmem:[%s2 + $0x18] sm:$0xff]
  %v46 = vld [vmem:[%s2 + $0x20] sm:$0xff]
  %v47 = vld [vmem:[%s2 + $0x28] sm:$0xff]
  %v48 = vld [vmem:[%s2 + $0x30] sm:$0xff]
  %v49 = vld [vmem:[%s2 + $0x38] sm:$0xff]
  %v50 = vld [vmem:[%s2 + $0x40] sm:$0xff]
  %v51 = vld [vmem:[%s2 + $0x48] sm:$0xff]
  %v52 = vld [vmem:[%s2 + $0x50] sm:$0xff]
  %v53 = vld [vmem:[%s2 + $0x58] sm:$0xff]
  %v54 = vld [vmem:[%s2 + $0x60] sm:$0xff]
  %v55 = vld [vmem:[%s2 + $0x68] sm:$0xff]
  %v56 = vld [vmem:[%s2 + $0x70] sm:$0xff]
  %v57 = vld [vmem:[%s2 + $0x78] sm:$0xff]
  %v58 = vld [vmem:[%s2 + $0x80] sm:$0xff]
  %v59 = vld [vmem:[%s2 + $0x88] sm:$0xff]
  %v60 = vld [vmem:[%s2 + $0x90] sm:$0xff]
  %v61 = vld [vmem:[%s2 + $0x98] sm:$0xff]
  %v62 = vld [vmem:[%s2 + $0xa0] sm:$0xff]
  %v63 = vld [vmem:[%s2 + $0xa8] sm:$0xff]
  %v64 = vld [vmem:[%s2 + $0xb0] sm:$0xff]
  %v65 = vld [vmem:[%s2 + $0xb8] sm:$0xff]
  %v66 = vld [vmem:[%s2 + $0xc0] sm:$0xff]
  %v67 = vld [vmem:[%s2 + $0xc8] sm:$0xff]
  %v68 = vld [vmem:[%s2 + $0xd0] sm:$0xff]
  %v69 = vld [vmem:[%s2 + $0xd8] sm:$0xff]
  %v70 = vld [vmem:[%s2 + $0xe0] sm:$0xff]
  %v71 = vld [vmem:[%s2 + $0xe8] sm:$0xff]
  %v72 = vld [vmem:[%s2 + $0xf0] sm:$0xff]
  %v73 = vld [vmem:[%s2 + $0xf8] sm:$0xff]
  %v74 = vld [vmem:[%s2 + $0x100] sm:$0xff]
  %v75 = vld [vmem:[%s2 + $0x108] sm:$0xff]
  %v76 = vld [vmem:[%s2 + $0x110] sm:$0xff]
  %v77 = vld [vmem:[%s2 + $0x118] sm:$0xff]
  %v78 = vld [vmem:[%s2 + $0x120] sm:$0xff]
  %v79 = vld [vmem:[%s2 + $0x128] sm:$0xff]
  %v80 = vld [vmem:[%s2 + $0x130] sm:$0xff]
  %v81 = vld [vmem:[%s2 + $0x138] sm:$0xff]
  %v82 = vld [vmem:[%s2 + $0x140] sm:$0xff]
  %v83 = vld [vmem:[%s2 + $0x148] sm:$0xff]
  %v84 = vld [vmem:[%s2 + $0x150] sm:$0xff]
  %v85 = vld [vmem:[%s2 + $0x158] sm:$0xff]
  %v86 = vld [vmem:[%s2 + $0x160] sm:$0xff]
  %v87 = vld [vmem:[%s2 + $0x168] sm:$0xff]
  %v88 = vld [vmem:[%s2 + $0x170] sm:$0xff]
  %v89 = vld [vmem:[%s2 + $0x178] sm:$0xff]
  %v90 = vld [vmem:[%s2 + $0x180] sm:$0xff]
  %v91 = vld [vmem:[%s2 + $0x188] sm:$0xff]
  %v92 = vld [vmem:[%s2 + $0x190] sm:$0xff]
  %v93 = vld [vmem:[%s2 + $0x198] sm:$0xff]
  %v94 = vld [vmem:[%s2 + $0x1a0] sm:$0xff]
  %v95 = vld [vmem:[%s2 + $0x1a8] sm:$0xff]
  %v96 = vld [vmem:[%s2 + $0x1b0] sm:$0xff]
  %v97 = vld [vmem:[%s2 + $0x1b8] sm:$0xff]
  %v98 = vld [vmem:[%s2 + $0x1c0] sm:$0xff]
  %v99 = vld [vmem:[%s2 + $0x1c8] sm:$0xff]
  %v100 = vld [vmem:[%s2 + $0x1d0] sm:$0xff]
  %v101 = vld [vmem:[%s2 + $0x1d8] sm:$0xff]
  %v102 = vld [vmem:[%s2 + $0x1e0] sm:$0xff]
  %v103 = vld [vmem:[%s2 + $0x1e8] sm:$0xff]
  %v104 = vld [vmem:[%s2 + $0x1f0] sm:$0xff]
  %v105 = vld [vmem:[%s2 + $0x1f8] sm:$0xff]
  %v106 = vld [vmem:[%s2 + $0x200] sm:$0xff]
  %v107 = vld [vmem:[%s2 + $0x208] sm:$0xff]
  %v108 = vld [vmem:[%s2 + $0x210] sm:$0xff]
  %v109 = vld [vmem:[%s2 + $0x218] sm:$0xff]
  %v110 = vld [vmem:[%s2 + $0x220] sm:$0xff]
  %v111 = vld [vmem:[%s2 + $0x228] sm:$0xff]
  %v112 = vld [vmem:[%s2 + $0x230] sm:$0xff]
  %v113 = vld [vmem:[%s2 + $0x238] sm:$0xff]
  %v114 = vld [vmem:[%s2 + $0x240] sm:$0xff]
  %v115 = vld [vmem:[%s2 + $0x248] sm:$0xff]
  %v116 = vld [vmem:[%s2 + $0x250] sm:$0xff]
  %v117 = vld [vmem:[%s2 + $0x258] sm:$0xff]
  %v118 = vld [vmem:[%s2 + $0x260] sm:$0xff]
  %v119 = vld [vmem:[%s2 + $0x268] sm:$0xff]
  %v120 = vld [vmem:[%s2 + $0x270] sm:$0xff]
  %v121 = vld [vmem:[%s2 + $0x278] sm:$0xff]
  %v122 = vld [vmem:[%s2 + $0x280] sm:$0xff]
  %v123 = vld [vmem:[%s2 + $0x288] sm:$0xff]
  %v124 = vld [vmem:[%s2 + $0x290] sm:$0xff]
  %v125 = vld [vmem:[%s2 + $0x298] sm:$0xff]
  %v126 = vld [vmem:[%s2 + $0x2a0] sm:$0xff]
  %v127 = vld [vmem:[%s2 + $0x2a8] sm:$0xff]
  %v128 = vld [vmem:[%s2 + $0x2b0] sm:$0xff]
  %v129 = vld [vmem:[%s2 + $0x2b8] sm:$0xff]
  %v130 = vld [vmem:[%s2 + $0x2c0] sm:$0xff]
  %v131 = vld [vmem:[%s2 + $0x2c8] sm:$0xff]
  %v132 = vld [vmem:[%s2 + $0x2d0] sm:$0xff]
  %v133 = vld [vmem:[%s2 + $0x2d8] sm:$0xff]
  %v134 = vld [vmem:[%s2 + $0x2e0] sm:$0xff]
  %v135 = vld [vmem:[%s2 + $0x2e8] sm:$0xff]
  %v136 = vld [vmem:[%s2 + $0x2f0] sm:$0xff]
  %v137 = vld [vmem:[%s2 + $0x2f8] sm:$0xff]
  %v138 = vld [vmem:[%s2 + $0x300] sm:$0xff]
  %v139 = vld [vmem:[%s2 + $0x308] sm:$0xff]
  %v140 = vld [vmem:[%s2 + $0x310] sm:$0xff]
  %v141 = vld [vmem:[%s2 + $0x318] sm:$0xff]
  %v142 = vld [vmem:[%s2 + $0x320] sm:$0xff]
  %v143 = vld [vmem:[%s2 + $0x328] sm:$0xff]
  %v144 = vld [vmem:[%s2 + $0x330] sm:$0xff]
  %v145 = vld [vmem:[%s2 + $0x338] sm:$0xff]
  %v146 = vld [vmem:[%s2 + $0x340] sm:$0xff]
  %v147 = vld [vmem:[%s2 + $0x348] sm:$0xff]
  %v148 = vld [vmem:[%s2 + $0x350] sm:$0xff]
  %v149 = vld [vmem:[%s2 + $0x358] sm:$0xff]
  %v150 = vld [vmem:[%s2 + $0x360] sm:$0xff]
  %v151 = vld [vmem:[%s2 + $0x368] sm:$0xff]
  %v152 = vld [vmem:[%s2 + $0x370] sm:$0xff]
  %v153 = vld [vmem:[%s2 + $0x378] sm:$0xff]
  %v154 = vld [vmem:[%s2 + $0x380] sm:$0xff]
  %v155 = vld [vmem:[%s2 + $0x388] sm:$0xff]
  %v156 = vld [vmem:[%s2 + $0x390] sm:$0xff]
  %v157 = vld [vmem:[%s2 + $0x398] sm:$0xff]
  %v158 = vld [vmem:[%s2 + $0x3a0] sm:$0xff]
  %v159 = vld [vmem:[%s2 + $0x3a8] sm:$0xff]
  %v160 = vld [vmem:[%s2 + $0x3b0] sm:$0xff]
  %v161 = vld [vmem:[%s2 + $0x3b8] sm:$0xff]
  %v162 = vld [vmem:[%s2 + $0x3c0] sm:$0xff]
  %v163 = vld [vmem:[%s2 + $0x3c8] sm:$0xff]
  %v164 = vld [vmem:[%s2 + $0x3d0] sm:$0xff]
  %v165 = vld [vmem:[%s2 + $0x3d8] sm:$0xff]
  %v166 = vld [vmem:[%s2 + $0x3e0] sm:$0xff]
  %v167 = vld [vmem:[%s2 + $0x3e8] sm:$0xff]
  %v168 = vld [vmem:[%s2 + $0x3f0] sm:$0xff]
  %v169 = vld [vmem:[%s2 + $0x3f8] sm:$0xff]
  %v170 = vld [vmem:[%s2 + $0x400] sm:$0xff]
  %v171 = vld [vmem:[%s2 + $0x408] sm:$0xff]
  %v172 = vld [vmem:[%s2 + $0x410] sm:$0xff]
  %v173 = vld [vmem:[%s2 + $0x418] sm:$0xff]
  %v174 = vld [vmem:[%s2 + $0x420] sm:$0xff]
  %v175 = vld [vmem:[%s2 + $0x428] sm:$0xff]
  %v176 = vld [vmem:[%s2 + $0x430] sm:$0xff]
  %v177 = vld [vmem:[%s2 + $0x438] sm:$0xff]
  %v178 = vld [vmem:[%s2 + $0x440] sm:$0xff]
  %v179 = vld [vmem:[%s2 + $0x448] sm:$0xff]
  %v180 = vld [vmem:[%s2 + $0x450] sm:$0xff]
  %v181 = vld [vmem:[%s2 + $0x458] sm:$0xff]
  %v182 = vld [vmem:[%s2 + $0x460] sm:$0xff]
  %v183 = vld [vmem:[%s2 + $0x468] sm:$0xff]
  %v184 = vld [vmem:[%s2 + $0x470] sm:$0xff]
  %v185 = vld [vmem:[%s2 + $0x478] sm:$0xff]
  %v186 = vld [vmem:[%s2 + $0x480] sm:$0xff]
  %v187 = vld [vmem:[%s2 + $0x488] sm:$0xff]
  %v188 = vld [vmem:[%s2 + $0x490] sm:$0xff]
  %v189 = vld [vmem:[%s2 + $0x498] sm:$0xff]
  %v190 = vld [vmem:[%s2 + $0x4a0] sm:$0xff]
  %v191 = vld [vmem:[%s2 + $0x4a8] sm:$0xff]
  %v192 = vld [vmem:[%s2 + $0x4b0] sm:$0xff]
  %v193 = vld [vmem:[%s2 + $0x4b8] sm:$0xff]
  %v194 = vld [vmem:[%s2 + $0x4c0] sm:$0xff]
  %v195 = vld [vmem:[%s2 + $0x4c8] sm:$0xff]
  %v196 = vld [vmem:[%s2 + $0x4d0] sm:$0xff]
  %v197 = vld [vmem:[%s2 + $0x4d8] sm:$0xff]
  %v198 = vld [vmem:[%s2 + $0x4e0] sm:$0xff]
  %v199 = vld [vmem:[%s2 + $0x4e8] sm:$0xff]
  %v200 = vld [vmem:[%s2 + $0x4f0] sm:$0xff]
  %v201 = vld [vmem:[%s2 + $0x4f8] sm:$0xff]
  %v202 = vld [vmem:[%s2 + $0x500] sm:$0xff]
  %v203 = vld [vmem:[%s2 + $0x508] sm:$0xff]
  %v204 = vld [vmem:[%s2 + $0x510] sm:$0xff]
  %v205 = vld [vmem:[%s2 + $0x518] sm:$0xff]
  %v206 = vld [vmem:[%s2 + $0x520] sm:$0xff]
  %v207 = vld [vmem:[%s2 + $0x528] sm:$0xff]
  %v208 = vld [vmem:[%s2 + $0x530] sm:$0xff]
  %v209 = vld [vmem:[%s2 + $0x538] sm:$0xff]
  %v210 = vld [vmem:[%s2 + $0x540] sm:$0xff]
  %v211 = vld [vmem:[%s2 + $0x548] sm:$0xff]
  %v212 = vld [vmem:[%s2 + $0x550] sm:$0xff]
  %v213 = vld [vmem:[%s2 + $0x558] sm:$0xff]
  %v214 = vld [vmem:[%s2 + $0x560] sm:$0xff]
  %v215 = vld [vmem:[%s2 + $0x568] sm:$0xff]
  %v216 = vld [vmem:[%s2 + $0x570] sm:$0xff]
  %v217 = vld [vmem:[%s2 + $0x578] sm:$0xff]
  %v218 = vld [vmem:[%s2 + $0x580] sm:$0xff]
  %v219 = vld [vmem:[%s2 + $0x588] sm:$0xff]
  %v220 = vld [vmem:[%s2 + $0x590] sm:$0xff]
  %v221 = vld [vmem:[%s2 + $0x598] sm:$0xff]
  %v222 = vld [vmem:[%s2 + $0x5a0] sm:$0xff]
  %v223 = vld [vmem:[%s2 + $0x5a8] sm:$0xff]
  %v224 = vld [vmem:[%s2 + $0x5b0] sm:$0xff]
  %v225 = vld [vmem:[%s2 + $0x5b8] sm:$0xff]
  %v226 = vld [vmem:[%s2 + $0x5c0] sm:$0xff]
  %v227 = vld [vmem:[%s2 + $0x5c8] sm:$0xff]
  %v228 = vld [vmem:[%s2 + $0x5d0] sm:$0xff]
  %v229 = vld [vmem:[%s2 + $0x5d8] sm:$0xff]
  %v230 = vld [vmem:[%s2 + $0x5e0] sm:$0xff]
  %v231 = vld [vmem:[%s2 + $0x5e8] sm:$0xff]
  %v232 = vld [vmem:[%s2 + $0x5f0] sm:$0xff]
  %v233 = vld [vmem:[%s2 + $0x5f8] sm:$0xff]
  %v234 = vld [vmem:[%s2 + $0x600] sm:$0xff]
  %v235 = vld [vmem:[%s2 + $0x608] sm:$0xff]
  %v236 = vld [vmem:[%s2 + $0x610] sm:$0xff]
  %v237 = vld [vmem:[%s2 + $0x618] sm:$0xff]
  %v238 = vld [vmem:[%s3] sm:$0xf]
  %v240 = vlaneseq
  %v241 = vshrl.u32 %v240, 7
  %v242 = vsub.s32 0, %v241
  %v243 = vrot.slane %v238, %v242
  %v244 = vlaneseq
  %v245 = vshrl.u32 %v244, 7
  %v246 = vsub.s32 1, %v245
  %v247 = vrot.slane %v238, %v246
  %v248 = vlaneseq
  %v249 = vshrl.u32 %v248, 7
  %v250 = vsub.s32 2, %v249
  %v251 = vrot.slane %v238, %v250
  %v252 = vlaneseq
  %v253 = vshrl.u32 %v252, 7
  %v254 = vsub.s32 3, %v253
  %v255 = vrot.slane %v238, %v254
  %v264 = vunpack.c.l.b16 %v38
  %v265 = vunpack.c.h.b16 %v38
  %v266 = vunpack.c.l.b16 %v39
  %v267 = vunpack.c.h.b16 %v39
  %v268 = vunpack.c.l.b16 %v40
  %v269 = vunpack.c.h.b16 %v40
  %v270 = vunpack.c.l.b16 %v41
  %v271 = vpack.c.b16 %v264, %v264
  %v272 = vpack.c.b16 %v265, %v265
  %v273 = vpack.c.b16 %v266, %v266
  %v274 = vpack.c.b16 %v267, %v267
  %v275 = vpack.c.b16 %v268, %v268
  %v276 = vpack.c.b16 %v269, %v269
  %v277 = vpack.c.b16 %v270, %v270
  %v480 = vunpack.c.l.b16 %v42
  %v481 = vunpack.c.h.b16 %v42
  %v482 = vunpack.c.l.b16 %v43
  %v483 = vunpack.c.h.b16 %v43
  %v484 = vunpack.c.l.b16 %v44
  %v485 = vunpack.c.h.b16 %v44
  %v486 = vunpack.c.l.b16 %v45
  %v487 = vunpack.c.h.b16 %v45
  %v488 = vunpack.c.l.b16 %v46
  %v489 = vunpack.c.h.b16 %v46
  %v490 = vunpack.c.l.b16 %v47
  %v491 = vunpack.c.h.b16 %v47
  %v492 = vunpack.c.l.b16 %v48
  %v493 = vunpack.c.h.b16 %v48
  %v494 = vunpack.c.l.b16 %v49
  %v495 = vunpack.c.h.b16 %v49
  %v496 = vunpack.c.l.b16 %v50
  %v497 = vunpack.c.h.b16 %v50
  %v498 = vunpack.c.l.b16 %v51
  %v499 = vunpack.c.h.b16 %v51
  %v500 = vunpack.c.l.b16 %v52
  %v501 = vunpack.c.h.b16 %v52
  %v502 = vunpack.c.l.b16 %v53
  %v503 = vunpack.c.h.b16 %v53
  %v504 = vunpack.c.l.b16 %v54
  %v505 = vunpack.c.h.b16 %v54
  %v506 = vunpack.c.l.b16 %v55
  %v507 = vunpack.c.h.b16 %v55
  %v508 = vunpack.c.l.b16 %v56
  %v509 = vunpack.c.h.b16 %v56
  %v510 = vunpack.c.l.b16 %v57
  %v511 = vunpack.c.h.b16 %v57
  %v512 = vunpack.c.l.b16 %v58
  %v513 = vunpack.c.h.b16 %v58
  %v514 = vunpack.c.l.b16 %v59
  %v515 = vunpack.c.h.b16 %v59
  %v516 = vunpack.c.l.b16 %v60
  %v517 = vunpack.c.h.b16 %v60
  %v518 = vunpack.c.l.b16 %v61
  %v519 = vunpack.c.h.b16 %v61
  %v520 = vunpack.c.l.b16 %v62
  %v521 = vunpack.c.h.b16 %v62
  %v522 = vunpack.c.l.b16 %v63
  %v523 = vunpack.c.h.b16 %v63
  %v524 = vunpack.c.l.b16 %v64
  %v525 = vunpack.c.h.b16 %v64
  %v526 = vunpack.c.l.b16 %v65
  %v527 = vunpack.c.h.b16 %v65
  %v528 = vunpack.c.l.b16 %v66
  %v529 = vunpack.c.h.b16 %v66
  %v530 = vunpack.c.l.b16 %v67
  %v531 = vunpack.c.h.b16 %v67
  %v532 = vunpack.c.l.b16 %v68
  %v533 = vunpack.c.h.b16 %v68
  %v534 = vunpack.c.l.b16 %v69
  %v535 = vunpack.c.h.b16 %v69
  %v536 = vunpack.c.l.b16 %v70
  %v537 = vunpack.c.h.b16 %v70
  %v538 = vunpack.c.l.b16 %v71
  %v539 = vunpack.c.h.b16 %v71
  %v540 = vunpack.c.l.b16 %v72
  %v541 = vunpack.c.h.b16 %v72
  %v542 = vunpack.c.l.b16 %v73
  %v543 = vunpack.c.h.b16 %v73
  %v544 = vunpack.c.l.b16 %v74
  %v545 = vunpack.c.h.b16 %v74
  %v546 = vunpack.c.l.b16 %v75
  %v547 = vunpack.c.h.b16 %v75
  %v548 = vunpack.c.l.b16 %v76
  %v549 = vunpack.c.h.b16 %v76
  %v550 = vunpack.c.l.b16 %v77
  %v551 = vunpack.c.h.b16 %v77
  %v552 = vunpack.c.l.b16 %v78
  %v553 = vunpack.c.h.b16 %v78
  %v554 = vunpack.c.l.b16 %v79
  %v555 = vunpack.c.h.b16 %v79
  %v556 = vunpack.c.l.b16 %v80
  %v557 = vunpack.c.h.b16 %v80
  %v558 = vunpack.c.l.b16 %v81
  %v559 = vunpack.c.h.b16 %v81
  %v560 = vunpack.c.l.b16 %v82
  %v561 = vunpack.c.h.b16 %v82
  %v562 = vunpack.c.l.b16 %v83
  %v563 = vunpack.c.h.b16 %v83
  %v564 = vunpack.c.l.b16 %v84
  %v565 = vunpack.c.h.b16 %v84
  %v566 = vunpack.c.l.b16 %v85
  %v567 = vunpack.c.h.b16 %v85
  %v568 = vunpack.c.l.b16 %v86
  %v569 = vunpack.c.h.b16 %v86
  %v570 = vunpack.c.l.b16 %v87
  %v571 = vunpack.c.h.b16 %v87
  %v572 = vunpack.c.l.b16 %v88
  %v573 = vunpack.c.h.b16 %v88
  %v574 = vunpack.c.l.b16 %v89
  %v575 = vunpack.c.h.b16 %v89
  %v576 = vunpack.c.l.b16 %v90
  %v577 = vunpack.c.h.b16 %v90
  %v578 = vunpack.c.l.b16 %v91
  %v579 = vunpack.c.h.b16 %v91
  %v580 = vunpack.c.l.b16 %v92
  %v581 = vunpack.c.h.b16 %v92
  %v582 = vunpack.c.l.b16 %v93
  %v583 = vunpack.c.h.b16 %v93
  %v584 = vunpack.c.l.b16 %v94
  %v585 = vunpack.c.h.b16 %v94
  %v586 = vunpack.c.l.b16 %v95
  %v587 = vunpack.c.h.b16 %v95
  %v588 = vunpack.c.l.b16 %v96
  %v589 = vunpack.c.h.b16 %v96
  %v590 = vunpack.c.l.b16 %v97
  %v591 = vunpack.c.h.b16 %v97
  %v592 = vunpack.c.l.b16 %v98
  %v593 = vunpack.c.h.b16 %v98
  %v594 = vunpack.c.l.b16 %v99
  %v595 = vunpack.c.h.b16 %v99
  %v596 = vunpack.c.l.b16 %v100
  %v597 = vunpack.c.h.b16 %v100
  %v598 = vunpack.c.l.b16 %v101
  %v599 = vunpack.c.h.b16 %v101
  %v600 = vunpack.c.l.b16 %v102
  %v601 = vunpack.c.h.b16 %v102
  %v602 = vunpack.c.l.b16 %v103
  %v603 = vunpack.c.h.b16 %v103
  %v604 = vunpack.c.l.b16 %v104
  %v605 = vunpack.c.h.b16 %v104
  %v606 = vunpack.c.l.b16 %v105
  %v607 = vunpack.c.h.b16 %v105
  %v608 = vunpack.c.l.b16 %v106
  %v609 = vunpack.c.h.b16 %v106
  %v610 = vunpack.c.l.b16 %v107
  %v611 = vunpack.c.h.b16 %v107
  %v612 = vunpack.c.l.b16 %v108
  %v613 = vunpack.c.h.b16 %v108
  %v614 = vunpack.c.l.b16 %v109
  %v615 = vunpack.c.h.b16 %v109
  %v616 = vunpack.c.l.b16 %v110
  %v617 = vunpack.c.h.b16 %v110
  %v618 = vunpack.c.l.b16 %v111
  %v619 = vunpack.c.h.b16 %v111
  %v620 = vunpack.c.l.b16 %v112
  %v621 = vunpack.c.h.b16 %v112
  %v622 = vunpack.c.l.b16 %v113
  %v623 = vunpack.c.h.b16 %v113
  %v624 = vunpack.c.l.b16 %v114
  %v625 = vunpack.c.h.b16 %v114
  %v626 = vunpack.c.l.b16 %v115
  %v627 = vunpack.c.h.b16 %v115
  %v628 = vunpack.c.l.b16 %v116
  %v629 = vunpack.c.h.b16 %v116
  %v630 = vunpack.c.l.b16 %v117
  %v631 = vunpack.c.h.b16 %v117
  %v632 = vunpack.c.l.b16 %v118
  %v633 = vunpack.c.h.b16 %v118
  %v634 = vunpack.c.l.b16 %v119
  %v635 = vunpack.c.h.b16 %v119
  %v636 = vunpack.c.l.b16 %v120
  %v637 = vunpack.c.h.b16 %v120
  %v638 = vunpack.c.l.b16 %v121
  %v639 = vunpack.c.h.b16 %v121
  %v640 = vunpack.c.l.b16 %v122
  %v641 = vunpack.c.h.b16 %v122
  %v642 = vunpack.c.l.b16 %v123
  %v643 = vunpack.c.h.b16 %v123
  %v644 = vunpack.c.l.b16 %v124
  %v645 = vunpack.c.h.b16 %v124
  %v646 = vunpack.c.l.b16 %v125
  %v647 = vunpack.c.h.b16 %v125
  %v648 = vunpack.c.l.b16 %v126
  %v649 = vunpack.c.h.b16 %v126
  %v650 = vunpack.c.l.b16 %v127
  %v651 = vunpack.c.h.b16 %v127
  %v652 = vunpack.c.l.b16 %v128
  %v653 = vunpack.c.h.b16 %v128
  %v654 = vunpack.c.l.b16 %v129
  %v655 = vunpack.c.h.b16 %v129
  %v656 = vunpack.c.l.b16 %v130
  %v657 = vunpack.c.h.b16 %v130
  %v658 = vunpack.c.l.b16 %v131
  %v659 = vunpack.c.h.b16 %v131
  %v660 = vunpack.c.l.b16 %v132
  %v661 = vunpack.c.h.b16 %v132
  %v662 = vunpack.c.l.b16 %v133
  %v663 = vunpack.c.h.b16 %v133
  %v664 = vunpack.c.l.b16 %v134
  %v665 = vunpack.c.h.b16 %v134
  %v666 = vunpack.c.l.b16 %v135
  %v667 = vunpack.c.h.b16 %v135
  %v668 = vunpack.c.l.b16 %v136
  %v669 = vunpack.c.h.b16 %v136
  %v670 = vunpack.c.l.b16 %v137
  %v671 = vunpack.c.h.b16 %v137
  %v672 = vunpack.c.l.b16 %v138
  %v673 = vunpack.c.h.b16 %v138
  %v674 = vunpack.c.l.b16 %v139
  %v675 = vunpack.c.h.b16 %v139
  %v676 = vunpack.c.l.b16 %v140
  %v677 = vunpack.c.h.b16 %v140
  %v678 = vunpack.c.l.b16 %v141
  %v679 = vunpack.c.h.b16 %v141
  %v680 = vunpack.c.l.b16 %v142
  %v681 = vunpack.c.h.b16 %v142
  %v682 = vunpack.c.l.b16 %v143
  %v683 = vunpack.c.h.b16 %v143
  %v684 = vunpack.c.l.b16 %v144
  %v685 = vunpack.c.h.b16 %v144
  %v686 = vunpack.c.l.b16 %v145
  %v687 = vunpack.c.h.b16 %v145
  %v688 = vunpack.c.l.b16 %v146
  %v689 = vunpack.c.h.b16 %v146
  %v690 = vunpack.c.l.b16 %v147
  %v691 = vunpack.c.h.b16 %v147
  %v692 = vunpack.c.l.b16 %v148
  %v693 = vunpack.c.h.b16 %v148
  %v694 = vunpack.c.l.b16 %v149
  %v695 = vunpack.c.h.b16 %v149
  %v696 = vunpack.c.l.b16 %v150
  %v697 = vunpack.c.h.b16 %v150
  %v698 = vunpack.c.l.b16 %v151
  %v699 = vunpack.c.h.b16 %v151
  %v700 = vunpack.c.l.b16 %v152
  %v701 = vunpack.c.h.b16 %v152
  %v702 = vunpack.c.l.b16 %v153
  %v703 = vunpack.c.h.b16 %v153
  %v704 = vunpack.c.l.b16 %v154
  %v705 = vunpack.c.h.b16 %v154
  %v706 = vunpack.c.l.b16 %v155
  %v707 = vunpack.c.h.b16 %v155
  %v708 = vunpack.c.l.b16 %v156
  %v709 = vunpack.c.h.b16 %v156
  %v710 = vunpack.c.l.b16 %v157
  %v711 = vunpack.c.h.b16 %v157
  %v712 = vunpack.c.l.b16 %v158
  %v713 = vunpack.c.h.b16 %v158
  %v714 = vunpack.c.l.b16 %v159
  %v715 = vunpack.c.h.b16 %v159
  %v716 = vunpack.c.l.b16 %v160
  %v717 = vunpack.c.h.b16 %v160
  %v718 = vunpack.c.l.b16 %v161
  %v719 = vunpack.c.h.b16 %v161
  %v720 = vunpack.c.l.b16 %v162
  %v721 = vunpack.c.h.b16 %v162
  %v722 = vunpack.c.l.b16 %v163
  %v723 = vunpack.c.h.b16 %v163
  %v724 = vunpack.c.l.b16 %v164
  %v725 = vunpack.c.h.b16 %v164
  %v726 = vunpack.c.l.b16 %v165
  %v727 = vunpack.c.h.b16 %v165
  %v728 = vunpack.c.l.b16 %v166
  %v729 = vunpack.c.h.b16 %v166
  %v730 = vunpack.c.l.b16 %v167
  %v731 = vunpack.c.h.b16 %v167
  %v732 = vunpack.c.l.b16 %v168
  %v733 = vunpack.c.h.b16 %v168
  %v734 = vunpack.c.l.b16 %v169
  %v735 = vunpack.c.h.b16 %v169
  %v736 = vunpack.c.l.b16 %v170
  %v737 = vunpack.c.h.b16 %v170
  %v738 = vunpack.c.l.b16 %v171
  %v739 = vunpack.c.h.b16 %v171
  %v740 = vunpack.c.l.b16 %v172
  %v741 = vunpack.c.h.b16 %v172
  %v742 = vunpack.c.l.b16 %v173
  %v743 = vunpack.c.h.b16 %v173
  %v744 = vunpack.c.l.b16 %v174
  %v745 = vunpack.c.h.b16 %v174
  %v746 = vunpack.c.l.b16 %v175
  %v747 = vunpack.c.h.b16 %v175
  %v748 = vunpack.c.l.b16 %v176
  %v749 = vunpack.c.h.b16 %v176
  %v750 = vunpack.c.l.b16 %v177
  %v751 = vunpack.c.h.b16 %v177
  %v752 = vunpack.c.l.b16 %v178
  %v753 = vunpack.c.h.b16 %v178
  %v754 = vunpack.c.l.b16 %v179
  %v755 = vunpack.c.h.b16 %v179
  %v756 = vunpack.c.l.b16 %v180
  %v757 = vunpack.c.h.b16 %v180
  %v758 = vunpack.c.l.b16 %v181
  %v759 = vunpack.c.h.b16 %v181
  %v760 = vunpack.c.l.b16 %v182
  %v761 = vunpack.c.h.b16 %v182
  %v762 = vunpack.c.l.b16 %v183
  %v763 = vunpack.c.h.b16 %v183
  %v764 = vunpack.c.l.b16 %v184
  %v765 = vunpack.c.h.b16 %v184
  %v766 = vunpack.c.l.b16 %v185
  %v767 = vunpack.c.h.b16 %v185
  %v768 = vunpack.c.l.b16 %v186
  %v769 = vunpack.c.h.b16 %v186
  %v770 = vunpack.c.l.b16 %v187
  %v771 = vunpack.c.h.b16 %v187
  %v772 = vunpack.c.l.b16 %v188
  %v773 = vunpack.c.h.b16 %v188
  %v774 = vunpack.c.l.b16 %v189
  %v775 = vunpack.c.h.b16 %v189
  %v776 = vunpack.c.l.b16 %v190
  %v777 = vunpack.c.h.b16 %v190
  %v778 = vunpack.c.l.b16 %v191
  %v779 = vunpack.c.h.b16 %v191
  %v780 = vunpack.c.l.b16 %v192
  %v781 = vunpack.c.h.b16 %v192
  %v782 = vunpack.c.l.b16 %v193
  %v783 = vunpack.c.h.b16 %v193
  %v784 = vunpack.c.l.b16 %v194
  %v785 = vunpack.c.h.b16 %v194
  %v786 = vunpack.c.l.b16 %v195
  %v787 = vunpack.c.h.b16 %v195
  %v788 = vunpack.c.l.b16 %v196
  %v789 = vunpack.c.h.b16 %v196
  %v790 = vunpack.c.l.b16 %v197
  %v791 = vunpack.c.h.b16 %v197
  %v792 = vunpack.c.l.b16 %v198
  %v793 = vunpack.c.h.b16 %v198
  %v794 = vunpack.c.l.b16 %v199
  %v795 = vunpack.c.h.b16 %v199
  %v796 = vunpack.c.l.b16 %v200
  %v797 = vunpack.c.h.b16 %v200
  %v798 = vunpack.c.l.b16 %v201
  %v799 = vunpack.c.h.b16 %v201
  %v800 = vunpack.c.l.b16 %v202
  %v801 = vunpack.c.h.b16 %v202
  %v802 = vunpack.c.l.b16 %v203
  %v803 = vunpack.c.h.b16 %v203
  %v804 = vunpack.c.l.b16 %v204
  %v805 = vunpack.c.h.b16 %v204
  %v806 = vunpack.c.l.b16 %v205
  %v807 = vunpack.c.h.b16 %v205
  %v808 = vunpack.c.l.b16 %v206
  %v809 = vunpack.c.h.b16 %v206
  %v810 = vunpack.c.l.b16 %v207
  %v811 = vunpack.c.h.b16 %v207
  %v812 = vunpack.c.l.b16 %v208
  %v813 = vunpack.c.h.b16 %v208
  %v814 = vunpack.c.l.b16 %v209
  %v815 = vunpack.c.h.b16 %v209
  %v816 = vunpack.c.l.b16 %v210
  %v817 = vunpack.c.h.b16 %v210
  %v818 = vunpack.c.l.b16 %v211
  %v819 = vunpack.c.h.b16 %v211
  %v820 = vunpack.c.l.b16 %v212
  %v821 = vunpack.c.h.b16 %v212
  %v822 = vunpack.c.l.b16 %v213
  %v823 = vunpack.c.h.b16 %v213
  %v824 = vunpack.c.l.b16 %v214
  %v825 = vunpack.c.h.b16 %v214
  %v826 = vunpack.c.l.b16 %v215
  %v827 = vunpack.c.h.b16 %v215
  %v828 = vunpack.c.l.b16 %v216
  %v829 = vunpack.c.h.b16 %v216
  %v830 = vunpack.c.l.b16 %v217
  %v831 = vunpack.c.h.b16 %v217
  %v832 = vunpack.c.l.b16 %v218
  %v833 = vunpack.c.h.b16 %v218
  %v834 = vunpack.c.l.b16 %v219
  %v835 = vunpack.c.h.b16 %v219
  %v836 = vunpack.c.l.b16 %v220
  %v837 = vunpack.c.h.b16 %v220
  %v838 = vunpack.c.l.b16 %v221
  %v839 = vunpack.c.h.b16 %v221
  %v840 = vunpack.c.l.b16 %v222
  %v841 = vunpack.c.h.b16 %v222
  %v842 = vunpack.c.l.b16 %v223
  %v843 = vunpack.c.h.b16 %v223
  %v844 = vunpack.c.l.b16 %v224
  %v845 = vunpack.c.h.b16 %v224
  %v846 = vunpack.c.l.b16 %v225
  %v847 = vunpack.c.h.b16 %v225
  %v848 = vunpack.c.l.b16 %v226
  %v849 = vunpack.c.h.b16 %v226
  %v850 = vunpack.c.l.b16 %v227
  %v851 = vunpack.c.h.b16 %v227
  %v852 = vunpack.c.l.b16 %v228
  %v853 = vunpack.c.h.b16 %v228
  %v854 = vunpack.c.l.b16 %v229
  %v855 = vunpack.c.h.b16 %v229
  %v856 = vunpack.c.l.b16 %v230
  %v857 = vunpack.c.h.b16 %v230
  %v858 = vunpack.c.l.b16 %v231
  %v859 = vunpack.c.h.b16 %v231
  %v860 = vunpack.c.l.b16 %v232
  %v861 = vunpack.c.h.b16 %v232
  %v862 = vunpack.c.l.b16 %v233
  %v863 = vunpack.c.h.b16 %v233
  %v864 = vunpack.c.l.b16 %v234
  %v865 = vunpack.c.h.b16 %v234
  %v866 = vunpack.c.l.b16 %v235
  %v867 = vunpack.c.h.b16 %v235
  %v868 = vunpack.c.l.b16 %v236
  %v869 = vunpack.c.h.b16 %v236
  %v870 = vunpack.c.l.b16 %v237
  %v871 = vunpack.c.h.b16 %v237
  %v872 = vpack.c.b16 %v484, %v480
  %v873 = vpack.c.b16 %v485, %v481
  %v874 = vpack.c.b16 %v486, %v482
  %v875 = vpack.c.b16 %v487, %v483
  %v876 = vpack.c.b16 %v492, %v488
  %v877 = vpack.c.b16 %v493, %v489
  %v878 = vpack.c.b16 %v494, %v490
  %v879 = vpack.c.b16 %v495, %v491
  %v880 = vpack.c.b16 %v500, %v496
  %v881 = vpack.c.b16 %v501, %v497
  %v882 = vpack.c.b16 %v502, %v498
  %v883 = vpack.c.b16 %v503, %v499
  %v884 = vpack.c.b16 %v508, %v504
  %v885 = vpack.c.b16 %v509, %v505
  %v886 = vpack.c.b16 %v510, %v506
  %v887 = vpack.c.b16 %v511, %v507
  %v888 = vpack.c.b16 %v516, %v512
  %v889 = vpack.c.b16 %v517, %v513
  %v890 = vpack.c.b16 %v518, %v514
  %v891 = vpack.c.b16 %v519, %v515
  %v892 = vpack.c.b16 %v524, %v520
  %v893 = vpack.c.b16 %v525, %v521
  %v894 = vpack.c.b16 %v526, %v522
  %v895 = vpack.c.b16 %v527, %v523
  %v896 = vpack.c.b16 %v532, %v528
  %v897 = vpack.c.b16 %v533, %v529
  %v898 = vpack.c.b16 %v534, %v530
  %v899 = vpack.c.b16 %v535, %v531
  %v900 = vpack.c.b16 %v540, %v536
  %v901 = vpack.c.b16 %v541, %v537
  %v902 = vpack.c.b16 %v542, %v538
  %v903 = vpack.c.b16 %v543, %v539
  %v904 = vpack.c.b16 %v548, %v544
  %v905 = vpack.c.b16 %v549, %v545
  %v906 = vpack.c.b16 %v550, %v546
  %v907 = vpack.c.b16 %v551, %v547
  %v908 = vpack.c.b16 %v556, %v552
  %v909 = vpack.c.b16 %v557, %v553
  %v910 = vpack.c.b16 %v558, %v554
  %v911 = vpack.c.b16 %v559, %v555
  %v912 = vpack.c.b16 %v564, %v560
  %v913 = vpack.c.b16 %v565, %v561
  %v914 = vpack.c.b16 %v566, %v562
  %v915 = vpack.c.b16 %v567, %v563
  %v916 = vpack.c.b16 %v572, %v568
  %v917 = vpack.c.b16 %v573, %v569
  %v918 = vpack.c.b16 %v574, %v570
  %v919 = vpack.c.b16 %v575, %v571
  %v920 = vpack.c.b16 %v580, %v576
  %v921 = vpack.c.b16 %v581, %v577
  %v922 = vpack.c.b16 %v582, %v578
  %v923 = vpack.c.b16 %v583, %v579
  %v924 = vpack.c.b16 %v588, %v584
  %v925 = vpack.c.b16 %v589, %v585
  %v926 = vpack.c.b16 %v590, %v586
  %v927 = vpack.c.b16 %v591, %v587
  %v928 = vpack.c.b16 %v596, %v592
  %v929 = vpack.c.b16 %v597, %v593
  %v930 = vpack.c.b16 %v598, %v594
  %v931 = vpack.c.b16 %v599, %v595
  %v932 = vpack.c.b16 %v604, %v600
  %v933 = vpack.c.b16 %v605, %v601
  %v934 = vpack.c.b16 %v606, %v602
  %v935 = vpack.c.b16 %v607, %v603
  %v936 = vpack.c.b16 %v612, %v608
  %v937 = vpack.c.b16 %v613, %v609
  %v938 = vpack.c.b16 %v614, %v610
  %v939 = vpack.c.b16 %v615, %v611
  %v940 = vpack.c.b16 %v620, %v616
  %v941 = vpack.c.b16 %v621, %v617
  %v942 = vpack.c.b16 %v622, %v618
  %v943 = vpack.c.b16 %v623, %v619
  %v944 = vpack.c.b16 %v628, %v624
  %v945 = vpack.c.b16 %v629, %v625
  %v946 = vpack.c.b16 %v630, %v626
  %v947 = vpack.c.b16 %v631, %v627
  %v948 = vpack.c.b16 %v636, %v632
  %v949 = vpack.c.b16 %v637, %v633
  %v950 = vpack.c.b16 %v638, %v634
  %v951 = vpack.c.b16 %v639, %v635
  %v952 = vpack.c.b16 %v644, %v640
  %v953 = vpack.c.b16 %v645, %v641
  %v954 = vpack.c.b16 %v646, %v642
  %v955 = vpack.c.b16 %v647, %v643
  %v956 = vpack.c.b16 %v652, %v648
  %v957 = vpack.c.b16 %v653, %v649
  %v958 = vpack.c.b16 %v654, %v650
  %v959 = vpack.c.b16 %v655, %v651
  %v960 = vpack.c.b16 %v660, %v656
  %v961 = vpack.c.b16 %v661, %v657
  %v962 = vpack.c.b16 %v662, %v658
  %v963 = vpack.c.b16 %v663, %v659
  %v964 = vpack.c.b16 %v668, %v664
  %v965 = vpack.c.b16 %v669, %v665
  %v966 = vpack.c.b16 %v670, %v666
  %v967 = vpack.c.b16 %v671, %v667
  %v968 = vpack.c.b16 %v676, %v672
  %v969 = vpack.c.b16 %v677, %v673
  %v970 = vpack.c.b16 %v678, %v674
  %v971 = vpack.c.b16 %v679, %v675
  %v972 = vpack.c.b16 %v684, %v680
  %v973 = vpack.c.b16 %v685, %v681
  %v974 = vpack.c.b16 %v686, %v682
  %v975 = vpack.c.b16 %v687, %v683
  %v976 = vpack.c.b16 %v692, %v688
  %v977 = vpack.c.b16 %v693, %v689
  %v978 = vpack.c.b16 %v694, %v690
  %v979 = vpack.c.b16 %v695, %v691
  %v980 = vpack.c.b16 %v700, %v696
  %v981 = vpack.c.b16 %v701, %v697
  %v982 = vpack.c.b16 %v702, %v698
  %v983 = vpack.c.b16 %v703, %v699
  %v984 = vpack.c.b16 %v708, %v704
  %v985 = vpack.c.b16 %v709, %v705
  %v986 = vpack.c.b16 %v710, %v706
  %v987 = vpack.c.b16 %v711, %v707
  %v988 = vpack.c.b16 %v716, %v712
  %v989 = vpack.c.b16 %v717, %v713
  %v990 = vpack.c.b16 %v718, %v714
  %v991 = vpack.c.b16 %v719, %v715
  %v992 = vpack.c.b16 %v724, %v720
  %v993 = vpack.c.b16 %v725, %v721
  %v994 = vpack.c.b16 %v726, %v722
  %v995 = vpack.c.b16 %v727, %v723
  %v996 = vpack.c.b16 %v732, %v728
  %v997 = vpack.c.b16 %v733, %v729
  %v998 = vpack.c.b16 %v734, %v730
  %v999 = vpack.c.b16 %v735, %v731
  %v1000 = vpack.c.b16 %v740, %v736
  %v1001 = vpack.c.b16 %v741, %v737
  %v1002 = vpack.c.b16 %v742, %v738
  %v1003 = vpack.c.b16 %v743, %v739
  %v1004 = vpack.c.b16 %v748, %v744
  %v1005 = vpack.c.b16 %v749, %v745
  %v1006 = vpack.c.b16 %v750, %v746
  %v1007 = vpack.c.b16 %v751, %v747
  %v1008 = vpack.c.b16 %v756, %v752
  %v1009 = vpack.c.b16 %v757, %v753
  %v1010 = vpack.c.b16 %v758, %v754
  %v1011 = vpack.c.b16 %v759, %v755
  %v1012 = vpack.c.b16 %v764, %v760
  %v1013 = vpack.c.b16 %v765, %v761
  %v1014 = vpack.c.b16 %v766, %v762
  %v1015 = vpack.c.b16 %v767, %v763
  %v1016 = vpack.c.b16 %v772, %v768
  %v1017 = vpack.c.b16 %v773, %v769
  %v1018 = vpack.c.b16 %v774, %v770
  %v1019 = vpack.c.b16 %v775, %v771
  %v1020 = vpack.c.b16 %v780, %v776
  %v1021 = vpack.c.b16 %v781, %v777
  %v1022 = vpack.c.b16 %v782, %v778
  %v1023 = vpack.c.b16 %v783, %v779
  %v1024 = vpack.c.b16 %v788, %v784
  %v1025 = vpack.c.b16 %v789, %v785
  %v1026 = vpack.c.b16 %v790, %v786
  %v1027 = vpack.c.b16 %v791, %v787
  %v1028 = vpack.c.b16 %v796, %v792
  %v1029 = vpack.c.b16 %v797, %v793
  %v1030 = vpack.c.b16 %v798, %v794
  %v1031 = vpack.c.b16 %v799, %v795
  %v1032 = vpack.c.b16 %v804, %v800
  %v1033 = vpack.c.b16 %v805, %v801
  %v1034 = vpack.c.b16 %v806, %v802
  %v1035 = vpack.c.b16 %v807, %v803
  %v1036 = vpack.c.b16 %v812, %v808
  %v1037 = vpack.c.b16 %v813, %v809
  %v1038 = vpack.c.b16 %v814, %v810
  %v1039 = vpack.c.b16 %v815, %v811
  %v1040 = vpack.c.b16 %v820, %v816
  %v1041 = vpack.c.b16 %v821, %v817
  %v1042 = vpack.c.b16 %v822, %v818
  %v1043 = vpack.c.b16 %v823, %v819
  %v1044 = vpack.c.b16 %v828, %v824
  %v1045 = vpack.c.b16 %v829, %v825
  %v1046 = vpack.c.b16 %v830, %v826
  %v1047 = vpack.c.b16 %v831, %v827
  %v1048 = vpack.c.b16 %v836, %v832
  %v1049 = vpack.c.b16 %v837, %v833
  %v1050 = vpack.c.b16 %v838, %v834
  %v1051 = vpack.c.b16 %v839, %v835
  %v1052 = vpack.c.b16 %v844, %v840
  %v1053 = vpack.c.b16 %v845, %v841
  %v1054 = vpack.c.b16 %v846, %v842
  %v1055 = vpack.c.b16 %v847, %v843
  %v1056 = vpack.c.b16 %v852, %v848
  %v1057 = vpack.c.b16 %v853, %v849
  %v1058 = vpack.c.b16 %v854, %v850
  %v1059 = vpack.c.b16 %v855, %v851
  %v1060 = vpack.c.b16 %v860, %v856
  %v1061 = vpack.c.b16 %v861, %v857
  %v1062 = vpack.c.b16 %v862, %v858
  %v1063 = vpack.c.b16 %v863, %v859
  %v1064 = vpack.c.b16 %v868, %v864
  %v1065 = vpack.c.b16 %v869, %v865
  %v1066 = vpack.c.b16 %v870, %v866
  %v1067 = vpack.c.b16 %v871, %v867
  %vm1264 = vcmask 130048
  %v1266 = vsel %vm1264, %v277, 0
  %1268 = vmatprep.subr.bf16.mxu0 %v901
  %1269 = vmatpush1.bf16.msra.mxu0 %v900
  %1270 = vmatprep.subr.bf16.mxu0 %v897
  %1271 = vmatpush1.bf16.msra.mxu0 %v896
  %1272 = vmatprep.subr.bf16.mxu0 %v893
  %1273 = vmatpush1.bf16.msra.mxu0 %v892
  %1274 = vmatprep.subr.bf16.mxu0 %v889
  %1275 = vmatpush1.bf16.msra.mxu0 %v888
  %1276 = vmatprep.subr.bf16.mxu0 %v885
  %1277 = vmatpush1.bf16.msra.mxu0 %v884
  %1278 = vmatprep.subr.bf16.mxu0 %v881
  %1279 = vmatpush1.bf16.msra.mxu0 %v880
  %1280 = vmatprep.subr.bf16.mxu0 %v877
  %1281 = vmatpush1.bf16.msra.mxu0 %v876
  %1282 = vmatprep.subr.bf16.mxu0 %v873
  %1283 = vmatpush1.bf16.msra.mxu0 %v872
  %1284 = vmatprep.subr.bf16.mxu0 %v933
  %1285 = vmatpush2.bf16.msra.mxu0 %v932
  %1286 = vmatprep.subr.bf16.mxu0 %v929
  %1287 = vmatpush2.bf16.msra.mxu0 %v928
  %1288 = vmatprep.subr.bf16.mxu0 %v925
  %1289 = vmatpush2.bf16.msra.mxu0 %v924
  %1290 = vmatprep.subr.bf16.mxu0 %v921
  %1291 = vmatpush2.bf16.msra.mxu0 %v920
  %1292 = vmatprep.subr.bf16.mxu0 %v917
  %1293 = vmatpush2.bf16.msra.mxu0 %v916
  %1294 = vmatprep.subr.bf16.mxu0 %v913
  %1295 = vmatpush2.bf16.msra.mxu0 %v912
  %1296 = vmatprep.subr.bf16.mxu0 %v909
  %1297 = vmatpush2.bf16.msra.mxu0 %v908
  %1298 = vmatprep.subr.bf16.mxu0 %v905
  %1299 = vmatpush2.bf16.msra.mxu0 %v904
  %1300 = vmatprep.mubr.bf16.mxu0 %v272
  %1301 = vmatmul.mubr.bf16.gmra.mxu0 %v271
  %v1302 = vpop.f32.mrf.mxu0
  %v1303 = vadd.f32 %v243, %v1302
  %v1304 = vpop.f32.mrf.mxu0
  %v1305 = vadd.f32 %v247, %v1304
  %v1306 = vpop.f32.mrf.mxu0
  %v1307 = vpop.f32.mrf.mxu0
  %1308 = vdwg.mxu0
  %1309 = vmatprep.subr.bf16.mxu0 %v965
  %1310 = vmatpush1.bf16.msra.mxu0 %v964
  %1311 = vmatprep.subr.bf16.mxu0 %v961
  %1312 = vmatpush1.bf16.msra.mxu0 %v960
  %1313 = vmatprep.subr.bf16.mxu0 %v957
  %1314 = vmatpush1.bf16.msra.mxu0 %v956
  %1315 = vmatprep.subr.bf16.mxu0 %v953
  %1316 = vmatpush1.bf16.msra.mxu0 %v952
  %1317 = vmatprep.subr.bf16.mxu0 %v949
  %1318 = vmatpush1.bf16.msra.mxu0 %v948
  %1319 = vmatprep.subr.bf16.mxu0 %v945
  %1320 = vmatpush1.bf16.msra.mxu0 %v944
  %1321 = vmatprep.subr.bf16.mxu0 %v941
  %1322 = vmatpush1.bf16.msra.mxu0 %v940
  %1323 = vmatprep.subr.bf16.mxu0 %v937
  %1324 = vmatpush1.bf16.msra.mxu0 %v936
  %1325 = vmatprep.subr.bf16.mxu0 %v997
  %1326 = vmatpush2.bf16.msra.mxu0 %v996
  %1327 = vmatprep.subr.bf16.mxu0 %v993
  %1328 = vmatpush2.bf16.msra.mxu0 %v992
  %1329 = vmatprep.subr.bf16.mxu0 %v989
  %1330 = vmatpush2.bf16.msra.mxu0 %v988
  %1331 = vmatprep.subr.bf16.mxu0 %v985
  %1332 = vmatpush2.bf16.msra.mxu0 %v984
  %1333 = vmatprep.subr.bf16.mxu0 %v981
  %1334 = vmatpush2.bf16.msra.mxu0 %v980
  %1335 = vmatprep.subr.bf16.mxu0 %v977
  %1336 = vmatpush2.bf16.msra.mxu0 %v976
  %1337 = vmatprep.subr.bf16.mxu0 %v973
  %1338 = vmatpush2.bf16.msra.mxu0 %v972
  %1339 = vmatprep.subr.bf16.mxu0 %v969
  %1340 = vmatpush2.bf16.msra.mxu0 %v968
  %1341 = vmatprep.mubr.bf16.mxu0 %v274
  %1342 = vmatmul.mubr.bf16.gmra.mxu0 %v273
  %v1343 = vpop.f32.mrf.mxu0
  %v1344 = vadd.f32 %v1303, %v1343
  %v1345 = vpop.f32.mrf.mxu0
  %v1346 = vadd.f32 %v1305, %v1345
  %v1347 = vpop.f32.mrf.mxu0
  %v1348 = vpop.f32.mrf.mxu0
  %1349 = vdwg.mxu0
  %1350 = vmatprep.subr.bf16.mxu0 %v1029
  %1351 = vmatpush1.bf16.msra.mxu0 %v1028
  %1352 = vmatprep.subr.bf16.mxu0 %v1025
  %1353 = vmatpush1.bf16.msra.mxu0 %v1024
  %1354 = vmatprep.subr.bf16.mxu0 %v1021
  %1355 = vmatpush1.bf16.msra.mxu0 %v1020
  %1356 = vmatprep.subr.bf16.mxu0 %v1017
  %1357 = vmatpush1.bf16.msra.mxu0 %v1016
  %1358 = vmatprep.subr.bf16.mxu0 %v1013
  %1359 = vmatpush1.bf16.msra.mxu0 %v1012
  %1360 = vmatprep.subr.bf16.mxu0 %v1009
  %1361 = vmatpush1.bf16.msra.mxu0 %v1008
  %1362 = vmatprep.subr.bf16.mxu0 %v1005
  %1363 = vmatpush1.bf16.msra.mxu0 %v1004
  %1364 = vmatprep.subr.bf16.mxu0 %v1001
  %1365 = vmatpush1.bf16.msra.mxu0 %v1000
  %1366 = vmatprep.subr.bf16.mxu0 %v1061
  %1367 = vmatpush2.bf16.msra.mxu0 %v1060
  %1368 = vmatprep.subr.bf16.mxu0 %v1057
  %1369 = vmatpush2.bf16.msra.mxu0 %v1056
  %1370 = vmatprep.subr.bf16.mxu0 %v1053
  %1371 = vmatpush2.bf16.msra.mxu0 %v1052
  %1372 = vmatprep.subr.bf16.mxu0 %v1049
  %1373 = vmatpush2.bf16.msra.mxu0 %v1048
  %1374 = vmatprep.subr.bf16.mxu0 %v1045
  %1375 = vmatpush2.bf16.msra.mxu0 %v1044
  %1376 = vmatprep.subr.bf16.mxu0 %v1041
  %1377 = vmatpush2.bf16.msra.mxu0 %v1040
  %1378 = vmatprep.subr.bf16.mxu0 %v1037
  %1379 = vmatpush2.bf16.msra.mxu0 %v1036
  %1380 = vmatprep.subr.bf16.mxu0 %v1033
  %1381 = vmatpush2.bf16.msra.mxu0 %v1032
  %1382 = vmatprep.mubr.bf16.mxu0 %v276
  %1383 = vmatmul.mubr.bf16.gmra.mxu0 %v275
  %v1384 = vpop.f32.mrf.mxu0
  %v1385 = vadd.f32 %v1344, %v1384
  %v1386 = vpop.f32.mrf.mxu0
  %v1387 = vadd.f32 %v1346, %v1386
  %v1388 = vpop.f32.mrf.mxu0
  %v1389 = vpop.f32.mrf.mxu0
  %1390 = vdwg.mxu0
  %1391 = vmatprep.subr.bf16.mxu0 0
  %1392 = vmatpush1.bf16.msra.mxu0 0
  %1393 = vmatprep.subr.bf16.mxu0 0
  %1394 = vmatpush1.bf16.msra.mxu0 0
  %1395 = vmatprep.subr.bf16.mxu0 0
  %1396 = vmatpush1.bf16.msra.mxu0 0
  %1397 = vmatprep.subr.bf16.mxu0 0
  %1398 = vmatpush1.bf16.msra.mxu0 0
  %1399 = vmatprep.subr.bf16.mxu0 0
  %1400 = vmatpush1.bf16.msra.mxu0 0
  %1401 = vmatprep.subr.bf16.mxu0 0
  %1402 = vmatpush1.bf16.msra.mxu0 0
  %1403 = vmatprep.subr.bf16.mxu0 0
  %1404 = vmatpush1.bf16.msra.mxu0 0
  %1405 = vmatprep.subr.bf16.mxu0 %v1065
  %1406 = vmatpush1.bf16.msra.mxu0 %v1064
  %1407 = vmatprep.subr.bf16.mxu0 0
  %1408 = vmatpush2.bf16.msra.mxu0 0
  %1409 = vmatprep.subr.bf16.mxu0 0
  %1410 = vmatpush2.bf16.msra.mxu0 0
  %1411 = vmatprep.subr.bf16.mxu0 0
  %1412 = vmatpush2.bf16.msra.mxu0 0
  %1413 = vmatprep.subr.bf16.mxu0 0
  %1414 = vmatpush2.bf16.msra.mxu0 0
  %1415 = vmatprep.subr.bf16.mxu0 0
  %1416 = vmatpush2.bf16.msra.mxu0 0
  %1417 = vmatprep.subr.bf16.mxu0 0
  %1418 = vmatpush2.bf16.msra.mxu0 0
  %1419 = vmatprep.subr.bf16.mxu0 0
  %1420 = vmatpush2.bf16.msra.mxu0 0
  %1421 = vmatprep.subr.bf16.mxu0 0
  %1422 = vmatpush2.bf16.msra.mxu0 0
  %1423 = vmatprep.mubr.bf16.mxu0 0
  %1424 = vmatmul.mubr.bf16.gmra.mxu0 %v1266
  %v1425 = vpop.f32.mrf.mxu0
  %v1426 = vadd.f32 %v1385, %v1425
  %v1427 = vpop.f32.mrf.mxu0
  %v1428 = vadd.f32 %v1387, %v1427
  %v1429 = vpop.f32.mrf.mxu0
  %v1430 = vpop.f32.mrf.mxu0
  %1431 = vdwg.mxu0
  %1432 = vmatprep.subr.bf16.mxu0 %v903
  %1433 = vmatpush1.bf16.msra.mxu0 %v902
  %1434 = vmatprep.subr.bf16.mxu0 %v899
  %1435 = vmatpush1.bf16.msra.mxu0 %v898
  %1436 = vmatprep.subr.bf16.mxu0 %v895
  %1437 = vmatpush1.bf16.msra.mxu0 %v894
  %1438 = vmatprep.subr.bf16.mxu0 %v891
  %1439 = vmatpush1.bf16.msra.mxu0 %v890
  %1440 = vmatprep.subr.bf16.mxu0 %v887
  %1441 = vmatpush1.bf16.msra.mxu0 %v886
  %1442 = vmatprep.subr.bf16.mxu0 %v883
  %1443 = vmatpush1.bf16.msra.mxu0 %v882
  %1444 = vmatprep.subr.bf16.mxu0 %v879
  %1445 = vmatpush1.bf16.msra.mxu0 %v878
  %1446 = vmatprep.subr.bf16.mxu0 %v875
  %1447 = vmatpush1.bf16.msra.mxu0 %v874
  %1448 = vmatprep.subr.bf16.mxu0 %v935
  %1449 = vmatpush2.bf16.msra.mxu0 %v934
  %1450 = vmatprep.subr.bf16.mxu0 %v931
  %1451 = vmatpush2.bf16.msra.mxu0 %v930
  %1452 = vmatprep.subr.bf16.mxu0 %v927
  %1453 = vmatpush2.bf16.msra.mxu0 %v926
  %1454 = vmatprep.subr.bf16.mxu0 %v923
  %1455 = vmatpush2.bf16.msra.mxu0 %v922
  %1456 = vmatprep.subr.bf16.mxu0 %v919
  %1457 = vmatpush2.bf16.msra.mxu0 %v918
  %1458 = vmatprep.subr.bf16.mxu0 %v915
  %1459 = vmatpush2.bf16.msra.mxu0 %v914
  %1460 = vmatprep.subr.bf16.mxu0 %v911
  %1461 = vmatpush2.bf16.msra.mxu0 %v910
  %1462 = vmatprep.subr.bf16.mxu0 %v907
  %1463 = vmatpush2.bf16.msra.mxu0 %v906
  %1464 = vmatprep.mubr.bf16.mxu0 %v272
  %1465 = vmatmul.mubr.bf16.gmra.mxu0 %v271
  %v1466 = vpop.f32.mrf.mxu0
  %v1467 = vadd.f32 %v251, %v1466
  %v1468 = vpop.f32.mrf.mxu0
  %v1469 = vadd.f32 %v255, %v1468
  %v1470 = vpop.f32.mrf.mxu0
  %v1471 = vpop.f32.mrf.mxu0
  %1472 = vdwg.mxu0
  %1473 = vmatprep.subr.bf16.mxu0 %v967
  %1474 = vmatpush1.bf16.msra.mxu0 %v966
  %1475 = vmatprep.subr.bf16.mxu0 %v963
  %1476 = vmatpush1.bf16.msra.mxu0 %v962
  %1477 = vmatprep.subr.bf16.mxu0 %v959
  %1478 = vmatpush1.bf16.msra.mxu0 %v958
  %1479 = vmatprep.subr.bf16.mxu0 %v955
  %1480 = vmatpush1.bf16.msra.mxu0 %v954
  %1481 = vmatprep.subr.bf16.mxu0 %v951
  %1482 = vmatpush1.bf16.msra.mxu0 %v950
  %1483 = vmatprep.subr.bf16.mxu0 %v947
  %1484 = vmatpush1.bf16.msra.mxu0 %v946
  %1485 = vmatprep.subr.bf16.mxu0 %v943
  %1486 = vmatpush1.bf16.msra.mxu0 %v942
  %1487 = vmatprep.subr.bf16.mxu0 %v939
  %1488 = vmatpush1.bf16.msra.mxu0 %v938
  %1489 = vmatprep.subr.bf16.mxu0 %v999
  %1490 = vmatpush2.bf16.msra.mxu0 %v998
  %1491 = vmatprep.subr.bf16.mxu0 %v995
  %1492 = vmatpush2.bf16.msra.mxu0 %v994
  %1493 = vmatprep.subr.bf16.mxu0 %v991
  %1494 = vmatpush2.bf16.msra.mxu0 %v990
  %1495 = vmatprep.subr.bf16.mxu0 %v987
  %1496 = vmatpush2.bf16.msra.mxu0 %v986
  %1497 = vmatprep.subr.bf16.mxu0 %v983
  %1498 = vmatpush2.bf16.msra.mxu0 %v982
  %1499 = vmatprep.subr.bf16.mxu0 %v979
  %1500 = vmatpush2.bf16.msra.mxu0 %v978
  %1501 = vmatprep.subr.bf16.mxu0 %v975
  %1502 = vmatpush2.bf16.msra.mxu0 %v974
  %1503 = vmatprep.subr.bf16.mxu0 %v971
  %1504 = vmatpush2.bf16.msra.mxu0 %v970
  %1505 = vmatprep.mubr.bf16.mxu0 %v274
  %1506 = vmatmul.mubr.bf16.gmra.mxu0 %v273
  %v1507 = vpop.f32.mrf.mxu0
  %v1508 = vadd.f32 %v1467, %v1507
  %v1509 = vpop.f32.mrf.mxu0
  %v1510 = vadd.f32 %v1469, %v1509
  %v1511 = vpop.f32.mrf.mxu0
  %v1512 = vpop.f32.mrf.mxu0
  %1513 = vdwg.mxu0
  %1514 = vmatprep.subr.bf16.mxu0 %v1031
  %1515 = vmatpush1.bf16.msra.mxu0 %v1030
  %1516 = vmatprep.subr.bf16.mxu0 %v1027
  %1517 = vmatpush1.bf16.msra.mxu0 %v1026
  %1518 = vmatprep.subr.bf16.mxu0 %v1023
  %1519 = vmatpush1.bf16.msra.mxu0 %v1022
  %1520 = vmatprep.subr.bf16.mxu0 %v1019
  %1521 = vmatpush1.bf16.msra.mxu0 %v1018
  %1522 = vmatprep.subr.bf16.mxu0 %v1015
  %1523 = vmatpush1.bf16.msra.mxu0 %v1014
  %1524 = vmatprep.subr.bf16.mxu0 %v1011
  %1525 = vmatpush1.bf16.msra.mxu0 %v1010
  %1526 = vmatprep.subr.bf16.mxu0 %v1007
  %1527 = vmatpush1.bf16.msra.mxu0 %v1006
  %1528 = vmatprep.subr.bf16.mxu0 %v1003
  %1529 = vmatpush1.bf16.msra.mxu0 %v1002
  %1530 = vmatprep.subr.bf16.mxu0 %v1063
  %1531 = vmatpush2.bf16.msra.mxu0 %v1062
  %1532 = vmatprep.subr.bf16.mxu0 %v1059
  %1533 = vmatpush2.bf16.msra.mxu0 %v1058
  %1534 = vmatprep.subr.bf16.mxu0 %v1055
  %1535 = vmatpush2.bf16.msra.mxu0 %v1054
  %1536 = vmatprep.subr.bf16.mxu0 %v1051
  %1537 = vmatpush2.bf16.msra.mxu0 %v1050
  %1538 = vmatprep.subr.bf16.mxu0 %v1047
  %1539 = vmatpush2.bf16.msra.mxu0 %v1046
  %1540 = vmatprep.subr.bf16.mxu0 %v1043
  %1541 = vmatpush2.bf16.msra.mxu0 %v1042
  %1542 = vmatprep.subr.bf16.mxu0 %v1039
  %1543 = vmatpush2.bf16.msra.mxu0 %v1038
  %1544 = vmatprep.subr.bf16.mxu0 %v1035
  %1545 = vmatpush2.bf16.msra.mxu0 %v1034
  %1546 = vmatprep.mubr.bf16.mxu0 %v276
  %1547 = vmatmul.mubr.bf16.gmra.mxu0 %v275
  %v1548 = vpop.f32.mrf.mxu0
  %v1549 = vadd.f32 %v1508, %v1548
  %v1550 = vpop.f32.mrf.mxu0
  %v1551 = vadd.f32 %v1510, %v1550
  %v1552 = vpop.f32.mrf.mxu0
  %v1553 = vpop.f32.mrf.mxu0
  %1554 = vdwg.mxu0
  %1555 = vmatprep.subr.bf16.mxu0 0
  %1556 = vmatpush1.bf16.msra.mxu0 0
  %1557 = vmatprep.subr.bf16.mxu0 0
  %1558 = vmatpush1.bf16.msra.mxu0 0
  %1559 = vmatprep.subr.bf16.mxu0 0
  %1560 = vmatpush1.bf16.msra.mxu0 0
  %1561 = vmatprep.subr.bf16.mxu0 0
  %1562 = vmatpush1.bf16.msra.mxu0 0
  %1563 = vmatprep.subr.bf16.mxu0 0
  %1564 = vmatpush1.bf16.msra.mxu0 0
  %1565 = vmatprep.subr.bf16.mxu0 0
  %1566 = vmatpush1.bf16.msra.mxu0 0
  %1567 = vmatprep.subr.bf16.mxu0 0
  %1568 = vmatpush1.bf16.msra.mxu0 0
  %1569 = vmatprep.subr.bf16.mxu0 %v1067
  %1570 = vmatpush1.bf16.msra.mxu0 %v1066
  %1571 = vmatprep.subr.bf16.mxu0 0
  %1572 = vmatpush2.bf16.msra.mxu0 0
  %1573 = vmatprep.subr.bf16.mxu0 0
  %1574 = vmatpush2.bf16.msra.mxu0 0
  %1575 = vmatprep.subr.bf16.mxu0 0
  %1576 = vmatpush2.bf16.msra.mxu0 0
  %1577 = vmatprep.subr.bf16.mxu0 0
  %1578 = vmatpush2.bf16.msra.mxu0 0
  %1579 = vmatprep.subr.bf16.mxu0 0
  %1580 = vmatpush2.bf16.msra.mxu0 0
  %1581 = vmatprep.subr.bf16.mxu0 0
  %1582 = vmatpush2.bf16.msra.mxu0 0
  %1583 = vmatprep.subr.bf16.mxu0 0
  %1584 = vmatpush2.bf16.msra.mxu0 0
  %1585 = vmatprep.subr.bf16.mxu0 0
  %1586 = vmatpush2.bf16.msra.mxu0 0
  %1587 = vmatprep.mubr.bf16.mxu0 0
  %1588 = vmatmul.mubr.bf16.gmra.mxu0 %v1266
  %v1589 = vpop.f32.mrf.mxu0
  %v1590 = vadd.f32 %v1549, %v1589
  %v1591 = vpop.f32.mrf.mxu0
  %v1592 = vadd.f32 %v1551, %v1591
  %v1593 = vpop.f32.mrf.mxu0
  %v1594 = vpop.f32.mrf.mxu0
  %1595 = vdwg.mxu0
  %v1596 = vmax.f32 %v1426, 0.0
  %v1597 = vmax.f32 %v1428, 0.0
  %v1598 = vmax.f32 %v1590, 0.0
  %v1599 = vmax.f32 %v1592, 0.0
  %v1600 = vpack.c.bf16 %v1596, %v1596
  %v1601 = vpack.c.bf16 %v1597, %v1597
  %v1602 = vpack.c.bf16 %v1598, %v1598
  %v1603 = vpack.c.bf16 %v1599, %v1599
  %v1604 = vld [vmem:[%s4] sm:$0xff]
  %v1605 = vld [vmem:[%s4 + $0x8] sm:$0xff]
  %v1606 = vld [vmem:[%s4 + $0x10] sm:$0xff]
  %v1607 = vld [vmem:[%s4 + $0x18] sm:$0xff]
  %v1608 = vld [vmem:[%s4 + $0x20] sm:$0xff]
  %v1609 = vld [vmem:[%s4 + $0x28] sm:$0xff]
  %v1610 = vld [vmem:[%s4 + $0x30] sm:$0xff]
  %v1611 = vld [vmem:[%s4 + $0x38] sm:$0xff]
  %v1612 = vld [vmem:[%s4 + $0x40] sm:$0xff]
  %v1613 = vld [vmem:[%s4 + $0x48] sm:$0xff]
  %v1614 = vld [vmem:[%s4 + $0x50] sm:$0xff]
  %v1615 = vld [vmem:[%s4 + $0x58] sm:$0xff]
  %v1616 = vld [vmem:[%s4 + $0x60] sm:$0xff]
  %v1617 = vld [vmem:[%s4 + $0x68] sm:$0xff]
  %v1618 = vld [vmem:[%s4 + $0x70] sm:$0xff]
  %v1619 = vld [vmem:[%s4 + $0x78] sm:$0xff]
  %v1620 = vld [vmem:[%s4 + $0x80] sm:$0xff]
  %v1621 = vld [vmem:[%s4 + $0x88] sm:$0xff]
  %v1622 = vld [vmem:[%s4 + $0x90] sm:$0xff]
  %v1623 = vld [vmem:[%s4 + $0x98] sm:$0xff]
  %v1624 = vld [vmem:[%s4 + $0xa0] sm:$0xff]
  %v1625 = vld [vmem:[%s4 + $0xa8] sm:$0xff]
  %v1626 = vld [vmem:[%s4 + $0xb0] sm:$0xff]
  %v1627 = vld [vmem:[%s4 + $0xb8] sm:$0xff]
  %v1628 = vld [vmem:[%s4 + $0xc0] sm:$0xff]
  %v1629 = vld [vmem:[%s4 + $0xc8] sm:$0xff]
  %v1630 = vld [vmem:[%s4 + $0xd0] sm:$0xff]
  %v1631 = vld [vmem:[%s4 + $0xd8] sm:$0xff]
  %v1632 = vld [vmem:[%s4 + $0xe0] sm:$0xff]
  %v1633 = vld [vmem:[%s4 + $0xe8] sm:$0xff]
  %v1634 = vld [vmem:[%s4 + $0xf0] sm:$0xff]
  %v1635 = vld [vmem:[%s4 + $0xf8] sm:$0xff]
  %v1636 = vld [vmem:[%s4 + $0x100] sm:$0xff]
  %v1637 = vld [vmem:[%s4 + $0x108] sm:$0xff]
  %v1638 = vld [vmem:[%s4 + $0x110] sm:$0xff]
  %v1639 = vld [vmem:[%s4 + $0x118] sm:$0xff]
  %v1640 = vld [vmem:[%s4 + $0x120] sm:$0xff]
  %v1641 = vld [vmem:[%s4 + $0x128] sm:$0xff]
  %v1642 = vld [vmem:[%s4 + $0x130] sm:$0xff]
  %v1643 = vld [vmem:[%s4 + $0x138] sm:$0xff]
  %v1644 = vld [vmem:[%s4 + $0x140] sm:$0xff]
  %v1645 = vld [vmem:[%s4 + $0x148] sm:$0xff]
  %v1646 = vld [vmem:[%s4 + $0x150] sm:$0xff]
  %v1647 = vld [vmem:[%s4 + $0x158] sm:$0xff]
  %v1648 = vld [vmem:[%s4 + $0x160] sm:$0xff]
  %v1649 = vld [vmem:[%s4 + $0x168] sm:$0xff]
  %v1650 = vld [vmem:[%s4 + $0x170] sm:$0xff]
  %v1651 = vld [vmem:[%s4 + $0x178] sm:$0xff]
  %v1652 = vld [vmem:[%s4 + $0x180] sm:$0xff]
  %v1653 = vld [vmem:[%s4 + $0x188] sm:$0xff]
  %v1654 = vld [vmem:[%s5] sm:$0x3]
  %v1656 = vlaneseq
  %v1657 = vshrl.u32 %v1656, 7
  %v1658 = vsub.s32 0, %v1657
  %v1659 = vrot.slane %v1654, %v1658
  %v1660 = vlaneseq
  %v1661 = vshrl.u32 %v1660, 7
  %v1662 = vsub.s32 1, %v1661
  %v1663 = vrot.slane %v1654, %v1662
  %v1716 = vunpack.c.l.b16 %v1604
  %v1717 = vunpack.c.h.b16 %v1604
  %v1718 = vunpack.c.l.b16 %v1605
  %v1719 = vunpack.c.h.b16 %v1605
  %v1720 = vunpack.c.l.b16 %v1606
  %v1721 = vunpack.c.h.b16 %v1606
  %v1722 = vunpack.c.l.b16 %v1607
  %v1723 = vunpack.c.h.b16 %v1607
  %v1724 = vunpack.c.l.b16 %v1608
  %v1725 = vunpack.c.h.b16 %v1608
  %v1726 = vunpack.c.l.b16 %v1609
  %v1727 = vunpack.c.h.b16 %v1609
  %v1728 = vunpack.c.l.b16 %v1610
  %v1729 = vunpack.c.h.b16 %v1610
  %v1730 = vunpack.c.l.b16 %v1611
  %v1731 = vunpack.c.h.b16 %v1611
  %v1732 = vunpack.c.l.b16 %v1612
  %v1733 = vunpack.c.h.b16 %v1612
  %v1734 = vunpack.c.l.b16 %v1613
  %v1735 = vunpack.c.h.b16 %v1613
  %v1736 = vunpack.c.l.b16 %v1614
  %v1737 = vunpack.c.h.b16 %v1614
  %v1738 = vunpack.c.l.b16 %v1615
  %v1739 = vunpack.c.h.b16 %v1615
  %v1740 = vunpack.c.l.b16 %v1616
  %v1741 = vunpack.c.h.b16 %v1616
  %v1742 = vunpack.c.l.b16 %v1617
  %v1743 = vunpack.c.h.b16 %v1617
  %v1744 = vunpack.c.l.b16 %v1618
  %v1745 = vunpack.c.h.b16 %v1618
  %v1746 = vunpack.c.l.b16 %v1619
  %v1747 = vunpack.c.h.b16 %v1619
  %v1748 = vunpack.c.l.b16 %v1620
  %v1749 = vunpack.c.h.b16 %v1620
  %v1750 = vunpack.c.l.b16 %v1621
  %v1751 = vunpack.c.h.b16 %v1621
  %v1752 = vunpack.c.l.b16 %v1622
  %v1753 = vunpack.c.h.b16 %v1622
  %v1754 = vunpack.c.l.b16 %v1623
  %v1755 = vunpack.c.h.b16 %v1623
  %v1756 = vunpack.c.l.b16 %v1624
  %v1757 = vunpack.c.h.b16 %v1624
  %v1758 = vunpack.c.l.b16 %v1625
  %v1759 = vunpack.c.h.b16 %v1625
  %v1760 = vunpack.c.l.b16 %v1626
  %v1761 = vunpack.c.h.b16 %v1626
  %v1762 = vunpack.c.l.b16 %v1627
  %v1763 = vunpack.c.h.b16 %v1627
  %v1764 = vunpack.c.l.b16 %v1628
  %v1765 = vunpack.c.h.b16 %v1628
  %v1766 = vunpack.c.l.b16 %v1629
  %v1767 = vunpack.c.h.b16 %v1629
  %v1768 = vunpack.c.l.b16 %v1630
  %v1769 = vunpack.c.h.b16 %v1630
  %v1770 = vunpack.c.l.b16 %v1631
  %v1771 = vunpack.c.h.b16 %v1631
  %v1772 = vunpack.c.l.b16 %v1632
  %v1773 = vunpack.c.h.b16 %v1632
  %v1774 = vunpack.c.l.b16 %v1633
  %v1775 = vunpack.c.h.b16 %v1633
  %v1776 = vunpack.c.l.b16 %v1634
  %v1777 = vunpack.c.h.b16 %v1634
  %v1778 = vunpack.c.l.b16 %v1635
  %v1779 = vunpack.c.h.b16 %v1635
  %v1780 = vunpack.c.l.b16 %v1636
  %v1781 = vunpack.c.h.b16 %v1636
  %v1782 = vunpack.c.l.b16 %v1637
  %v1783 = vunpack.c.h.b16 %v1637
  %v1784 = vunpack.c.l.b16 %v1638
  %v1785 = vunpack.c.h.b16 %v1638
  %v1786 = vunpack.c.l.b16 %v1639
  %v1787 = vunpack.c.h.b16 %v1639
  %v1788 = vunpack.c.l.b16 %v1640
  %v1789 = vunpack.c.h.b16 %v1640
  %v1790 = vunpack.c.l.b16 %v1641
  %v1791 = vunpack.c.h.b16 %v1641
  %v1792 = vunpack.c.l.b16 %v1642
  %v1793 = vunpack.c.h.b16 %v1642
  %v1794 = vunpack.c.l.b16 %v1643
  %v1795 = vunpack.c.h.b16 %v1643
  %v1796 = vunpack.c.l.b16 %v1644
  %v1797 = vunpack.c.h.b16 %v1644
  %v1798 = vunpack.c.l.b16 %v1645
  %v1799 = vunpack.c.h.b16 %v1645
  %v1800 = vunpack.c.l.b16 %v1646
  %v1801 = vunpack.c.h.b16 %v1646
  %v1802 = vunpack.c.l.b16 %v1647
  %v1803 = vunpack.c.h.b16 %v1647
  %v1804 = vunpack.c.l.b16 %v1648
  %v1805 = vunpack.c.h.b16 %v1648
  %v1806 = vunpack.c.l.b16 %v1649
  %v1807 = vunpack.c.h.b16 %v1649
  %v1808 = vunpack.c.l.b16 %v1650
  %v1809 = vunpack.c.h.b16 %v1650
  %v1810 = vunpack.c.l.b16 %v1651
  %v1811 = vunpack.c.h.b16 %v1651
  %v1812 = vunpack.c.l.b16 %v1652
  %v1813 = vunpack.c.h.b16 %v1652
  %v1814 = vunpack.c.l.b16 %v1653
  %v1815 = vunpack.c.h.b16 %v1653
  %v1816 = vpack.c.b16 %v1718, %v1716
  %v1817 = vpack.c.b16 %v1719, %v1717
  %v1818 = vpack.c.b16 %v1722, %v1720
  %v1819 = vpack.c.b16 %v1723, %v1721
  %v1820 = vpack.c.b16 %v1726, %v1724
  %v1821 = vpack.c.b16 %v1727, %v1725
  %v1822 = vpack.c.b16 %v1730, %v1728
  %v1823 = vpack.c.b16 %v1731, %v1729
  %v1824 = vpack.c.b16 %v1734, %v1732
  %v1825 = vpack.c.b16 %v1735, %v1733
  %v1826 = vpack.c.b16 %v1738, %v1736
  %v1827 = vpack.c.b16 %v1739, %v1737
  %v1828 = vpack.c.b16 %v1742, %v1740
  %v1829 = vpack.c.b16 %v1743, %v1741
  %v1830 = vpack.c.b16 %v1746, %v1744
  %v1831 = vpack.c.b16 %v1747, %v1745
  %v1832 = vpack.c.b16 %v1750, %v1748
  %v1833 = vpack.c.b16 %v1751, %v1749
  %v1834 = vpack.c.b16 %v1754, %v1752
  %v1835 = vpack.c.b16 %v1755, %v1753
  %v1836 = vpack.c.b16 %v1758, %v1756
  %v1837 = vpack.c.b16 %v1759, %v1757
  %v1838 = vpack.c.b16 %v1762, %v1760
  %v1839 = vpack.c.b16 %v1763, %v1761
  %v1840 = vpack.c.b16 %v1766, %v1764
  %v1841 = vpack.c.b16 %v1767, %v1765
  %v1842 = vpack.c.b16 %v1770, %v1768
  %v1843 = vpack.c.b16 %v1771, %v1769
  %v1844 = vpack.c.b16 %v1774, %v1772
  %v1845 = vpack.c.b16 %v1775, %v1773
  %v1846 = vpack.c.b16 %v1778, %v1776
  %v1847 = vpack.c.b16 %v1779, %v1777
  %v1848 = vpack.c.b16 %v1782, %v1780
  %v1849 = vpack.c.b16 %v1783, %v1781
  %v1850 = vpack.c.b16 %v1786, %v1784
  %v1851 = vpack.c.b16 %v1787, %v1785
  %v1852 = vpack.c.b16 %v1790, %v1788
  %v1853 = vpack.c.b16 %v1791, %v1789
  %v1854 = vpack.c.b16 %v1794, %v1792
  %v1855 = vpack.c.b16 %v1795, %v1793
  %v1856 = vpack.c.b16 %v1798, %v1796
  %v1857 = vpack.c.b16 %v1799, %v1797
  %v1858 = vpack.c.b16 %v1802, %v1800
  %v1859 = vpack.c.b16 %v1803, %v1801
  %v1860 = vpack.c.b16 %v1806, %v1804
  %v1861 = vpack.c.b16 %v1807, %v1805
  %v1862 = vpack.c.b16 %v1810, %v1808
  %v1863 = vpack.c.b16 %v1811, %v1809
  %v1864 = vpack.c.b16 %v1814, %v1812
  %v1865 = vpack.c.b16 %v1815, %v1813
  %v1917 = vsel %vm1264, %v1603, 0
  %1919 = vmatprep.subr.bf16.mxu0 %v1831
  %1920 = vmatpush1.bf16.msra.mxu0 %v1830
  %1921 = vmatprep.subr.bf16.mxu0 %v1829
  %1922 = vmatpush1.bf16.msra.mxu0 %v1828
  %1923 = vmatprep.subr.bf16.mxu0 %v1827
  %1924 = vmatpush1.bf16.msra.mxu0 %v1826
  %1925 = vmatprep.subr.bf16.mxu0 %v1825
  %1926 = vmatpush1.bf16.msra.mxu0 %v1824
  %1927 = vmatprep.subr.bf16.mxu0 %v1823
  %1928 = vmatpush1.bf16.msra.mxu0 %v1822
  %1929 = vmatprep.subr.bf16.mxu0 %v1821
  %1930 = vmatpush1.bf16.msra.mxu0 %v1820
  %1931 = vmatprep.subr.bf16.mxu0 %v1819
  %1932 = vmatpush1.bf16.msra.mxu0 %v1818
  %1933 = vmatprep.subr.bf16.mxu0 %v1817
  %1934 = vmatpush1.bf16.msra.mxu0 %v1816
  %1935 = vmatprep.subr.bf16.mxu0 %v1847
  %1936 = vmatpush2.bf16.msra.mxu0 %v1846
  %1937 = vmatprep.subr.bf16.mxu0 %v1845
  %1938 = vmatpush2.bf16.msra.mxu0 %v1844
  %1939 = vmatprep.subr.bf16.mxu0 %v1843
  %1940 = vmatpush2.bf16.msra.mxu0 %v1842
  %1941 = vmatprep.subr.bf16.mxu0 %v1841
  %1942 = vmatpush2.bf16.msra.mxu0 %v1840
  %1943 = vmatprep.subr.bf16.mxu0 %v1839
  %1944 = vmatpush2.bf16.msra.mxu0 %v1838
  %1945 = vmatprep.subr.bf16.mxu0 %v1837
  %1946 = vmatpush2.bf16.msra.mxu0 %v1836
  %1947 = vmatprep.subr.bf16.mxu0 %v1835
  %1948 = vmatpush2.bf16.msra.mxu0 %v1834
  %1949 = vmatprep.subr.bf16.mxu0 %v1833
  %1950 = vmatpush2.bf16.msra.mxu0 %v1832
  %1951 = vmatprep.mubr.bf16.mxu0 %v1601
  %1952 = vmatmul.mubr.bf16.gmra.mxu0 %v1600
  %v1953 = vpop.f32.mrf.mxu0
  %v1954 = vadd.f32 %v1659, %v1953
  %v1955 = vpop.f32.mrf.mxu0
  %v1956 = vadd.f32 %v1663, %v1955
  %v1957 = vpop.f32.mrf.mxu0
  %v1958 = vpop.f32.mrf.mxu0
  %1959 = vdwg.mxu0
  %1960 = vmatprep.subr.bf16.mxu0 %v1863
  %1961 = vmatpush1.bf16.msra.mxu0 %v1862
  %1962 = vmatprep.subr.bf16.mxu0 %v1861
  %1963 = vmatpush1.bf16.msra.mxu0 %v1860
  %1964 = vmatprep.subr.bf16.mxu0 %v1859
  %1965 = vmatpush1.bf16.msra.mxu0 %v1858
  %1966 = vmatprep.subr.bf16.mxu0 %v1857
  %1967 = vmatpush1.bf16.msra.mxu0 %v1856
  %1968 = vmatprep.subr.bf16.mxu0 %v1855
  %1969 = vmatpush1.bf16.msra.mxu0 %v1854
  %1970 = vmatprep.subr.bf16.mxu0 %v1853
  %1971 = vmatpush1.bf16.msra.mxu0 %v1852
  %1972 = vmatprep.subr.bf16.mxu0 %v1851
  %1973 = vmatpush1.bf16.msra.mxu0 %v1850
  %1974 = vmatprep.subr.bf16.mxu0 %v1849
  %1975 = vmatpush1.bf16.msra.mxu0 %v1848
  %1976 = vmatprep.subr.bf16.mxu0 0
  %1977 = vmatpush2.bf16.msra.mxu0 0
  %1978 = vmatprep.subr.bf16.mxu0 0
  %1979 = vmatpush2.bf16.msra.mxu0 0
  %1980 = vmatprep.subr.bf16.mxu0 0
  %1981 = vmatpush2.bf16.msra.mxu0 0
  %1982 = vmatprep.subr.bf16.mxu0 0
  %1983 = vmatpush2.bf16.msra.mxu0 0
  %1984 = vmatprep.subr.bf16.mxu0 0
  %1985 = vmatpush2.bf16.msra.mxu0 0
  %1986 = vmatprep.subr.bf16.mxu0 0
  %1987 = vmatpush2.bf16.msra.mxu0 0
  %1988 = vmatprep.subr.bf16.mxu0 0
  %1989 = vmatpush2.bf16.msra.mxu0 0
  %1990 = vmatprep.subr.bf16.mxu0 %v1865
  %1991 = vmatpush2.bf16.msra.mxu0 %v1864
  %1992 = vmatprep.mubr.bf16.mxu0 %v1917
  %1993 = vmatmul.mubr.bf16.gmra.mxu0 %v1602
  %v1994 = vpop.f32.mrf.mxu0
  %v1995 = vadd.f32 %v1954, %v1994
  %v1996 = vpop.f32.mrf.mxu0
  %v1997 = vadd.f32 %v1956, %v1996
  %v1998 = vpop.f32.mrf.mxu0
  %v1999 = vpop.f32.mrf.mxu0
  %2000 = vdwg.mxu0
  %v2001 = vmul.f32 %v1997, 0.5
  %v2002 = vmul.f32 %v2001, 1.442695
  %v2003 = vpow.pop %v2002
  %v2004 = vld [vmem:[%s1] sm:$0xff]
  %v2005 = vmul.f32 %v2004, %v2003
  %v2006 = vadd.f32 %v1995, %v2005
  %v2007 = vpack.c.bf16 %v2006, %v2006
  %v2008 = vld [vmem:[%s6] sm:$0xff]
  %v2009 = vld [vmem:[%s6 + $0x8] sm:$0xff]
  %v2010 = vld [vmem:[%s6 + $0x10] sm:$0xff]
  %v2011 = vld [vmem:[%s6 + $0x18] sm:$0xff]
  %v2012 = vld [vmem:[%s6 + $0x20] sm:$0xff]
  %v2013 = vld [vmem:[%s6 + $0x28] sm:$0xff]
  %v2014 = vld [vmem:[%s6 + $0x30] sm:$0xff]
  %v2015 = vld [vmem:[%s6 + $0x38] sm:$0xff]
  %v2016 = vld [vmem:[%s6 + $0x40] sm:$0xff]
  %v2017 = vld [vmem:[%s6 + $0x48] sm:$0xff]
  %v2018 = vld [vmem:[%s6 + $0x50] sm:$0xff]
  %v2019 = vld [vmem:[%s6 + $0x58] sm:$0xff]
  %v2020 = vld [vmem:[%s6 + $0x60] sm:$0xff]
  %v2021 = vld [vmem:[%s6 + $0x68] sm:$0xff]
  %v2022 = vld [vmem:[%s6 + $0x70] sm:$0xff]
  %v2023 = vld [vmem:[%s6 + $0x78] sm:$0xff]
  %v2024 = vld [vmem:[%s6 + $0x80] sm:$0xff]
  %v2025 = vld [vmem:[%s6 + $0x88] sm:$0xff]
  %v2026 = vld [vmem:[%s6 + $0x90] sm:$0xff]
  %v2027 = vld [vmem:[%s6 + $0x98] sm:$0xff]
  %v2028 = vld [vmem:[%s6 + $0xa0] sm:$0xff]
  %v2029 = vld [vmem:[%s6 + $0xa8] sm:$0xff]
  %v2030 = vld [vmem:[%s6 + $0xb0] sm:$0xff]
  %v2031 = vld [vmem:[%s6 + $0xb8] sm:$0xff]
  %v2032 = vld [vmem:[%s6 + $0xc0] sm:$0xff]
  %v2033 = vld [vmem:[%s6 + $0xc8] sm:$0xff]
  %v2034 = vld [vmem:[%s6 + $0xd0] sm:$0xff]
  %v2035 = vld [vmem:[%s6 + $0xd8] sm:$0xff]
  %v2036 = vld [vmem:[%s6 + $0xe0] sm:$0xff]
  %v2037 = vld [vmem:[%s6 + $0xe8] sm:$0xff]
  %v2038 = vld [vmem:[%s6 + $0xf0] sm:$0xff]
  %v2039 = vld [vmem:[%s6 + $0xf8] sm:$0xff]
  %v2040 = vld [vmem:[%s7] sm:$0xf]
  %v2042 = vlaneseq
  %v2043 = vshrl.u32 %v2042, 7
  %v2044 = vsub.s32 0, %v2043
  %v2045 = vrot.slane %v2040, %v2044
  %v2046 = vlaneseq
  %v2047 = vshrl.u32 %v2046, 7
  %v2048 = vsub.s32 1, %v2047
  %v2049 = vrot.slane %v2040, %v2048
  %v2050 = vlaneseq
  %v2051 = vshrl.u32 %v2050, 7
  %v2052 = vsub.s32 2, %v2051
  %v2053 = vrot.slane %v2040, %v2052
  %v2054 = vlaneseq
  %v2055 = vshrl.u32 %v2054, 7
  %v2056 = vsub.s32 3, %v2055
  %v2057 = vrot.slane %v2040, %v2056
  %v2094 = vunpack.c.l.b16 %v2008
  %v2095 = vunpack.c.h.b16 %v2008
  %v2096 = vunpack.c.l.b16 %v2009
  %v2097 = vunpack.c.h.b16 %v2009
  %v2098 = vunpack.c.l.b16 %v2010
  %v2099 = vunpack.c.h.b16 %v2010
  %v2100 = vunpack.c.l.b16 %v2011
  %v2101 = vunpack.c.h.b16 %v2011
  %v2102 = vunpack.c.l.b16 %v2012
  %v2103 = vunpack.c.h.b16 %v2012
  %v2104 = vunpack.c.l.b16 %v2013
  %v2105 = vunpack.c.h.b16 %v2013
  %v2106 = vunpack.c.l.b16 %v2014
  %v2107 = vunpack.c.h.b16 %v2014
  %v2108 = vunpack.c.l.b16 %v2015
  %v2109 = vunpack.c.h.b16 %v2015
  %v2110 = vunpack.c.l.b16 %v2016
  %v2111 = vunpack.c.h.b16 %v2016
  %v2112 = vunpack.c.l.b16 %v2017
  %v2113 = vunpack.c.h.b16 %v2017
  %v2114 = vunpack.c.l.b16 %v2018
  %v2115 = vunpack.c.h.b16 %v2018
  %v2116 = vunpack.c.l.b16 %v2019
  %v2117 = vunpack.c.h.b16 %v2019
  %v2118 = vunpack.c.l.b16 %v2020
  %v2119 = vunpack.c.h.b16 %v2020
  %v2120 = vunpack.c.l.b16 %v2021
  %v2121 = vunpack.c.h.b16 %v2021
  %v2122 = vunpack.c.l.b16 %v2022
  %v2123 = vunpack.c.h.b16 %v2022
  %v2124 = vunpack.c.l.b16 %v2023
  %v2125 = vunpack.c.h.b16 %v2023
  %v2126 = vunpack.c.l.b16 %v2024
  %v2127 = vunpack.c.h.b16 %v2024
  %v2128 = vunpack.c.l.b16 %v2025
  %v2129 = vunpack.c.h.b16 %v2025
  %v2130 = vunpack.c.l.b16 %v2026
  %v2131 = vunpack.c.h.b16 %v2026
  %v2132 = vunpack.c.l.b16 %v2027
  %v2133 = vunpack.c.h.b16 %v2027
  %v2134 = vunpack.c.l.b16 %v2028
  %v2135 = vunpack.c.h.b16 %v2028
  %v2136 = vunpack.c.l.b16 %v2029
  %v2137 = vunpack.c.h.b16 %v2029
  %v2138 = vunpack.c.l.b16 %v2030
  %v2139 = vunpack.c.h.b16 %v2030
  %v2140 = vunpack.c.l.b16 %v2031
  %v2141 = vunpack.c.h.b16 %v2031
  %v2142 = vunpack.c.l.b16 %v2032
  %v2143 = vunpack.c.h.b16 %v2032
  %v2144 = vunpack.c.l.b16 %v2033
  %v2145 = vunpack.c.h.b16 %v2033
  %v2146 = vunpack.c.l.b16 %v2034
  %v2147 = vunpack.c.h.b16 %v2034
  %v2148 = vunpack.c.l.b16 %v2035
  %v2149 = vunpack.c.h.b16 %v2035
  %v2150 = vunpack.c.l.b16 %v2036
  %v2151 = vunpack.c.h.b16 %v2036
  %v2152 = vunpack.c.l.b16 %v2037
  %v2153 = vunpack.c.h.b16 %v2037
  %v2154 = vunpack.c.l.b16 %v2038
  %v2155 = vunpack.c.h.b16 %v2038
  %v2156 = vunpack.c.l.b16 %v2039
  %v2157 = vunpack.c.h.b16 %v2039
  %v2158 = vpack.c.b16 %v2098, %v2094
  %v2159 = vpack.c.b16 %v2099, %v2095
  %v2160 = vpack.c.b16 %v2100, %v2096
  %v2161 = vpack.c.b16 %v2101, %v2097
  %v2162 = vpack.c.b16 %v2106, %v2102
  %v2163 = vpack.c.b16 %v2107, %v2103
  %v2164 = vpack.c.b16 %v2108, %v2104
  %v2165 = vpack.c.b16 %v2109, %v2105
  %v2166 = vpack.c.b16 %v2114, %v2110
  %v2167 = vpack.c.b16 %v2115, %v2111
  %v2168 = vpack.c.b16 %v2116, %v2112
  %v2169 = vpack.c.b16 %v2117, %v2113
  %v2170 = vpack.c.b16 %v2122, %v2118
  %v2171 = vpack.c.b16 %v2123, %v2119
  %v2172 = vpack.c.b16 %v2124, %v2120
  %v2173 = vpack.c.b16 %v2125, %v2121
  %v2174 = vpack.c.b16 %v2130, %v2126
  %v2175 = vpack.c.b16 %v2131, %v2127
  %v2176 = vpack.c.b16 %v2132, %v2128
  %v2177 = vpack.c.b16 %v2133, %v2129
  %v2178 = vpack.c.b16 %v2138, %v2134
  %v2179 = vpack.c.b16 %v2139, %v2135
  %v2180 = vpack.c.b16 %v2140, %v2136
  %v2181 = vpack.c.b16 %v2141, %v2137
  %v2182 = vpack.c.b16 %v2146, %v2142
  %v2183 = vpack.c.b16 %v2147, %v2143
  %v2184 = vpack.c.b16 %v2148, %v2144
  %v2185 = vpack.c.b16 %v2149, %v2145
  %v2186 = vpack.c.b16 %v2154, %v2150
  %v2187 = vpack.c.b16 %v2155, %v2151
  %v2188 = vpack.c.b16 %v2156, %v2152
  %v2189 = vpack.c.b16 %v2157, %v2153
  %2222 = vmatprep.subr.bf16.mxu0 %v2187
  %2223 = vmatpush1.bf16.msra.mxu0 %v2186
  %2224 = vmatprep.subr.bf16.mxu0 %v2183
  %2225 = vmatpush1.bf16.msra.mxu0 %v2182
  %2226 = vmatprep.subr.bf16.mxu0 %v2179
  %2227 = vmatpush1.bf16.msra.mxu0 %v2178
  %2228 = vmatprep.subr.bf16.mxu0 %v2175
  %2229 = vmatpush1.bf16.msra.mxu0 %v2174
  %2230 = vmatprep.subr.bf16.mxu0 %v2171
  %2231 = vmatpush1.bf16.msra.mxu0 %v2170
  %2232 = vmatprep.subr.bf16.mxu0 %v2167
  %2233 = vmatpush1.bf16.msra.mxu0 %v2166
  %2234 = vmatprep.subr.bf16.mxu0 %v2163
  %2235 = vmatpush1.bf16.msra.mxu0 %v2162
  %2236 = vmatprep.subr.bf16.mxu0 %v2159
  %2237 = vmatpush1.bf16.msra.mxu0 %v2158
  %2238 = vmatprep.subr.bf16.mxu0 0
  %2239 = vmatpush2.bf16.msra.mxu0 0
  %2240 = vmatprep.subr.bf16.mxu0 0
  %2241 = vmatpush2.bf16.msra.mxu0 0
  %2242 = vmatprep.subr.bf16.mxu0 0
  %2243 = vmatpush2.bf16.msra.mxu0 0
  %2244 = vmatprep.subr.bf16.mxu0 0
  %2245 = vmatpush2.bf16.msra.mxu0 0
  %2246 = vmatprep.subr.bf16.mxu0 0
  %2247 = vmatpush2.bf16.msra.mxu0 0
  %2248 = vmatprep.subr.bf16.mxu0 0
  %2249 = vmatpush2.bf16.msra.mxu0 0
  %2250 = vmatprep.subr.bf16.mxu0 0
  %2251 = vmatpush2.bf16.msra.mxu0 0
  %2252 = vmatprep.subr.bf16.mxu0 0
  %2253 = vmatpush2.bf16.msra.mxu0 0
  %2254 = vmatprep.mubr.bf16.mxu0 0
  %2255 = vmatmul.mubr.bf16.gmra.mxu0 %v2007
  %v2256 = vpop.f32.mrf.mxu0
  %v2257 = vadd.f32 %v2045, %v2256
  %v2258 = vpop.f32.mrf.mxu0
  %v2259 = vadd.f32 %v2049, %v2258
  %v2260 = vpop.f32.mrf.mxu0
  %v2261 = vpop.f32.mrf.mxu0
  %2262 = vdwg.mxu0
  %2263 = vmatprep.subr.bf16.mxu0 %v2189
  %2264 = vmatpush1.bf16.msra.mxu0 %v2188
  %2265 = vmatprep.subr.bf16.mxu0 %v2185
  %2266 = vmatpush1.bf16.msra.mxu0 %v2184
  %2267 = vmatprep.subr.bf16.mxu0 %v2181
  %2268 = vmatpush1.bf16.msra.mxu0 %v2180
  %2269 = vmatprep.subr.bf16.mxu0 %v2177
  %2270 = vmatpush1.bf16.msra.mxu0 %v2176
  %2271 = vmatprep.subr.bf16.mxu0 %v2173
  %2272 = vmatpush1.bf16.msra.mxu0 %v2172
  %2273 = vmatprep.subr.bf16.mxu0 %v2169
  %2274 = vmatpush1.bf16.msra.mxu0 %v2168
  %2275 = vmatprep.subr.bf16.mxu0 %v2165
  %2276 = vmatpush1.bf16.msra.mxu0 %v2164
  %2277 = vmatprep.subr.bf16.mxu0 %v2161
  %2278 = vmatpush1.bf16.msra.mxu0 %v2160
  %2279 = vmatprep.subr.bf16.mxu0 0
  %2280 = vmatpush2.bf16.msra.mxu0 0
  %2281 = vmatprep.subr.bf16.mxu0 0
  %2282 = vmatpush2.bf16.msra.mxu0 0
  %2283 = vmatprep.subr.bf16.mxu0 0
  %2284 = vmatpush2.bf16.msra.mxu0 0
  %2285 = vmatprep.subr.bf16.mxu0 0
  %2286 = vmatpush2.bf16.msra.mxu0 0
  %2287 = vmatprep.subr.bf16.mxu0 0
  %2288 = vmatpush2.bf16.msra.mxu0 0
  %2289 = vmatprep.subr.bf16.mxu0 0
  %2290 = vmatpush2.bf16.msra.mxu0 0
  %2291 = vmatprep.subr.bf16.mxu0 0
  %2292 = vmatpush2.bf16.msra.mxu0 0
  %2293 = vmatprep.subr.bf16.mxu0 0
  %2294 = vmatpush2.bf16.msra.mxu0 0
  %2295 = vmatprep.mubr.bf16.mxu0 0
  %2296 = vmatmul.mubr.bf16.gmra.mxu0 %v2007
  %v2297 = vpop.f32.mrf.mxu0
  %v2298 = vadd.f32 %v2053, %v2297
  %v2299 = vpop.f32.mrf.mxu0
  %v2300 = vadd.f32 %v2057, %v2299
  %v2301 = vpop.f32.mrf.mxu0
  %v2302 = vpop.f32.mrf.mxu0
  %2303 = vdwg.mxu0
  %v2304 = vmax.f32 %v2257, 0.0
  %v2305 = vmax.f32 %v2259, 0.0
  %v2306 = vmax.f32 %v2298, 0.0
  %v2307 = vmax.f32 %v2300, 0.0
  %v2308 = vpack.c.bf16 %v2304, %v2304
  %v2309 = vpack.c.bf16 %v2305, %v2305
  %v2310 = vpack.c.bf16 %v2306, %v2306
  %v2311 = vpack.c.bf16 %v2307, %v2307
  %v2312 = vld [vmem:[%s8] sm:$0xff]
  %v2313 = vld [vmem:[%s8 + $0x8] sm:$0xff]
  %v2314 = vld [vmem:[%s8 + $0x10] sm:$0xff]
  %v2315 = vld [vmem:[%s8 + $0x18] sm:$0xf]
  %v2316 = vld [vmem:[%s8 + $0x1c] sm:$0xff]
  %v2317 = vld [vmem:[%s8 + $0x24] sm:$0xff]
  %v2318 = vld [vmem:[%s8 + $0x2c] sm:$0xff]
  %v2319 = vld [vmem:[%s8 + $0x34] sm:$0xf]
  %v2320 = vld [vmem:[%s8 + $0x38] sm:$0xff]
  %v2321 = vld [vmem:[%s8 + $0x40] sm:$0xff]
  %v2322 = vld [vmem:[%s8 + $0x48] sm:$0xff]
  %v2323 = vld [vmem:[%s8 + $0x50] sm:$0xf]
  %v2324 = vld [vmem:[%s8 + $0x54] sm:$0xff]
  %v2325 = vld [vmem:[%s8 + $0x5c] sm:$0xff]
  %v2326 = vld [vmem:[%s8 + $0x64] sm:$0xff]
  %v2327 = vld [vmem:[%s8 + $0x6c] sm:$0xf]
  %v2328 = vld [vmem:[%s8 + $0x70] sm:$0xff]
  %v2329 = vld [vmem:[%s8 + $0x78] sm:$0xff]
  %v2330 = vld [vmem:[%s8 + $0x80] sm:$0xff]
  %v2331 = vld [vmem:[%s8 + $0x88] sm:$0xf]
  %v2332 = vld [vmem:[%s8 + $0x8c] sm:$0xff]
  %v2333 = vld [vmem:[%s8 + $0x94] sm:$0xff]
  %v2334 = vld [vmem:[%s8 + $0x9c] sm:$0xff]
  %v2335 = vld [vmem:[%s8 + $0xa4] sm:$0xf]
  %v2336 = vld [vmem:[%s8 + $0xa8] sm:$0xff]
  %v2337 = vld [vmem:[%s8 + $0xb0] sm:$0xff]
  %v2338 = vld [vmem:[%s8 + $0xb8] sm:$0xff]
  %v2339 = vld [vmem:[%s8 + $0xc0] sm:$0xf]
  %v2340 = vld [vmem:[%s8 + $0xc4] sm:$0xff]
  %v2341 = vld [vmem:[%s8 + $0xcc] sm:$0xff]
  %v2342 = vld [vmem:[%s8 + $0xd4] sm:$0xff]
  %v2343 = vld [vmem:[%s8 + $0xdc] sm:$0xf]
  %v2344 = vld [vmem:[%s8 + $0xe0] sm:$0xff]
  %v2345 = vld [vmem:[%s8 + $0xe8] sm:$0xff]
  %v2346 = vld [vmem:[%s8 + $0xf0] sm:$0xff]
  %v2347 = vld [vmem:[%s8 + $0xf8] sm:$0xf]
  %v2348 = vld [vmem:[%s8 + $0xfc] sm:$0xff]
  %v2349 = vld [vmem:[%s8 + $0x104] sm:$0xff]
  %v2350 = vld [vmem:[%s8 + $0x10c] sm:$0xff]
  %v2351 = vld [vmem:[%s8 + $0x114] sm:$0xf]
  %v2352 = vld [vmem:[%s8 + $0x118] sm:$0xff]
  %v2353 = vld [vmem:[%s8 + $0x120] sm:$0xff]
  %v2354 = vld [vmem:[%s8 + $0x128] sm:$0xff]
  %v2355 = vld [vmem:[%s8 + $0x130] sm:$0xf]
  %v2356 = vld [vmem:[%s8 + $0x134] sm:$0xff]
  %v2357 = vld [vmem:[%s8 + $0x13c] sm:$0xff]
  %v2358 = vld [vmem:[%s8 + $0x144] sm:$0xff]
  %v2359 = vld [vmem:[%s8 + $0x14c] sm:$0xf]
  %v2360 = vld [vmem:[%s8 + $0x150] sm:$0xff]
  %v2361 = vld [vmem:[%s8 + $0x158] sm:$0xff]
  %v2362 = vld [vmem:[%s8 + $0x160] sm:$0xff]
  %v2363 = vld [vmem:[%s8 + $0x168] sm:$0xf]
  %v2364 = vld [vmem:[%s8 + $0x16c] sm:$0xff]
  %v2365 = vld [vmem:[%s8 + $0x174] sm:$0xff]
  %v2366 = vld [vmem:[%s8 + $0x17c] sm:$0xff]
  %v2367 = vld [vmem:[%s8 + $0x184] sm:$0xf]
  %v2368 = vld [vmem:[%s8 + $0x188] sm:$0xff]
  %v2369 = vld [vmem:[%s8 + $0x190] sm:$0xff]
  %v2370 = vld [vmem:[%s8 + $0x198] sm:$0xff]
  %v2371 = vld [vmem:[%s8 + $0x1a0] sm:$0xf]
  %v2372 = vld [vmem:[%s8 + $0x1a4] sm:$0xff]
  %v2373 = vld [vmem:[%s8 + $0x1ac] sm:$0xff]
  %v2374 = vld [vmem:[%s8 + $0x1b4] sm:$0xff]
  %v2375 = vld [vmem:[%s8 + $0x1bc] sm:$0xf]
  %v2376 = vld [vmem:[%s8 + $0x1c0] sm:$0xff]
  %v2377 = vld [vmem:[%s8 + $0x1c8] sm:$0xff]
  %v2378 = vld [vmem:[%s8 + $0x1d0] sm:$0xff]
  %v2379 = vld [vmem:[%s8 + $0x1d8] sm:$0xf]
  %v2380 = vld [vmem:[%s8 + $0x1dc] sm:$0xff]
  %v2381 = vld [vmem:[%s8 + $0x1e4] sm:$0xff]
  %v2382 = vld [vmem:[%s8 + $0x1ec] sm:$0xff]
  %v2383 = vld [vmem:[%s8 + $0x1f4] sm:$0xf]
  %v2384 = vld [vmem:[%s8 + $0x1f8] sm:$0xff]
  %v2385 = vld [vmem:[%s8 + $0x200] sm:$0xff]
  %v2386 = vld [vmem:[%s8 + $0x208] sm:$0xff]
  %v2387 = vld [vmem:[%s8 + $0x210] sm:$0xf]
  %v2388 = vld [vmem:[%s8 + $0x214] sm:$0xff]
  %v2389 = vld [vmem:[%s8 + $0x21c] sm:$0xff]
  %v2390 = vld [vmem:[%s8 + $0x224] sm:$0xff]
  %v2391 = vld [vmem:[%s8 + $0x22c] sm:$0xf]
  %v2392 = vld [vmem:[%s8 + $0x230] sm:$0xff]
  %v2393 = vld [vmem:[%s8 + $0x238] sm:$0xff]
  %v2394 = vld [vmem:[%s8 + $0x240] sm:$0xff]
  %v2395 = vld [vmem:[%s8 + $0x248] sm:$0xf]
  %v2396 = vld [vmem:[%s8 + $0x24c] sm:$0xff]
  %v2397 = vld [vmem:[%s8 + $0x254] sm:$0xff]
  %v2398 = vld [vmem:[%s8 + $0x25c] sm:$0xff]
  %v2399 = vld [vmem:[%s8 + $0x264] sm:$0xf]
  %v2400 = vld [vmem:[%s8 + $0x268] sm:$0xff]
  %v2401 = vld [vmem:[%s8 + $0x270] sm:$0xff]
  %v2402 = vld [vmem:[%s8 + $0x278] sm:$0xff]
  %v2403 = vld [vmem:[%s8 + $0x280] sm:$0xf]
  %v2404 = vld [vmem:[%s8 + $0x284] sm:$0xff]
  %v2405 = vld [vmem:[%s8 + $0x28c] sm:$0xff]
  %v2406 = vld [vmem:[%s8 + $0x294] sm:$0xff]
  %v2407 = vld [vmem:[%s8 + $0x29c] sm:$0xf]
  %v2408 = vld [vmem:[%s8 + $0x2a0] sm:$0xff]
  %v2409 = vld [vmem:[%s8 + $0x2a8] sm:$0xff]
  %v2410 = vld [vmem:[%s8 + $0x2b0] sm:$0xff]
  %v2411 = vld [vmem:[%s8 + $0x2b8] sm:$0xf]
  %v2412 = vld [vmem:[%s8 + $0x2bc] sm:$0xff]
  %v2413 = vld [vmem:[%s8 + $0x2c4] sm:$0xff]
  %v2414 = vld [vmem:[%s8 + $0x2cc] sm:$0xff]
  %v2415 = vld [vmem:[%s8 + $0x2d4] sm:$0xf]
  %v2416 = vld [vmem:[%s8 + $0x2d8] sm:$0xff]
  %v2417 = vld [vmem:[%s8 + $0x2e0] sm:$0xff]
  %v2418 = vld [vmem:[%s8 + $0x2e8] sm:$0xff]
  %v2419 = vld [vmem:[%s8 + $0x2f0] sm:$0xf]
  %v2420 = vld [vmem:[%s8 + $0x2f4] sm:$0xff]
  %v2421 = vld [vmem:[%s8 + $0x2fc] sm:$0xff]
  %v2422 = vld [vmem:[%s8 + $0x304] sm:$0xff]
  %v2423 = vld [vmem:[%s8 + $0x30c] sm:$0xf]
  %v2424 = vld [vmem:[%s8 + $0x310] sm:$0xff]
  %v2425 = vld [vmem:[%s8 + $0x318] sm:$0xff]
  %v2426 = vld [vmem:[%s8 + $0x320] sm:$0xff]
  %v2427 = vld [vmem:[%s8 + $0x328] sm:$0xf]
  %v2428 = vld [vmem:[%s8 + $0x32c] sm:$0xff]
  %v2429 = vld [vmem:[%s8 + $0x334] sm:$0xff]
  %v2430 = vld [vmem:[%s8 + $0x33c] sm:$0xff]
  %v2431 = vld [vmem:[%s8 + $0x344] sm:$0xf]
  %v2432 = vld [vmem:[%s8 + $0x348] sm:$0xff]
  %v2433 = vld [vmem:[%s8 + $0x350] sm:$0xff]
  %v2434 = vld [vmem:[%s8 + $0x358] sm:$0xff]
  %v2435 = vld [vmem:[%s8 + $0x360] sm:$0xf]
  %v2436 = vld [vmem:[%s8 + $0x364] sm:$0xff]
  %v2437 = vld [vmem:[%s8 + $0x36c] sm:$0xff]
  %v2438 = vld [vmem:[%s8 + $0x374] sm:$0xff]
  %v2439 = vld [vmem:[%s8 + $0x37c] sm:$0xf]
  %v2440 = vld [vmem:[%s8 + $0x380] sm:$0xff]
  %v2441 = vld [vmem:[%s8 + $0x388] sm:$0xff]
  %v2442 = vld [vmem:[%s8 + $0x390] sm:$0xff]
  %v2443 = vld [vmem:[%s8 + $0x398] sm:$0xf]
  %v2444 = vld [vmem:[%s8 + $0x39c] sm:$0xff]
  %v2445 = vld [vmem:[%s8 + $0x3a4] sm:$0xff]
  %v2446 = vld [vmem:[%s8 + $0x3ac] sm:$0xff]
  %v2447 = vld [vmem:[%s8 + $0x3b4] sm:$0xf]
  %v2448 = vld [vmem:[%s8 + $0x3b8] sm:$0xff]
  %v2449 = vld [vmem:[%s8 + $0x3c0] sm:$0xff]
  %v2450 = vld [vmem:[%s8 + $0x3c8] sm:$0xff]
  %v2451 = vld [vmem:[%s8 + $0x3d0] sm:$0xf]
  %v2452 = vld [vmem:[%s8 + $0x3d4] sm:$0xff]
  %v2453 = vld [vmem:[%s8 + $0x3dc] sm:$0xff]
  %v2454 = vld [vmem:[%s8 + $0x3e4] sm:$0xff]
  %v2455 = vld [vmem:[%s8 + $0x3ec] sm:$0xf]
  %v2456 = vld [vmem:[%s8 + $0x3f0] sm:$0xff]
  %v2457 = vld [vmem:[%s8 + $0x3f8] sm:$0xff]
  %v2458 = vld [vmem:[%s8 + $0x400] sm:$0xff]
  %v2459 = vld [vmem:[%s8 + $0x408] sm:$0xf]
  %v2460 = vld [vmem:[%s8 + $0x40c] sm:$0xff]
  %v2461 = vld [vmem:[%s8 + $0x414] sm:$0xff]
  %v2462 = vld [vmem:[%s8 + $0x41c] sm:$0xff]
  %v2463 = vld [vmem:[%s8 + $0x424] sm:$0xf]
  %v2464 = vld [vmem:[%s8 + $0x428] sm:$0xff]
  %v2465 = vld [vmem:[%s8 + $0x430] sm:$0xff]
  %v2466 = vld [vmem:[%s8 + $0x438] sm:$0xff]
  %v2467 = vld [vmem:[%s8 + $0x440] sm:$0xf]
  %v2468 = vld [vmem:[%s8 + $0x444] sm:$0xff]
  %v2469 = vld [vmem:[%s8 + $0x44c] sm:$0xff]
  %v2470 = vld [vmem:[%s8 + $0x454] sm:$0xff]
  %v2471 = vld [vmem:[%s8 + $0x45c] sm:$0xf]
  %v2472 = vld [vmem:[%s8 + $0x460] sm:$0xff]
  %v2473 = vld [vmem:[%s8 + $0x468] sm:$0xff]
  %v2474 = vld [vmem:[%s8 + $0x470] sm:$0xff]
  %v2475 = vld [vmem:[%s8 + $0x478] sm:$0xf]
  %v2476 = vld [vmem:[%s8 + $0x47c] sm:$0xff]
  %v2477 = vld [vmem:[%s8 + $0x484] sm:$0xff]
  %v2478 = vld [vmem:[%s8 + $0x48c] sm:$0xff]
  %v2479 = vld [vmem:[%s8 + $0x494] sm:$0xf]
  %v2480 = vld [vmem:[%s8 + $0x498] sm:$0xff]
  %v2481 = vld [vmem:[%s8 + $0x4a0] sm:$0xff]
  %v2482 = vld [vmem:[%s8 + $0x4a8] sm:$0xff]
  %v2483 = vld [vmem:[%s8 + $0x4b0] sm:$0xf]
  %v2484 = vld [vmem:[%s8 + $0x4b4] sm:$0xff]
  %v2485 = vld [vmem:[%s8 + $0x4bc] sm:$0xff]
  %v2486 = vld [vmem:[%s8 + $0x4c4] sm:$0xff]
  %v2487 = vld [vmem:[%s8 + $0x4cc] sm:$0xf]
  %v2488 = vld [vmem:[%s8 + $0x4d0] sm:$0xff]
  %v2489 = vld [vmem:[%s8 + $0x4d8] sm:$0xff]
  %v2490 = vld [vmem:[%s8 + $0x4e0] sm:$0xff]
  %v2491 = vld [vmem:[%s8 + $0x4e8] sm:$0xf]
  %v2492 = vld [vmem:[%s8 + $0x4ec] sm:$0xff]
  %v2493 = vld [vmem:[%s8 + $0x4f4] sm:$0xff]
  %v2494 = vld [vmem:[%s8 + $0x4fc] sm:$0xff]
  %v2495 = vld [vmem:[%s8 + $0x504] sm:$0xf]
  %v2496 = vld [vmem:[%s8 + $0x508] sm:$0xff]
  %v2497 = vld [vmem:[%s8 + $0x510] sm:$0xff]
  %v2498 = vld [vmem:[%s8 + $0x518] sm:$0xff]
  %v2499 = vld [vmem:[%s8 + $0x520] sm:$0xf]
  %v2500 = vld [vmem:[%s8 + $0x524] sm:$0xff]
  %v2501 = vld [vmem:[%s8 + $0x52c] sm:$0xff]
  %v2502 = vld [vmem:[%s8 + $0x534] sm:$0xff]
  %v2503 = vld [vmem:[%s8 + $0x53c] sm:$0xf]
  %v2504 = vld [vmem:[%s8 + $0x540] sm:$0xff]
  %v2505 = vld [vmem:[%s8 + $0x548] sm:$0xff]
  %v2506 = vld [vmem:[%s8 + $0x550] sm:$0xff]
  %v2507 = vld [vmem:[%s8 + $0x558] sm:$0xf]
  %v2508 = vld [vmem:[%s8 + $0x55c] sm:$0xff]
  %v2509 = vld [vmem:[%s8 + $0x564] sm:$0xff]
  %v2510 = vld [vmem:[%s8 + $0x56c] sm:$0xff]
  %v2511 = vld [vmem:[%s8 + $0x574] sm:$0xf]
  %v2512 = vld [vmem:[%s9] sm:$0x7f]
  %v2514 = vlaneseq
  %v2515 = vshrl.u32 %v2514, 7
  %v2516 = vsub.s32 0, %v2515
  %v2517 = vrot.slane %v2512, %v2516
  %v2518 = vlaneseq
  %v2519 = vshrl.u32 %v2518, 7
  %v2520 = vsub.s32 1, %v2519
  %v2521 = vrot.slane %v2512, %v2520
  %v2522 = vlaneseq
  %v2523 = vshrl.u32 %v2522, 7
  %v2524 = vsub.s32 2, %v2523
  %v2525 = vrot.slane %v2512, %v2524
  %v2526 = vlaneseq
  %v2527 = vshrl.u32 %v2526, 7
  %v2528 = vsub.s32 3, %v2527
  %v2529 = vrot.slane %v2512, %v2528
  %v2530 = vlaneseq
  %v2531 = vshrl.u32 %v2530, 7
  %v2532 = vsub.s32 4, %v2531
  %v2533 = vrot.slane %v2512, %v2532
  %v2534 = vlaneseq
  %v2535 = vshrl.u32 %v2534, 7
  %v2536 = vsub.s32 5, %v2535
  %v2537 = vrot.slane %v2512, %v2536
  %v2538 = vlaneseq
  %v2539 = vshrl.u32 %v2538, 7
  %v2540 = vsub.s32 6, %v2539
  %v2541 = vrot.slane %v2512, %v2540
  %v2749 = vunpack.c.l.b16 %v2312
  %v2750 = vunpack.c.h.b16 %v2312
  %v2751 = vunpack.c.l.b16 %v2313
  %v2752 = vunpack.c.h.b16 %v2313
  %v2753 = vunpack.c.l.b16 %v2314
  %v2754 = vunpack.c.h.b16 %v2314
  %v2755 = vunpack.c.l.b16 %v2315
  %v2756 = vunpack.c.l.b16 %v2316
  %v2757 = vunpack.c.h.b16 %v2316
  %v2758 = vunpack.c.l.b16 %v2317
  %v2759 = vunpack.c.h.b16 %v2317
  %v2760 = vunpack.c.l.b16 %v2318
  %v2761 = vunpack.c.h.b16 %v2318
  %v2762 = vunpack.c.l.b16 %v2319
  %v2763 = vunpack.c.l.b16 %v2320
  %v2764 = vunpack.c.h.b16 %v2320
  %v2765 = vunpack.c.l.b16 %v2321
  %v2766 = vunpack.c.h.b16 %v2321
  %v2767 = vunpack.c.l.b16 %v2322
  %v2768 = vunpack.c.h.b16 %v2322
  %v2769 = vunpack.c.l.b16 %v2323
  %v2770 = vunpack.c.l.b16 %v2324
  %v2771 = vunpack.c.h.b16 %v2324
  %v2772 = vunpack.c.l.b16 %v2325
  %v2773 = vunpack.c.h.b16 %v2325
  %v2774 = vunpack.c.l.b16 %v2326
  %v2775 = vunpack.c.h.b16 %v2326
  %v2776 = vunpack.c.l.b16 %v2327
  %v2777 = vunpack.c.l.b16 %v2328
  %v2778 = vunpack.c.h.b16 %v2328
  %v2779 = vunpack.c.l.b16 %v2329
  %v2780 = vunpack.c.h.b16 %v2329
  %v2781 = vunpack.c.l.b16 %v2330
  %v2782 = vunpack.c.h.b16 %v2330
  %v2783 = vunpack.c.l.b16 %v2331
  %v2784 = vunpack.c.l.b16 %v2332
  %v2785 = vunpack.c.h.b16 %v2332
  %v2786 = vunpack.c.l.b16 %v2333
  %v2787 = vunpack.c.h.b16 %v2333
  %v2788 = vunpack.c.l.b16 %v2334
  %v2789 = vunpack.c.h.b16 %v2334
  %v2790 = vunpack.c.l.b16 %v2335
  %v2791 = vunpack.c.l.b16 %v2336
  %v2792 = vunpack.c.h.b16 %v2336
  %v2793 = vunpack.c.l.b16 %v2337
  %v2794 = vunpack.c.h.b16 %v2337
  %v2795 = vunpack.c.l.b16 %v2338
  %v2796 = vunpack.c.h.b16 %v2338
  %v2797 = vunpack.c.l.b16 %v2339
  %v2798 = vunpack.c.l.b16 %v2340
  %v2799 = vunpack.c.h.b16 %v2340
  %v2800 = vunpack.c.l.b16 %v2341
  %v2801 = vunpack.c.h.b16 %v2341
  %v2802 = vunpack.c.l.b16 %v2342
  %v2803 = vunpack.c.h.b16 %v2342
  %v2804 = vunpack.c.l.b16 %v2343
  %v2805 = vunpack.c.l.b16 %v2344
  %v2806 = vunpack.c.h.b16 %v2344
  %v2807 = vunpack.c.l.b16 %v2345
  %v2808 = vunpack.c.h.b16 %v2345
  %v2809 = vunpack.c.l.b16 %v2346
  %v2810 = vunpack.c.h.b16 %v2346
  %v2811 = vunpack.c.l.b16 %v2347
  %v2812 = vunpack.c.l.b16 %v2348
  %v2813 = vunpack.c.h.b16 %v2348
  %v2814 = vunpack.c.l.b16 %v2349
  %v2815 = vunpack.c.h.b16 %v2349
  %v2816 = vunpack.c.l.b16 %v2350
  %v2817 = vunpack.c.h.b16 %v2350
  %v2818 = vunpack.c.l.b16 %v2351
  %v2819 = vunpack.c.l.b16 %v2352
  %v2820 = vunpack.c.h.b16 %v2352
  %v2821 = vunpack.c.l.b16 %v2353
  %v2822 = vunpack.c.h.b16 %v2353
  %v2823 = vunpack.c.l.b16 %v2354
  %v2824 = vunpack.c.h.b16 %v2354
  %v2825 = vunpack.c.l.b16 %v2355
  %v2826 = vunpack.c.l.b16 %v2356
  %v2827 = vunpack.c.h.b16 %v2356
  %v2828 = vunpack.c.l.b16 %v2357
  %v2829 = vunpack.c.h.b16 %v2357
  %v2830 = vunpack.c.l.b16 %v2358
  %v2831 = vunpack.c.h.b16 %v2358
  %v2832 = vunpack.c.l.b16 %v2359
  %v2833 = vunpack.c.l.b16 %v2360
  %v2834 = vunpack.c.h.b16 %v2360
  %v2835 = vunpack.c.l.b16 %v2361
  %v2836 = vunpack.c.h.b16 %v2361
  %v2837 = vunpack.c.l.b16 %v2362
  %v2838 = vunpack.c.h.b16 %v2362
  %v2839 = vunpack.c.l.b16 %v2363
  %v2840 = vunpack.c.l.b16 %v2364
  %v2841 = vunpack.c.h.b16 %v2364
  %v2842 = vunpack.c.l.b16 %v2365
  %v2843 = vunpack.c.h.b16 %v2365
  %v2844 = vunpack.c.l.b16 %v2366
  %v2845 = vunpack.c.h.b16 %v2366
  %v2846 = vunpack.c.l.b16 %v2367
  %v2847 = vunpack.c.l.b16 %v2368
  %v2848 = vunpack.c.h.b16 %v2368
  %v2849 = vunpack.c.l.b16 %v2369
  %v2850 = vunpack.c.h.b16 %v2369
  %v2851 = vunpack.c.l.b16 %v2370
  %v2852 = vunpack.c.h.b16 %v2370
  %v2853 = vunpack.c.l.b16 %v2371
  %v2854 = vunpack.c.l.b16 %v2372
  %v2855 = vunpack.c.h.b16 %v2372
  %v2856 = vunpack.c.l.b16 %v2373
  %v2857 = vunpack.c.h.b16 %v2373
  %v2858 = vunpack.c.l.b16 %v2374
  %v2859 = vunpack.c.h.b16 %v2374
  %v2860 = vunpack.c.l.b16 %v2375
  %v2861 = vunpack.c.l.b16 %v2376
  %v2862 = vunpack.c.h.b16 %v2376
  %v2863 = vunpack.c.l.b16 %v2377
  %v2864 = vunpack.c.h.b16 %v2377
  %v2865 = vunpack.c.l.b16 %v2378
  %v2866 = vunpack.c.h.b16 %v2378
  %v2867 = vunpack.c.l.b16 %v2379
  %v2868 = vunpack.c.l.b16 %v2380
  %v2869 = vunpack.c.h.b16 %v2380
  %v2870 = vunpack.c.l.b16 %v2381
  %v2871 = vunpack.c.h.b16 %v2381
  %v2872 = vunpack.c.l.b16 %v2382
  %v2873 = vunpack.c.h.b16 %v2382
  %v2874 = vunpack.c.l.b16 %v2383
  %v2875 = vunpack.c.l.b16 %v2384
  %v2876 = vunpack.c.h.b16 %v2384
  %v2877 = vunpack.c.l.b16 %v2385
  %v2878 = vunpack.c.h.b16 %v2385
  %v2879 = vunpack.c.l.b16 %v2386
  %v2880 = vunpack.c.h.b16 %v2386
  %v2881 = vunpack.c.l.b16 %v2387
  %v2882 = vunpack.c.l.b16 %v2388
  %v2883 = vunpack.c.h.b16 %v2388
  %v2884 = vunpack.c.l.b16 %v2389
  %v2885 = vunpack.c.h.b16 %v2389
  %v2886 = vunpack.c.l.b16 %v2390
  %v2887 = vunpack.c.h.b16 %v2390
  %v2888 = vunpack.c.l.b16 %v2391
  %v2889 = vunpack.c.l.b16 %v2392
  %v2890 = vunpack.c.h.b16 %v2392
  %v2891 = vunpack.c.l.b16 %v2393
  %v2892 = vunpack.c.h.b16 %v2393
  %v2893 = vunpack.c.l.b16 %v2394
  %v2894 = vunpack.c.h.b16 %v2394
  %v2895 = vunpack.c.l.b16 %v2395
  %v2896 = vunpack.c.l.b16 %v2396
  %v2897 = vunpack.c.h.b16 %v2396
  %v2898 = vunpack.c.l.b16 %v2397
  %v2899 = vunpack.c.h.b16 %v2397
  %v2900 = vunpack.c.l.b16 %v2398
  %v2901 = vunpack.c.h.b16 %v2398
  %v2902 = vunpack.c.l.b16 %v2399
  %v2903 = vunpack.c.l.b16 %v2400
  %v2904 = vunpack.c.h.b16 %v2400
  %v2905 = vunpack.c.l.b16 %v2401
  %v2906 = vunpack.c.h.b16 %v2401
  %v2907 = vunpack.c.l.b16 %v2402
  %v2908 = vunpack.c.h.b16 %v2402
  %v2909 = vunpack.c.l.b16 %v2403
  %v2910 = vunpack.c.l.b16 %v2404
  %v2911 = vunpack.c.h.b16 %v2404
  %v2912 = vunpack.c.l.b16 %v2405
  %v2913 = vunpack.c.h.b16 %v2405
  %v2914 = vunpack.c.l.b16 %v2406
  %v2915 = vunpack.c.h.b16 %v2406
  %v2916 = vunpack.c.l.b16 %v2407
  %v2917 = vunpack.c.l.b16 %v2408
  %v2918 = vunpack.c.h.b16 %v2408
  %v2919 = vunpack.c.l.b16 %v2409
  %v2920 = vunpack.c.h.b16 %v2409
  %v2921 = vunpack.c.l.b16 %v2410
  %v2922 = vunpack.c.h.b16 %v2410
  %v2923 = vunpack.c.l.b16 %v2411
  %v2924 = vunpack.c.l.b16 %v2412
  %v2925 = vunpack.c.h.b16 %v2412
  %v2926 = vunpack.c.l.b16 %v2413
  %v2927 = vunpack.c.h.b16 %v2413
  %v2928 = vunpack.c.l.b16 %v2414
  %v2929 = vunpack.c.h.b16 %v2414
  %v2930 = vunpack.c.l.b16 %v2415
  %v2931 = vunpack.c.l.b16 %v2416
  %v2932 = vunpack.c.h.b16 %v2416
  %v2933 = vunpack.c.l.b16 %v2417
  %v2934 = vunpack.c.h.b16 %v2417
  %v2935 = vunpack.c.l.b16 %v2418
  %v2936 = vunpack.c.h.b16 %v2418
  %v2937 = vunpack.c.l.b16 %v2419
  %v2938 = vunpack.c.l.b16 %v2420
  %v2939 = vunpack.c.h.b16 %v2420
  %v2940 = vunpack.c.l.b16 %v2421
  %v2941 = vunpack.c.h.b16 %v2421
  %v2942 = vunpack.c.l.b16 %v2422
  %v2943 = vunpack.c.h.b16 %v2422
  %v2944 = vunpack.c.l.b16 %v2423
  %v2945 = vunpack.c.l.b16 %v2424
  %v2946 = vunpack.c.h.b16 %v2424
  %v2947 = vunpack.c.l.b16 %v2425
  %v2948 = vunpack.c.h.b16 %v2425
  %v2949 = vunpack.c.l.b16 %v2426
  %v2950 = vunpack.c.h.b16 %v2426
  %v2951 = vunpack.c.l.b16 %v2427
  %v2952 = vunpack.c.l.b16 %v2428
  %v2953 = vunpack.c.h.b16 %v2428
  %v2954 = vunpack.c.l.b16 %v2429
  %v2955 = vunpack.c.h.b16 %v2429
  %v2956 = vunpack.c.l.b16 %v2430
  %v2957 = vunpack.c.h.b16 %v2430
  %v2958 = vunpack.c.l.b16 %v2431
  %v2959 = vunpack.c.l.b16 %v2432
  %v2960 = vunpack.c.h.b16 %v2432
  %v2961 = vunpack.c.l.b16 %v2433
  %v2962 = vunpack.c.h.b16 %v2433
  %v2963 = vunpack.c.l.b16 %v2434
  %v2964 = vunpack.c.h.b16 %v2434
  %v2965 = vunpack.c.l.b16 %v2435
  %v2966 = vunpack.c.l.b16 %v2436
  %v2967 = vunpack.c.h.b16 %v2436
  %v2968 = vunpack.c.l.b16 %v2437
  %v2969 = vunpack.c.h.b16 %v2437
  %v2970 = vunpack.c.l.b16 %v2438
  %v2971 = vunpack.c.h.b16 %v2438
  %v2972 = vunpack.c.l.b16 %v2439
  %v2973 = vunpack.c.l.b16 %v2440
  %v2974 = vunpack.c.h.b16 %v2440
  %v2975 = vunpack.c.l.b16 %v2441
  %v2976 = vunpack.c.h.b16 %v2441
  %v2977 = vunpack.c.l.b16 %v2442
  %v2978 = vunpack.c.h.b16 %v2442
  %v2979 = vunpack.c.l.b16 %v2443
  %v2980 = vunpack.c.l.b16 %v2444
  %v2981 = vunpack.c.h.b16 %v2444
  %v2982 = vunpack.c.l.b16 %v2445
  %v2983 = vunpack.c.h.b16 %v2445
  %v2984 = vunpack.c.l.b16 %v2446
  %v2985 = vunpack.c.h.b16 %v2446
  %v2986 = vunpack.c.l.b16 %v2447
  %v2987 = vunpack.c.l.b16 %v2448
  %v2988 = vunpack.c.h.b16 %v2448
  %v2989 = vunpack.c.l.b16 %v2449
  %v2990 = vunpack.c.h.b16 %v2449
  %v2991 = vunpack.c.l.b16 %v2450
  %v2992 = vunpack.c.h.b16 %v2450
  %v2993 = vunpack.c.l.b16 %v2451
  %v2994 = vunpack.c.l.b16 %v2452
  %v2995 = vunpack.c.h.b16 %v2452
  %v2996 = vunpack.c.l.b16 %v2453
  %v2997 = vunpack.c.h.b16 %v2453
  %v2998 = vunpack.c.l.b16 %v2454
  %v2999 = vunpack.c.h.b16 %v2454
  %v3000 = vunpack.c.l.b16 %v2455
  %v3001 = vunpack.c.l.b16 %v2456
  %v3002 = vunpack.c.h.b16 %v2456
  %v3003 = vunpack.c.l.b16 %v2457
  %v3004 = vunpack.c.h.b16 %v2457
  %v3005 = vunpack.c.l.b16 %v2458
  %v3006 = vunpack.c.h.b16 %v2458
  %v3007 = vunpack.c.l.b16 %v2459
  %v3008 = vunpack.c.l.b16 %v2460
  %v3009 = vunpack.c.h.b16 %v2460
  %v3010 = vunpack.c.l.b16 %v2461
  %v3011 = vunpack.c.h.b16 %v2461
  %v3012 = vunpack.c.l.b16 %v2462
  %v3013 = vunpack.c.h.b16 %v2462
  %v3014 = vunpack.c.l.b16 %v2463
  %v3015 = vunpack.c.l.b16 %v2464
  %v3016 = vunpack.c.h.b16 %v2464
  %v3017 = vunpack.c.l.b16 %v2465
  %v3018 = vunpack.c.h.b16 %v2465
  %v3019 = vunpack.c.l.b16 %v2466
  %v3020 = vunpack.c.h.b16 %v2466
  %v3021 = vunpack.c.l.b16 %v2467
  %v3022 = vunpack.c.l.b16 %v2468
  %v3023 = vunpack.c.h.b16 %v2468
  %v3024 = vunpack.c.l.b16 %v2469
  %v3025 = vunpack.c.h.b16 %v2469
  %v3026 = vunpack.c.l.b16 %v2470
  %v3027 = vunpack.c.h.b16 %v2470
  %v3028 = vunpack.c.l.b16 %v2471
  %v3029 = vunpack.c.l.b16 %v2472
  %v3030 = vunpack.c.h.b16 %v2472
  %v3031 = vunpack.c.l.b16 %v2473
  %v3032 = vunpack.c.h.b16 %v2473
  %v3033 = vunpack.c.l.b16 %v2474
  %v3034 = vunpack.c.h.b16 %v2474
  %v3035 = vunpack.c.l.b16 %v2475
  %v3036 = vunpack.c.l.b16 %v2476
  %v3037 = vunpack.c.h.b16 %v2476
  %v3038 = vunpack.c.l.b16 %v2477
  %v3039 = vunpack.c.h.b16 %v2477
  %v3040 = vunpack.c.l.b16 %v2478
  %v3041 = vunpack.c.h.b16 %v2478
  %v3042 = vunpack.c.l.b16 %v2479
  %v3043 = vunpack.c.l.b16 %v2480
  %v3044 = vunpack.c.h.b16 %v2480
  %v3045 = vunpack.c.l.b16 %v2481
  %v3046 = vunpack.c.h.b16 %v2481
  %v3047 = vunpack.c.l.b16 %v2482
  %v3048 = vunpack.c.h.b16 %v2482
  %v3049 = vunpack.c.l.b16 %v2483
  %v3050 = vunpack.c.l.b16 %v2484
  %v3051 = vunpack.c.h.b16 %v2484
  %v3052 = vunpack.c.l.b16 %v2485
  %v3053 = vunpack.c.h.b16 %v2485
  %v3054 = vunpack.c.l.b16 %v2486
  %v3055 = vunpack.c.h.b16 %v2486
  %v3056 = vunpack.c.l.b16 %v2487
  %v3057 = vunpack.c.l.b16 %v2488
  %v3058 = vunpack.c.h.b16 %v2488
  %v3059 = vunpack.c.l.b16 %v2489
  %v3060 = vunpack.c.h.b16 %v2489
  %v3061 = vunpack.c.l.b16 %v2490
  %v3062 = vunpack.c.h.b16 %v2490
  %v3063 = vunpack.c.l.b16 %v2491
  %v3064 = vunpack.c.l.b16 %v2492
  %v3065 = vunpack.c.h.b16 %v2492
  %v3066 = vunpack.c.l.b16 %v2493
  %v3067 = vunpack.c.h.b16 %v2493
  %v3068 = vunpack.c.l.b16 %v2494
  %v3069 = vunpack.c.h.b16 %v2494
  %v3070 = vunpack.c.l.b16 %v2495
  %v3071 = vunpack.c.l.b16 %v2496
  %v3072 = vunpack.c.h.b16 %v2496
  %v3073 = vunpack.c.l.b16 %v2497
  %v3074 = vunpack.c.h.b16 %v2497
  %v3075 = vunpack.c.l.b16 %v2498
  %v3076 = vunpack.c.h.b16 %v2498
  %v3077 = vunpack.c.l.b16 %v2499
  %v3078 = vunpack.c.l.b16 %v2500
  %v3079 = vunpack.c.h.b16 %v2500
  %v3080 = vunpack.c.l.b16 %v2501
  %v3081 = vunpack.c.h.b16 %v2501
  %v3082 = vunpack.c.l.b16 %v2502
  %v3083 = vunpack.c.h.b16 %v2502
  %v3084 = vunpack.c.l.b16 %v2503
  %v3085 = vunpack.c.l.b16 %v2504
  %v3086 = vunpack.c.h.b16 %v2504
  %v3087 = vunpack.c.l.b16 %v2505
  %v3088 = vunpack.c.h.b16 %v2505
  %v3089 = vunpack.c.l.b16 %v2506
  %v3090 = vunpack.c.h.b16 %v2506
  %v3091 = vunpack.c.l.b16 %v2507
  %v3092 = vunpack.c.l.b16 %v2508
  %v3093 = vunpack.c.h.b16 %v2508
  %v3094 = vunpack.c.l.b16 %v2509
  %v3095 = vunpack.c.h.b16 %v2509
  %v3096 = vunpack.c.l.b16 %v2510
  %v3097 = vunpack.c.h.b16 %v2510
  %v3098 = vunpack.c.l.b16 %v2511
  %v3099 = vpack.c.b16 %v2756, %v2749
  %v3100 = vpack.c.b16 %v2757, %v2750
  %v3101 = vpack.c.b16 %v2758, %v2751
  %v3102 = vpack.c.b16 %v2759, %v2752
  %v3103 = vpack.c.b16 %v2760, %v2753
  %v3104 = vpack.c.b16 %v2761, %v2754
  %v3105 = vpack.c.b16 %v2762, %v2755
  %v3106 = vpack.c.b16 %v2770, %v2763
  %v3107 = vpack.c.b16 %v2771, %v2764
  %v3108 = vpack.c.b16 %v2772, %v2765
  %v3109 = vpack.c.b16 %v2773, %v2766
  %v3110 = vpack.c.b16 %v2774, %v2767
  %v3111 = vpack.c.b16 %v2775, %v2768
  %v3112 = vpack.c.b16 %v2776, %v2769
  %v3113 = vpack.c.b16 %v2784, %v2777
  %v3114 = vpack.c.b16 %v2785, %v2778
  %v3115 = vpack.c.b16 %v2786, %v2779
  %v3116 = vpack.c.b16 %v2787, %v2780
  %v3117 = vpack.c.b16 %v2788, %v2781
  %v3118 = vpack.c.b16 %v2789, %v2782
  %v3119 = vpack.c.b16 %v2790, %v2783
  %v3120 = vpack.c.b16 %v2798, %v2791
  %v3121 = vpack.c.b16 %v2799, %v2792
  %v3122 = vpack.c.b16 %v2800, %v2793
  %v3123 = vpack.c.b16 %v2801, %v2794
  %v3124 = vpack.c.b16 %v2802, %v2795
  %v3125 = vpack.c.b16 %v2803, %v2796
  %v3126 = vpack.c.b16 %v2804, %v2797
  %v3127 = vpack.c.b16 %v2812, %v2805
  %v3128 = vpack.c.b16 %v2813, %v2806
  %v3129 = vpack.c.b16 %v2814, %v2807
  %v3130 = vpack.c.b16 %v2815, %v2808
  %v3131 = vpack.c.b16 %v2816, %v2809
  %v3132 = vpack.c.b16 %v2817, %v2810
  %v3133 = vpack.c.b16 %v2818, %v2811
  %v3134 = vpack.c.b16 %v2826, %v2819
  %v3135 = vpack.c.b16 %v2827, %v2820
  %v3136 = vpack.c.b16 %v2828, %v2821
  %v3137 = vpack.c.b16 %v2829, %v2822
  %v3138 = vpack.c.b16 %v2830, %v2823
  %v3139 = vpack.c.b16 %v2831, %v2824
  %v3140 = vpack.c.b16 %v2832, %v2825
  %v3141 = vpack.c.b16 %v2840, %v2833
  %v3142 = vpack.c.b16 %v2841, %v2834
  %v3143 = vpack.c.b16 %v2842, %v2835
  %v3144 = vpack.c.b16 %v2843, %v2836
  %v3145 = vpack.c.b16 %v2844, %v2837
  %v3146 = vpack.c.b16 %v2845, %v2838
  %v3147 = vpack.c.b16 %v2846, %v2839
  %v3148 = vpack.c.b16 %v2854, %v2847
  %v3149 = vpack.c.b16 %v2855, %v2848
  %v3150 = vpack.c.b16 %v2856, %v2849
  %v3151 = vpack.c.b16 %v2857, %v2850
  %v3152 = vpack.c.b16 %v2858, %v2851
  %v3153 = vpack.c.b16 %v2859, %v2852
  %v3154 = vpack.c.b16 %v2860, %v2853
  %v3155 = vpack.c.b16 %v2868, %v2861
  %v3156 = vpack.c.b16 %v2869, %v2862
  %v3157 = vpack.c.b16 %v2870, %v2863
  %v3158 = vpack.c.b16 %v2871, %v2864
  %v3159 = vpack.c.b16 %v2872, %v2865
  %v3160 = vpack.c.b16 %v2873, %v2866
  %v3161 = vpack.c.b16 %v2874, %v2867
  %v3162 = vpack.c.b16 %v2882, %v2875
  %v3163 = vpack.c.b16 %v2883, %v2876
  %v3164 = vpack.c.b16 %v2884, %v2877
  %v3165 = vpack.c.b16 %v2885, %v2878
  %v3166 = vpack.c.b16 %v2886, %v2879
  %v3167 = vpack.c.b16 %v2887, %v2880
  %v3168 = vpack.c.b16 %v2888, %v2881
  %v3169 = vpack.c.b16 %v2896, %v2889
  %v3170 = vpack.c.b16 %v2897, %v2890
  %v3171 = vpack.c.b16 %v2898, %v2891
  %v3172 = vpack.c.b16 %v2899, %v2892
  %v3173 = vpack.c.b16 %v2900, %v2893
  %v3174 = vpack.c.b16 %v2901, %v2894
  %v3175 = vpack.c.b16 %v2902, %v2895
  %v3176 = vpack.c.b16 %v2910, %v2903
  %v3177 = vpack.c.b16 %v2911, %v2904
  %v3178 = vpack.c.b16 %v2912, %v2905
  %v3179 = vpack.c.b16 %v2913, %v2906
  %v3180 = vpack.c.b16 %v2914, %v2907
  %v3181 = vpack.c.b16 %v2915, %v2908
  %v3182 = vpack.c.b16 %v2916, %v2909
  %v3183 = vpack.c.b16 %v2924, %v2917
  %v3184 = vpack.c.b16 %v2925, %v2918
  %v3185 = vpack.c.b16 %v2926, %v2919
  %v3186 = vpack.c.b16 %v2927, %v2920
  %v3187 = vpack.c.b16 %v2928, %v2921
  %v3188 = vpack.c.b16 %v2929, %v2922
  %v3189 = vpack.c.b16 %v2930, %v2923
  %v3190 = vpack.c.b16 %v2938, %v2931
  %v3191 = vpack.c.b16 %v2939, %v2932
  %v3192 = vpack.c.b16 %v2940, %v2933
  %v3193 = vpack.c.b16 %v2941, %v2934
  %v3194 = vpack.c.b16 %v2942, %v2935
  %v3195 = vpack.c.b16 %v2943, %v2936
  %v3196 = vpack.c.b16 %v2944, %v2937
  %v3197 = vpack.c.b16 %v2952, %v2945
  %v3198 = vpack.c.b16 %v2953, %v2946
  %v3199 = vpack.c.b16 %v2954, %v2947
  %v3200 = vpack.c.b16 %v2955, %v2948
  %v3201 = vpack.c.b16 %v2956, %v2949
  %v3202 = vpack.c.b16 %v2957, %v2950
  %v3203 = vpack.c.b16 %v2958, %v2951
  %v3204 = vpack.c.b16 %v2966, %v2959
  %v3205 = vpack.c.b16 %v2967, %v2960
  %v3206 = vpack.c.b16 %v2968, %v2961
  %v3207 = vpack.c.b16 %v2969, %v2962
  %v3208 = vpack.c.b16 %v2970, %v2963
  %v3209 = vpack.c.b16 %v2971, %v2964
  %v3210 = vpack.c.b16 %v2972, %v2965
  %v3211 = vpack.c.b16 %v2980, %v2973
  %v3212 = vpack.c.b16 %v2981, %v2974
  %v3213 = vpack.c.b16 %v2982, %v2975
  %v3214 = vpack.c.b16 %v2983, %v2976
  %v3215 = vpack.c.b16 %v2984, %v2977
  %v3216 = vpack.c.b16 %v2985, %v2978
  %v3217 = vpack.c.b16 %v2986, %v2979
  %v3218 = vpack.c.b16 %v2994, %v2987
  %v3219 = vpack.c.b16 %v2995, %v2988
  %v3220 = vpack.c.b16 %v2996, %v2989
  %v3221 = vpack.c.b16 %v2997, %v2990
  %v3222 = vpack.c.b16 %v2998, %v2991
  %v3223 = vpack.c.b16 %v2999, %v2992
  %v3224 = vpack.c.b16 %v3000, %v2993
  %v3225 = vpack.c.b16 %v3008, %v3001
  %v3226 = vpack.c.b16 %v3009, %v3002
  %v3227 = vpack.c.b16 %v3010, %v3003
  %v3228 = vpack.c.b16 %v3011, %v3004
  %v3229 = vpack.c.b16 %v3012, %v3005
  %v3230 = vpack.c.b16 %v3013, %v3006
  %v3231 = vpack.c.b16 %v3014, %v3007
  %v3232 = vpack.c.b16 %v3022, %v3015
  %v3233 = vpack.c.b16 %v3023, %v3016
  %v3234 = vpack.c.b16 %v3024, %v3017
  %v3235 = vpack.c.b16 %v3025, %v3018
  %v3236 = vpack.c.b16 %v3026, %v3019
  %v3237 = vpack.c.b16 %v3027, %v3020
  %v3238 = vpack.c.b16 %v3028, %v3021
  %v3239 = vpack.c.b16 %v3036, %v3029
  %v3240 = vpack.c.b16 %v3037, %v3030
  %v3241 = vpack.c.b16 %v3038, %v3031
  %v3242 = vpack.c.b16 %v3039, %v3032
  %v3243 = vpack.c.b16 %v3040, %v3033
  %v3244 = vpack.c.b16 %v3041, %v3034
  %v3245 = vpack.c.b16 %v3042, %v3035
  %v3246 = vpack.c.b16 %v3050, %v3043
  %v3247 = vpack.c.b16 %v3051, %v3044
  %v3248 = vpack.c.b16 %v3052, %v3045
  %v3249 = vpack.c.b16 %v3053, %v3046
  %v3250 = vpack.c.b16 %v3054, %v3047
  %v3251 = vpack.c.b16 %v3055, %v3048
  %v3252 = vpack.c.b16 %v3056, %v3049
  %v3253 = vpack.c.b16 %v3064, %v3057
  %v3254 = vpack.c.b16 %v3065, %v3058
  %v3255 = vpack.c.b16 %v3066, %v3059
  %v3256 = vpack.c.b16 %v3067, %v3060
  %v3257 = vpack.c.b16 %v3068, %v3061
  %v3258 = vpack.c.b16 %v3069, %v3062
  %v3259 = vpack.c.b16 %v3070, %v3063
  %v3260 = vpack.c.b16 %v3078, %v3071
  %v3261 = vpack.c.b16 %v3079, %v3072
  %v3262 = vpack.c.b16 %v3080, %v3073
  %v3263 = vpack.c.b16 %v3081, %v3074
  %v3264 = vpack.c.b16 %v3082, %v3075
  %v3265 = vpack.c.b16 %v3083, %v3076
  %v3266 = vpack.c.b16 %v3084, %v3077
  %v3267 = vpack.c.b16 %v3092, %v3085
  %v3268 = vpack.c.b16 %v3093, %v3086
  %v3269 = vpack.c.b16 %v3094, %v3087
  %v3270 = vpack.c.b16 %v3095, %v3088
  %v3271 = vpack.c.b16 %v3096, %v3089
  %v3272 = vpack.c.b16 %v3097, %v3090
  %v3273 = vpack.c.b16 %v3098, %v3091
  %v3450 = vsel %vm1264, %v2311, 0
  %3452 = vmatprep.subr.bf16.mxu0 %v3149
  %3453 = vmatpush1.bf16.msra.mxu0 %v3148
  %3454 = vmatprep.subr.bf16.mxu0 %v3142
  %3455 = vmatpush1.bf16.msra.mxu0 %v3141
  %3456 = vmatprep.subr.bf16.mxu0 %v3135
  %3457 = vmatpush1.bf16.msra.mxu0 %v3134
  %3458 = vmatprep.subr.bf16.mxu0 %v3128
  %3459 = vmatpush1.bf16.msra.mxu0 %v3127
  %3460 = vmatprep.subr.bf16.mxu0 %v3121
  %3461 = vmatpush1.bf16.msra.mxu0 %v3120
  %3462 = vmatprep.subr.bf16.mxu0 %v3114
  %3463 = vmatpush1.bf16.msra.mxu0 %v3113
  %3464 = vmatprep.subr.bf16.mxu0 %v3107
  %3465 = vmatpush1.bf16.msra.mxu0 %v3106
  %3466 = vmatprep.subr.bf16.mxu0 %v3100
  %3467 = vmatpush1.bf16.msra.mxu0 %v3099
  %3468 = vmatprep.subr.bf16.mxu0 %v3205
  %3469 = vmatpush2.bf16.msra.mxu0 %v3204
  %3470 = vmatprep.subr.bf16.mxu0 %v3198
  %3471 = vmatpush2.bf16.msra.mxu0 %v3197
  %3472 = vmatprep.subr.bf16.mxu0 %v3191
  %3473 = vmatpush2.bf16.msra.mxu0 %v3190
  %3474 = vmatprep.subr.bf16.mxu0 %v3184
  %3475 = vmatpush2.bf16.msra.mxu0 %v3183
  %3476 = vmatprep.subr.bf16.mxu0 %v3177
  %3477 = vmatpush2.bf16.msra.mxu0 %v3176
  %3478 = vmatprep.subr.bf16.mxu0 %v3170
  %3479 = vmatpush2.bf16.msra.mxu0 %v3169
  %3480 = vmatprep.subr.bf16.mxu0 %v3163
  %3481 = vmatpush2.bf16.msra.mxu0 %v3162
  %3482 = vmatprep.subr.bf16.mxu0 %v3156
  %3483 = vmatpush2.bf16.msra.mxu0 %v3155
  %3484 = vmatprep.mubr.bf16.mxu0 %v2309
  %3485 = vmatmul.mubr.bf16.gmra.mxu0 %v2308
  %v3486 = vpop.f32.mrf.mxu0
  %v3487 = vadd.f32 %v2517, %v3486
  %v3488 = vpop.f32.mrf.mxu0
  %v3489 = vadd.f32 %v2521, %v3488
  %v3490 = vpop.f32.mrf.mxu0
  %v3491 = vpop.f32.mrf.mxu0
  %3492 = vdwg.mxu0
  %3493 = vmatprep.subr.bf16.mxu0 %v3261
  %3494 = vmatpush1.bf16.msra.mxu0 %v3260
  %3495 = vmatprep.subr.bf16.mxu0 %v3254
  %3496 = vmatpush1.bf16.msra.mxu0 %v3253
  %3497 = vmatprep.subr.bf16.mxu0 %v3247
  %3498 = vmatpush1.bf16.msra.mxu0 %v3246
  %3499 = vmatprep.subr.bf16.mxu0 %v3240
  %3500 = vmatpush1.bf16.msra.mxu0 %v3239
  %3501 = vmatprep.subr.bf16.mxu0 %v3233
  %3502 = vmatpush1.bf16.msra.mxu0 %v3232
  %3503 = vmatprep.subr.bf16.mxu0 %v3226
  %3504 = vmatpush1.bf16.msra.mxu0 %v3225
  %3505 = vmatprep.subr.bf16.mxu0 %v3219
  %3506 = vmatpush1.bf16.msra.mxu0 %v3218
  %3507 = vmatprep.subr.bf16.mxu0 %v3212
  %3508 = vmatpush1.bf16.msra.mxu0 %v3211
  %3509 = vmatprep.subr.bf16.mxu0 0
  %3510 = vmatpush2.bf16.msra.mxu0 0
  %3511 = vmatprep.subr.bf16.mxu0 0
  %3512 = vmatpush2.bf16.msra.mxu0 0
  %3513 = vmatprep.subr.bf16.mxu0 0
  %3514 = vmatpush2.bf16.msra.mxu0 0
  %3515 = vmatprep.subr.bf16.mxu0 0
  %3516 = vmatpush2.bf16.msra.mxu0 0
  %3517 = vmatprep.subr.bf16.mxu0 0
  %3518 = vmatpush2.bf16.msra.mxu0 0
  %3519 = vmatprep.subr.bf16.mxu0 0
  %3520 = vmatpush2.bf16.msra.mxu0 0
  %3521 = vmatprep.subr.bf16.mxu0 0
  %3522 = vmatpush2.bf16.msra.mxu0 0
  %3523 = vmatprep.subr.bf16.mxu0 %v3268
  %3524 = vmatpush2.bf16.msra.mxu0 %v3267
  %3525 = vmatprep.mubr.bf16.mxu0 %v3450
  %3526 = vmatmul.mubr.bf16.gmra.mxu0 %v2310
  %v3527 = vpop.f32.mrf.mxu0
  %v3528 = vadd.f32 %v3487, %v3527
  %v3529 = vpop.f32.mrf.mxu0
  %v3530 = vadd.f32 %v3489, %v3529
  %v3531 = vpop.f32.mrf.mxu0
  %v3532 = vpop.f32.mrf.mxu0
  %3533 = vdwg.mxu0
  %3534 = vmatprep.subr.bf16.mxu0 %v3151
  %3535 = vmatpush1.bf16.msra.mxu0 %v3150
  %3536 = vmatprep.subr.bf16.mxu0 %v3144
  %3537 = vmatpush1.bf16.msra.mxu0 %v3143
  %3538 = vmatprep.subr.bf16.mxu0 %v3137
  %3539 = vmatpush1.bf16.msra.mxu0 %v3136
  %3540 = vmatprep.subr.bf16.mxu0 %v3130
  %3541 = vmatpush1.bf16.msra.mxu0 %v3129
  %3542 = vmatprep.subr.bf16.mxu0 %v3123
  %3543 = vmatpush1.bf16.msra.mxu0 %v3122
  %3544 = vmatprep.subr.bf16.mxu0 %v3116
  %3545 = vmatpush1.bf16.msra.mxu0 %v3115
  %3546 = vmatprep.subr.bf16.mxu0 %v3109
  %3547 = vmatpush1.bf16.msra.mxu0 %v3108
  %3548 = vmatprep.subr.bf16.mxu0 %v3102
  %3549 = vmatpush1.bf16.msra.mxu0 %v3101
  %3550 = vmatprep.subr.bf16.mxu0 %v3207
  %3551 = vmatpush2.bf16.msra.mxu0 %v3206
  %3552 = vmatprep.subr.bf16.mxu0 %v3200
  %3553 = vmatpush2.bf16.msra.mxu0 %v3199
  %3554 = vmatprep.subr.bf16.mxu0 %v3193
  %3555 = vmatpush2.bf16.msra.mxu0 %v3192
  %3556 = vmatprep.subr.bf16.mxu0 %v3186
  %3557 = vmatpush2.bf16.msra.mxu0 %v3185
  %3558 = vmatprep.subr.bf16.mxu0 %v3179
  %3559 = vmatpush2.bf16.msra.mxu0 %v3178
  %3560 = vmatprep.subr.bf16.mxu0 %v3172
  %3561 = vmatpush2.bf16.msra.mxu0 %v3171
  %3562 = vmatprep.subr.bf16.mxu0 %v3165
  %3563 = vmatpush2.bf16.msra.mxu0 %v3164
  %3564 = vmatprep.subr.bf16.mxu0 %v3158
  %3565 = vmatpush2.bf16.msra.mxu0 %v3157
  %3566 = vmatprep.mubr.bf16.mxu0 %v2309
  %3567 = vmatmul.mubr.bf16.gmra.mxu0 %v2308
  %v3568 = vpop.f32.mrf.mxu0
  %v3569 = vadd.f32 %v2525, %v3568
  %v3570 = vpop.f32.mrf.mxu0
  %v3571 = vadd.f32 %v2529, %v3570
  %v3572 = vpop.f32.mrf.mxu0
  %v3573 = vpop.f32.mrf.mxu0
  %3574 = vdwg.mxu0
  %3575 = vmatprep.subr.bf16.mxu0 %v3263
  %3576 = vmatpush1.bf16.msra.mxu0 %v3262
  %3577 = vmatprep.subr.bf16.mxu0 %v3256
  %3578 = vmatpush1.bf16.msra.mxu0 %v3255
  %3579 = vmatprep.subr.bf16.mxu0 %v3249
  %3580 = vmatpush1.bf16.msra.mxu0 %v3248
  %3581 = vmatprep.subr.bf16.mxu0 %v3242
  %3582 = vmatpush1.bf16.msra.mxu0 %v3241
  %3583 = vmatprep.subr.bf16.mxu0 %v3235
  %3584 = vmatpush1.bf16.msra.mxu0 %v3234
  %3585 = vmatprep.subr.bf16.mxu0 %v3228
  %3586 = vmatpush1.bf16.msra.mxu0 %v3227
  %3587 = vmatprep.subr.bf16.mxu0 %v3221
  %3588 = vmatpush1.bf16.msra.mxu0 %v3220
  %3589 = vmatprep.subr.bf16.mxu0 %v3214
  %3590 = vmatpush1.bf16.msra.mxu0 %v3213
  %3591 = vmatprep.subr.bf16.mxu0 0
  %3592 = vmatpush2.bf16.msra.mxu0 0
  %3593 = vmatprep.subr.bf16.mxu0 0
  %3594 = vmatpush2.bf16.msra.mxu0 0
  %3595 = vmatprep.subr.bf16.mxu0 0
  %3596 = vmatpush2.bf16.msra.mxu0 0
  %3597 = vmatprep.subr.bf16.mxu0 0
  %3598 = vmatpush2.bf16.msra.mxu0 0
  %3599 = vmatprep.subr.bf16.mxu0 0
  %3600 = vmatpush2.bf16.msra.mxu0 0
  %3601 = vmatprep.subr.bf16.mxu0 0
  %3602 = vmatpush2.bf16.msra.mxu0 0
  %3603 = vmatprep.subr.bf16.mxu0 0
  %3604 = vmatpush2.bf16.msra.mxu0 0
  %3605 = vmatprep.subr.bf16.mxu0 %v3270
  %3606 = vmatpush2.bf16.msra.mxu0 %v3269
  %3607 = vmatprep.mubr.bf16.mxu0 %v3450
  %3608 = vmatmul.mubr.bf16.gmra.mxu0 %v2310
  %v3609 = vpop.f32.mrf.mxu0
  %v3610 = vadd.f32 %v3569, %v3609
  %v3611 = vpop.f32.mrf.mxu0
  %v3612 = vadd.f32 %v3571, %v3611
  %v3613 = vpop.f32.mrf.mxu0
  %v3614 = vpop.f32.mrf.mxu0
  %3615 = vdwg.mxu0
  %3616 = vmatprep.subr.bf16.mxu0 %v3153
  %3617 = vmatpush1.bf16.msra.mxu0 %v3152
  %3618 = vmatprep.subr.bf16.mxu0 %v3146
  %3619 = vmatpush1.bf16.msra.mxu0 %v3145
  %3620 = vmatprep.subr.bf16.mxu0 %v3139
  %3621 = vmatpush1.bf16.msra.mxu0 %v3138
  %3622 = vmatprep.subr.bf16.mxu0 %v3132
  %3623 = vmatpush1.bf16.msra.mxu0 %v3131
  %3624 = vmatprep.subr.bf16.mxu0 %v3125
  %3625 = vmatpush1.bf16.msra.mxu0 %v3124
  %3626 = vmatprep.subr.bf16.mxu0 %v3118
  %3627 = vmatpush1.bf16.msra.mxu0 %v3117
  %3628 = vmatprep.subr.bf16.mxu0 %v3111
  %3629 = vmatpush1.bf16.msra.mxu0 %v3110
  %3630 = vmatprep.subr.bf16.mxu0 %v3104
  %3631 = vmatpush1.bf16.msra.mxu0 %v3103
  %3632 = vmatprep.subr.bf16.mxu0 %v3209
  %3633 = vmatpush2.bf16.msra.mxu0 %v3208
  %3634 = vmatprep.subr.bf16.mxu0 %v3202
  %3635 = vmatpush2.bf16.msra.mxu0 %v3201
  %3636 = vmatprep.subr.bf16.mxu0 %v3195
  %3637 = vmatpush2.bf16.msra.mxu0 %v3194
  %3638 = vmatprep.subr.bf16.mxu0 %v3188
  %3639 = vmatpush2.bf16.msra.mxu0 %v3187
  %3640 = vmatprep.subr.bf16.mxu0 %v3181
  %3641 = vmatpush2.bf16.msra.mxu0 %v3180
  %3642 = vmatprep.subr.bf16.mxu0 %v3174
  %3643 = vmatpush2.bf16.msra.mxu0 %v3173
  %3644 = vmatprep.subr.bf16.mxu0 %v3167
  %3645 = vmatpush2.bf16.msra.mxu0 %v3166
  %3646 = vmatprep.subr.bf16.mxu0 %v3160
  %3647 = vmatpush2.bf16.msra.mxu0 %v3159
  %3648 = vmatprep.mubr.bf16.mxu0 %v2309
  %3649 = vmatmul.mubr.bf16.gmra.mxu0 %v2308
  %v3650 = vpop.f32.mrf.mxu0
  %v3651 = vadd.f32 %v2533, %v3650
  %v3652 = vpop.f32.mrf.mxu0
  %v3653 = vadd.f32 %v2537, %v3652
  %v3654 = vpop.f32.mrf.mxu0
  %v3655 = vpop.f32.mrf.mxu0
  %3656 = vdwg.mxu0
  %3657 = vmatprep.subr.bf16.mxu0 %v3265
  %3658 = vmatpush1.bf16.msra.mxu0 %v3264
  %3659 = vmatprep.subr.bf16.mxu0 %v3258
  %3660 = vmatpush1.bf16.msra.mxu0 %v3257
  %3661 = vmatprep.subr.bf16.mxu0 %v3251
  %3662 = vmatpush1.bf16.msra.mxu0 %v3250
  %3663 = vmatprep.subr.bf16.mxu0 %v3244
  %3664 = vmatpush1.bf16.msra.mxu0 %v3243
  %3665 = vmatprep.subr.bf16.mxu0 %v3237
  %3666 = vmatpush1.bf16.msra.mxu0 %v3236
  %3667 = vmatprep.subr.bf16.mxu0 %v3230
  %3668 = vmatpush1.bf16.msra.mxu0 %v3229
  %3669 = vmatprep.subr.bf16.mxu0 %v3223
  %3670 = vmatpush1.bf16.msra.mxu0 %v3222
  %3671 = vmatprep.subr.bf16.mxu0 %v3216
  %3672 = vmatpush1.bf16.msra.mxu0 %v3215
  %3673 = vmatprep.subr.bf16.mxu0 0
  %3674 = vmatpush2.bf16.msra.mxu0 0
  %3675 = vmatprep.subr.bf16.mxu0 0
  %3676 = vmatpush2.bf16.msra.mxu0 0
  %3677 = vmatprep.subr.bf16.mxu0 0
  %3678 = vmatpush2.bf16.msra.mxu0 0
  %3679 = vmatprep.subr.bf16.mxu0 0
  %3680 = vmatpush2.bf16.msra.mxu0 0
  %3681 = vmatprep.subr.bf16.mxu0 0
  %3682 = vmatpush2.bf16.msra.mxu0 0
  %3683 = vmatprep.subr.bf16.mxu0 0
  %3684 = vmatpush2.bf16.msra.mxu0 0
  %3685 = vmatprep.subr.bf16.mxu0 0
  %3686 = vmatpush2.bf16.msra.mxu0 0
  %3687 = vmatprep.subr.bf16.mxu0 %v3272
  %3688 = vmatpush2.bf16.msra.mxu0 %v3271
  %3689 = vmatprep.mubr.bf16.mxu0 %v3450
  %3690 = vmatmul.mubr.bf16.gmra.mxu0 %v2310
  %v3691 = vpop.f32.mrf.mxu0
  %v3692 = vadd.f32 %v3651, %v3691
  %v3693 = vpop.f32.mrf.mxu0
  %v3694 = vadd.f32 %v3653, %v3693
  %v3695 = vpop.f32.mrf.mxu0
  %v3696 = vpop.f32.mrf.mxu0
  %3697 = vdwg.mxu0
  %3698 = vmatprep.subr.bf16.mxu0 0
  %3699 = vmatpush1.bf16.msra.mxu0 %v3154
  %3700 = vmatprep.subr.bf16.mxu0 0
  %3701 = vmatpush1.bf16.msra.mxu0 %v3147
  %3702 = vmatprep.subr.bf16.mxu0 0
  %3703 = vmatpush1.bf16.msra.mxu0 %v3140
  %3704 = vmatprep.subr.bf16.mxu0 0
  %3705 = vmatpush1.bf16.msra.mxu0 %v3133
  %3706 = vmatprep.subr.bf16.mxu0 0
  %3707 = vmatpush1.bf16.msra.mxu0 %v3126
  %3708 = vmatprep.subr.bf16.mxu0 0
  %3709 = vmatpush1.bf16.msra.mxu0 %v3119
  %3710 = vmatprep.subr.bf16.mxu0 0
  %3711 = vmatpush1.bf16.msra.mxu0 %v3112
  %3712 = vmatprep.subr.bf16.mxu0 0
  %3713 = vmatpush1.bf16.msra.mxu0 %v3105
  %3714 = vmatprep.subr.bf16.mxu0 0
  %3715 = vmatpush2.bf16.msra.mxu0 %v3210
  %3716 = vmatprep.subr.bf16.mxu0 0
  %3717 = vmatpush2.bf16.msra.mxu0 %v3203
  %3718 = vmatprep.subr.bf16.mxu0 0
  %3719 = vmatpush2.bf16.msra.mxu0 %v3196
  %3720 = vmatprep.subr.bf16.mxu0 0
  %3721 = vmatpush2.bf16.msra.mxu0 %v3189
  %3722 = vmatprep.subr.bf16.mxu0 0
  %3723 = vmatpush2.bf16.msra.mxu0 %v3182
  %3724 = vmatprep.subr.bf16.mxu0 0
  %3725 = vmatpush2.bf16.msra.mxu0 %v3175
  %3726 = vmatprep.subr.bf16.mxu0 0
  %3727 = vmatpush2.bf16.msra.mxu0 %v3168
  %3728 = vmatprep.subr.bf16.mxu0 0
  %3729 = vmatpush2.bf16.msra.mxu0 %v3161
  %3730 = vmatprep.mubr.bf16.mxu0 %v2309
  %3731 = vmatmul.mubr.bf16.gmra.mxu0 %v2308
  %v3732 = vpop.f32.mrf.mxu0
  %v3733 = vadd.f32 %v2541, %v3732
  %v3734 = vpop.f32.mrf.mxu0
  %v3735 = vpop.f32.mrf.mxu0
  %v3736 = vpop.f32.mrf.mxu0
  %3737 = vdwg.mxu0
  %3738 = vmatprep.subr.bf16.mxu0 0
  %3739 = vmatpush1.bf16.msra.mxu0 %v3266
  %3740 = vmatprep.subr.bf16.mxu0 0
  %3741 = vmatpush1.bf16.msra.mxu0 %v3259
  %3742 = vmatprep.subr.bf16.mxu0 0
  %3743 = vmatpush1.bf16.msra.mxu0 %v3252
  %3744 = vmatprep.subr.bf16.mxu0 0
  %3745 = vmatpush1.bf16.msra.mxu0 %v3245
  %3746 = vmatprep.subr.bf16.mxu0 0
  %3747 = vmatpush1.bf16.msra.mxu0 %v3238
  %3748 = vmatprep.subr.bf16.mxu0 0
  %3749 = vmatpush1.bf16.msra.mxu0 %v3231
  %3750 = vmatprep.subr.bf16.mxu0 0
  %3751 = vmatpush1.bf16.msra.mxu0 %v3224
  %3752 = vmatprep.subr.bf16.mxu0 0
  %3753 = vmatpush1.bf16.msra.mxu0 %v3217
  %3754 = vmatprep.subr.bf16.mxu0 0
  %3755 = vmatpush2.bf16.msra.mxu0 0
  %3756 = vmatprep.subr.bf16.mxu0 0
  %3757 = vmatpush2.bf16.msra.mxu0 0
  %3758 = vmatprep.subr.bf16.mxu0 0
  %3759 = vmatpush2.bf16.msra.mxu0 0
  %3760 = vmatprep.subr.bf16.mxu0 0
  %3761 = vmatpush2.bf16.msra.mxu0 0
  %3762 = vmatprep.subr.bf16.mxu0 0
  %3763 = vmatpush2.bf16.msra.mxu0 0
  %3764 = vmatprep.subr.bf16.mxu0 0
  %3765 = vmatpush2.bf16.msra.mxu0 0
  %3766 = vmatprep.subr.bf16.mxu0 0
  %3767 = vmatpush2.bf16.msra.mxu0 0
  %3768 = vmatprep.subr.bf16.mxu0 0
  %3769 = vmatpush2.bf16.msra.mxu0 %v3273
  %3770 = vmatprep.mubr.bf16.mxu0 %v3450
  %3771 = vmatmul.mubr.bf16.gmra.mxu0 %v2310
  %v3772 = vpop.f32.mrf.mxu0
  %v3773 = vadd.f32 %v3733, %v3772
  %v3774 = vpop.f32.mrf.mxu0
  %v3775 = vpop.f32.mrf.mxu0
  %v3776 = vpop.f32.mrf.mxu0
  %3777 = vdwg.mxu0
  %v3778 = vxor.u32 %v3528, 2147483648
  %v3779 = vxor.u32 %v3530, 2147483648
  %v3780 = vxor.u32 %v3610, 2147483648
  %v3781 = vxor.u32 %v3612, 2147483648
  %v3782 = vxor.u32 %v3692, 2147483648
  %v3783 = vxor.u32 %v3694, 2147483648
  %v3784 = vxor.u32 %v3773, 2147483648
  %v3785 = vmul.f32 %v3778, 1.442695
  %v3786 = vpow.pop %v3785
  %v3787 = vmul.f32 %v3779, 1.442695
  %v3788 = vpow.pop %v3787
  %v3789 = vmul.f32 %v3780, 1.442695
  %v3790 = vpow.pop %v3789
  %v3791 = vmul.f32 %v3781, 1.442695
  %v3792 = vpow.pop %v3791
  %v3793 = vmul.f32 %v3782, 1.442695
  %v3794 = vpow.pop %v3793
  %v3795 = vmul.f32 %v3783, 1.442695
  %v3796 = vpow.pop %v3795
  %v3797 = vmul.f32 %v3784, 1.442695
  %v3798 = vpow.pop %v3797
  %v3799 = vadd.f32 %v3786, 1.0
  %v3800 = vadd.f32 %v3788, 1.0
  %v3801 = vadd.f32 %v3790, 1.0
  %v3802 = vadd.f32 %v3792, 1.0
  %v3803 = vadd.f32 %v3794, 1.0
  %v3804 = vadd.f32 %v3796, 1.0
  %v3805 = vadd.f32 %v3798, 1.0
  %v3806 = vrcp.pop %v3799
  %v3807 = vmul.f32 1.0, %v3806
  %v3808 = vrcp.pop %v3800
  %v3809 = vmul.f32 1.0, %v3808
  %v3810 = vrcp.pop %v3801
  %v3811 = vmul.f32 1.0, %v3810
  %v3812 = vrcp.pop %v3802
  %v3813 = vmul.f32 1.0, %v3812
  %v3814 = vrcp.pop %v3803
  %v3815 = vmul.f32 1.0, %v3814
  %v3816 = vrcp.pop %v3804
  %v3817 = vmul.f32 1.0, %v3816
  %v3818 = vrcp.pop %v3805
  %v3819 = vmul.f32 1.0, %v3818
  %3820 = vst [vmem:[%s10] sm:$0xff] %v3807
  %3821 = vst [vmem:[%s10 + $0x8] sm:$0xff] %v3809
  %3822 = vst [vmem:[%s10 + $0x10] sm:$0xff] %v3811
  %3823 = vst [vmem:[%s10 + $0x18] sm:$0xff] %v3813
  %3824 = vst [vmem:[%s10 + $0x20] sm:$0xff] %v3815
  %3825 = vst [vmem:[%s10 + $0x28] sm:$0xff] %v3817
  %3826 = vst.msk [vmem:[%s10 + $0x30] sm:$0xff] %vm1264, %v3819
  %3827 = vst [vmem:[%s11] sm:$0xff] %v1995
  %3828 = vst [vmem:[%s11 + $0x8] sm:$0xff] %v1997
  // Predicated region
  $region42: #{vae_forward.1} parent=0 // pred_check
    _
  $region43: #{vae_forward.1} parent=0 // pred_check_branch
    %3830 = sbr.rel (0) target = $region45
  $region44: #{vae_forward.1} parent=0 // pred_region
    _
  $region45: #{vae_forward.1} parent=0 // pred_fallthru
    _
  // Predicated region
  $region46: #{vae_forward.1} parent=0 // pred_check
    _
  $region47: #{vae_forward.1} parent=0 // pred_check_branch
    %3832 = sbr.rel (0) target = $region49
  $region48: #{vae_forward.1} parent=0 // pred_region
    _
  $region49: #{vae_forward.1} parent=0 // pred_fallthru
    _
  // Predicated region
  $region50: #{vae_forward.1} parent=0 // pred_check
    _
  $region51: #{vae_forward.1} parent=0 // pred_check_branch
    %3834 = sbr.rel (0) target = $region53
  $region52: #{vae_forward.1} parent=0 // pred_region
    _
  $region53: #{vae_forward.1} parent=0 // pred_fallthru
    _
  // Predicated region
  $region54: #{vae_forward.1} parent=0 // pred_check
    _
  $region55: #{vae_forward.1} parent=0 // pred_check_branch
    %3836 = sbr.rel (0) target = $region57
  $region56: #{vae_forward.1} parent=0 // pred_region
    _
  $region57: #{vae_forward.1} parent=0 // pred_fallthru
    _

</llo_original>
